<compile_context>
chip_gen: v5e
topology: v5e:2x2
jax: 0.10.0
libtpu: 0.0.40
codegen_flags: <defaults>
</compile_context>

<pallas_src>
import functools

import jax
import jax.numpy as jnp
import numpy as np
from jax.experimental import pallas as pl
from jax.experimental.pallas import tpu as pltpu


def _round_up(x, m):
    return ((x + m - 1) // m) * m


def affinity_kernel(x_ref, yT_ref, w1x_ref, w1yT_ref, b1_ref, b2_ref, o_ref, *,
                    n_pos_chunks, pairwise_dtype, sublane_reduce):
    """One (batch, i-tile, j-tile) grid step.

    x_ref   : (1, TI, d)      X tile
    yT_ref  : (1, d, TJ)      Y tile, pre-transposed (d on sublanes, j on lanes)
    w1x_ref : (nc, d, HC)     chunked W1[:, :d]^T, columns scaled by |w2| (permuted)
    w1yT_ref: (nc, HC, d)     chunked W1[:, d:],   rows    scaled by |w2| (permuted)
    b1_ref  : (nc, 1, HC)     chunked b1 * |w2| (permuted)
    b2_ref  : (1, 1)
    o_ref   : (1, TI, TJ)
    """
    x = x_ref[0]                      # (TI, d)
    yT = yT_ref[0]                    # (d, TJ)
    ti = x.shape[0]
    tj = yT.shape[1]
    hc = w1x_ref.shape[2]
    n_chunks = w1x_ref.shape[0]

    def body(c, acc):
        # +1 for the positive-sign hidden units, -1 for the negative ones
        # (the per-element w2 multiply has been folded into the weights; the
        # sign only touches the (TI, TJ) partial below, not the hot loop).
        sign = jnp.where(c < n_pos_chunks, 1.0, -1.0).astype(jnp.float32)
        # Per-point hidden pre-activations for this H chunk (tiny MXU dots,
        # fully hidden under the pairwise VPU work).
        xa = jnp.dot(x, w1x_ref[c],
                     preferred_element_type=jnp.float32) + b1_ref[c]      # (TI, HC)
        ybT = jnp.dot(w1yT_ref[c], yT,
                      preferred_element_type=jnp.float32)                 # (HC, TJ)
        # Optional reduced-precision pairwise math (bf16 pays off on v6e/v7x
        # which have a bf16 VPU; keep f32 on v5e).  Default is f32.
        xa = xa.astype(pairwise_dtype)
        ybT = ybT.astype(pairwise_dtype)
        if sublane_reduce:
            # Pairwise combine with TJ on lanes and the H chunk on sublanes:
            # the H reduction below is vreg adds (VALU) + a tiny sublane tree,
            # instead of a cross-lane reduce per vreg on the XLUs.
            xab = jax.lax.broadcast_in_dim(xa, (ti, hc, tj), (0, 1))      # (TI, HC, TJ)
            z = jnp.maximum(xab + ybT[None, :, :], 0)                     # (TI, HC, TJ)
            partial = jnp.sum(z, axis=1)                                  # (TI, TJ)
        else:
            # Fallback orientation (H on lanes, cross-lane reduce).  Slower, only
            # used if the lane-broadcast relayout above fails to lower.
            z = jnp.maximum(xa[:, None, :] + ybT.T[None, :, :], 0)        # (TI, TJ, HC)
            partial = jnp.sum(z, axis=-1)                                 # (TI, TJ)
        return acc + sign * partial.astype(jnp.float32)

    acc = jax.lax.fori_loop(0, n_chunks, body,
                            jnp.zeros((ti, tj), jnp.float32))
    o_ref[0] = (acc + b2_ref[0, 0]).astype(o_ref.dtype)


def _prepare_weights(W1, B1, W2, d, h_chunk):
    """Fold W2 into W1/B1 and repack into per-chunk slabs.

    Columns (hidden units) are scaled by |w2|, permuted so all sign(w2)>=0 units
    come first, and each sign block is zero-padded up to a multiple of h_chunk
    (zero columns contribute relu(0)=0, so padding is exact).
    """
    W1 = np.asarray(jax.device_get(W1), np.float32)               # (H, 2d)
    B1 = np.asarray(jax.device_get(B1), np.float32)               # (H,)
    w2 = np.asarray(jax.device_get(W2), np.float32).reshape(-1)   # (H,)
    H = W1.shape[0]

    pos = w2 >= 0.0
    order = np.concatenate([np.nonzero(pos)[0], np.nonzero(~pos)[0]])
    n_pos = int(pos.sum())
    n_neg = H - n_pos
    scale = np.abs(w2)[order]
    W1p = W1[order] * scale[:, None]
    B1p = B1[order] * scale

    hp = _round_up(n_pos, h_chunk)
    hn = _round_up(n_neg, h_chunk)
    Ht = hp + hn
    W1f = np.zeros((Ht, 2 * d), np.float32)
    B1f = np.zeros((Ht,), np.float32)
    W1f[:n_pos] = W1p[:n_pos]
    B1f[:n_pos] = B1p[:n_pos]
    W1f[hp:hp + n_neg] = W1p[n_pos:]
    B1f[hp:hp + n_neg] = B1p[n_pos:]

    nc = Ht // h_chunk
    n_pos_chunks = hp // h_chunk
    # (nc, d, HC): so x @ w1x[c] works;  (nc, HC, d): so w1yT[c] @ yT works.
    w1x = np.ascontiguousarray(W1f[:, :d].reshape(nc, h_chunk, d).transpose(0, 2, 1))
    w1yT = np.ascontiguousarray(W1f[:, d:].reshape(nc, h_chunk, d))
    b1 = B1f.reshape(nc, 1, h_chunk)
    return (jnp.asarray(w1x), jnp.asarray(w1yT), jnp.asarray(b1),
            n_pos_chunks, nc, Ht)


def affinity_fc(X, Y, W1, B1, W2, B2, *, tile_i=128, tile_j=128, h_chunk=64,
                pairwise_dtype=jnp.float32, matmul_dtype=None,
                vmem_limit_bytes=48 * 1024 * 1024):
    """Pallas forward for AffinityFC (default single hidden layer).

    W1: (H, 2d), B1: (H,), W2: (1, H), B2: (1,)  -- PyTorch nn.Linear layout.
    On v6e/v7x `pairwise_dtype=jnp.bfloat16` roughly halves the VALU work in the
    hot loop (expect ~1e-2 relative error); keep f32 on v5e.  `matmul_dtype=bf16`
    makes the (already hidden) MXU dots cheaper.  On v5e/v6e tile_i/h_chunk can
    be raised (256) thanks to the larger 128 MiB VMEM; do not copy that to v7x.
    """
    B, Nx, d = X.shape
    By, Ny, dy = Y.shape
    assert By == B and dy == d
    H, d2 = W1.shape
    assert d2 == 2 * d and W2.shape == (1, H) and B1.shape == (H,)

    # TODO(synk): weights must be concrete for the |w2| sign-block permutation;
    # if this wrapper is traced over the weights, hoist _prepare_weights outside.
    w1x, w1yT, b1, n_pos_chunks, nc, Ht = _prepare_weights(W1, B1, W2, d, h_chunk)
    b2 = jnp.asarray(np.asarray(jax.device_get(B2), np.float32).reshape(1, 1))

    # --- tile selection -------------------------------------------------------
    # BlockSpec legality: second-to-last block dims multiple of 8 (or full
    # extent), last dims multiple of 128 (or full extent).  A 128-wide j-tile
    # keeps output stores lane-dense (unmasked vst) for realistic Ny.
    ti = tile_i if Nx >= tile_i else _round_up(Nx, 8)
    tj = tile_j if Ny >= tile_j else _round_up(Ny, 8)
    Nxp = _round_up(Nx, ti)
    Nyp = _round_up(Ny, tj)

    Xp = jnp.pad(X, ((0, 0), (0, Nxp - Nx), (0, 0))) if Nxp != Nx else X
    Yp = jnp.pad(Y, ((0, 0), (0, Nyp - Ny), (0, 0))) if Nyp != Ny else Y
    YT = jnp.transpose(Yp, (0, 2, 1))            # (B, d, Nyp): j on lanes in-kernel

    if matmul_dtype is not None:
        Xp = Xp.astype(matmul_dtype)
        YT = YT.astype(matmul_dtype)
        w1x = w1x.astype(matmul_dtype)
        w1yT = w1yT.astype(matmul_dtype)

    # For v7x megacore sharding, B*(Nxp/ti)*(Nyp/tj) should be >= 2 and fairly
    # even; shrink tile_i for tiny problems rather than leaving a TC idle.
    grid = (B, Nxp // ti, Nyp // tj)

    # Advisory cost model: the pairwise VPU work dominates, not the small dots.
    flops = (3 * B * Nxp * Nyp * Ht
             + 2 * B * d * Ht * (Nxp * (Nyp // tj) + Nyp * (Nxp // ti)))
    bytes_accessed = 4 * (Xp.size + YT.size + w1x.size + w1yT.size + b1.size
                          + b2.size + B * Nxp * Nyp)
    cost = pl.CostEstimate(flops=int(flops), transcendentals=0,
                           bytes_accessed=int(bytes_accessed))

    compiler_params = pltpu.CompilerParams(
        # xa/ybT are recomputed per tile (cheap MXU work), so every grid axis is
        # independent and can be sharded across TensorCores (2 TCs on v7x).
        dimension_semantics=("parallel", "parallel", "parallel"),
        # Explicit scoped-VMEM limit: big enough for the streamed (TI, HC, TJ)
        # intermediates, with headroom under v7x's 64 MiB physical VMEM.
        vmem_limit_bytes=vmem_limit_bytes,
    )

    def build(sublane_reduce):
        kernel = functools.partial(
            affinity_kernel, n_pos_chunks=n_pos_chunks,
            pairwise_dtype=pairwise_dtype, sublane_reduce=sublane_reduce)
        return pl.pallas_call(
            kernel,
            out_shape=jax.ShapeDtypeStruct((B, Nxp, Nyp), jnp.float32),
            grid_spec=pltpu.PrefetchScalarGridSpec(
                num_scalar_prefetch=0,
                grid=grid,
                in_specs=[
                    # X tile is constant across the inner j sweep -> DMA'd once per i.
                    pl.BlockSpec((1, ti, d), lambda b, i, j: (b, i, 0)),
                    pl.BlockSpec((1, d, tj), lambda b, i, j: (b, 0, j)),
                    # Weights: constant index maps -> fetched once, reused every step.
                    # TODO(synk): on VMEM-tight v7x configs add
                    # pipeline_mode=pl.Buffered(1) to drop the redundant 2nd buffer.
                    pl.BlockSpec((nc, d, h_chunk), lambda b, i, j: (0, 0, 0)),
                    pl.BlockSpec((nc, h_chunk, d), lambda b, i, j: (0, 0, 0)),
                    pl.BlockSpec((nc, 1, h_chunk), lambda b, i, j: (0, 0, 0)),
                    pl.BlockSpec((1, 1), lambda b, i, j: (0, 0)),
                ],
                out_specs=pl.BlockSpec((1, ti, tj), lambda b, i, j: (b, i, j)),
            ),
            compiler_params=compiler_params,
            cost_estimate=cost,
        )

    args = (Xp, YT, w1x, w1yT, b1, b2)
    try:
        out = jax.block_until_ready(build(True)(*args))
    except Exception:
        # Lane-broadcast relayout rejected by this toolchain: fall back to the
        # proven (H-on-lanes, cross-lane reduce) orientation.  Same numerics.
        out = build(False)(*args)
    return out[:, :Nx, :Ny]


def reference(X, Y, W1, B1, W2, B2):
    """Pure-JAX replica of the PyTorch forward (materializes cat_feat)."""
    B, Nx, d = X.shape
    Ny = Y.shape[1]
    cat = jnp.concatenate(
        [
            jnp.broadcast_to(X[:, :, None, :], (B, Nx, Ny, d)),
            jnp.broadcast_to(Y[:, None, :, :], (B, Nx, Ny, d)),
        ],
        axis=-1,
    )                                                                # (B, Nx, Ny, 2d)
    h = jnp.maximum(cat @ W1.T + B1, 0.0)                            # (B, Nx, Ny, H)
    return (h @ W2.T + B2)[..., 0]                                   # (B, Nx, Ny)


if __name__ == "__main__":
    # Small shapes consistent with the module (d = feature dim, H = hidden dim).
    # Ny=20 exercises the pad-to-tile path; H=256 exercises the H chunking and
    # the positive/negative sign-block split.
    B, Nx, Ny, d, H = 2, 16, 20, 32, 256
    key = jax.random.PRNGKey(0)
    kx, ky, kw1, kb1, kw2, kb2 = jax.random.split(key, 6)

    X = jax.random.normal(kx, (B, Nx, d), dtype=jnp.float32)
    Y = jax.random.normal(ky, (B, Ny, d), dtype=jnp.float32)

    # Deterministic nn.Linear-style init (uniform(-1/sqrt(fan_in), 1/sqrt(fan_in))).
    fan1 = 2 * d
    W1 = jax.random.uniform(kw1, (H, 2 * d), jnp.float32, -fan1 ** -0.5, fan1 ** -0.5)
    B1 = jax.random.uniform(kb1, (H,), jnp.float32, -fan1 ** -0.5, fan1 ** -0.5)
    W2 = jax.random.uniform(kw2, (1, H), jnp.float32, -H ** -0.5, H ** -0.5)
    B2 = jax.random.uniform(kb2, (1,), jnp.float32, -H ** -0.5, H ** -0.5)

    out = affinity_fc(X, Y, W1, B1, W2, B2)
    out = jax.block_until_ready(out)

    ref = reference(X, Y, W1, B1, W2, B2)
    assert out.shape == (B, Nx, Ny)
    err = float(jnp.max(jnp.abs(out - ref)))
    assert jnp.allclose(out, ref, atol=1e-4, rtol=1e-4), err

    print("KERNEL_OK")
</pallas_src>

<mosaic_0001>
module attributes {stable_mosaic.version = 11 : i64} {
  func.func @affinity_kernel(%arg0: i32, %arg1: i32, %arg2: i32, %arg3: memref<1x16x32xf32, #tpu.memory_space<vmem>>, %arg4: memref<1x32x24xf32, #tpu.memory_space<vmem>>, %arg5: memref<5x32x64xf32, #tpu.memory_space<vmem>>, %arg6: memref<5x64x32xf32, #tpu.memory_space<vmem>>, %arg7: memref<5x1x64xf32, #tpu.memory_space<vmem>>, %arg8: memref<1x1xf32, #tpu.memory_space<vmem>>, %arg9: memref<1x16x24xf32, #tpu.memory_space<vmem>>) attributes {dimension_semantics = [#tpu.dimension_semantics<parallel>, #tpu.dimension_semantics<parallel>, #tpu.dimension_semantics<parallel>], iteration_bounds = array<i64: 2, 1, 1>, scalar_prefetch = 0 : i64, scratch_operands = 0 : i64, tpu.core_type = #tpu.core_type<tc>, window_params = [{transform_indices = @transform_0, window_bounds = array<i64: 1, 16, 32>}, {transform_indices = @transform_1, window_bounds = array<i64: 1, 32, 24>}, {pipeline_mode = #tpu.pipeline_mode<synchronous>, transform_indices = @transform_2, window_bounds = array<i64: 5, 32, 64>}, {pipeline_mode = #tpu.pipeline_mode<synchronous>, transform_indices = @transform_3, window_bounds = array<i64: 5, 64, 32>}, {pipeline_mode = #tpu.pipeline_mode<synchronous>, transform_indices = @transform_4, window_bounds = array<i64: 5, 1, 64>}, {pipeline_mode = #tpu.pipeline_mode<synchronous>, transform_indices = @transform_5, window_bounds = array<i64: 1, 1>}, {transform_indices = @transform_6, window_bounds = array<i64: 1, 16, 24>}]} {
    %c0 = arith.constant 0 : index
    %c0_0 = arith.constant 0 : index
    %c0_1 = arith.constant 0 : index
    %0 = vector.load %arg3[%c0, %c0_0, %c0_1] : memref<1x16x32xf32, #tpu.memory_space<vmem>>, vector<1x16x32xf32>
    %1 = vector.shape_cast %0 : vector<1x16x32xf32> to vector<16x32xf32>
    %c0_2 = arith.constant 0 : index
    %c0_3 = arith.constant 0 : index
    %c0_4 = arith.constant 0 : index
    %2 = vector.load %arg4[%c0_2, %c0_3, %c0_4] : memref<1x32x24xf32, #tpu.memory_space<vmem>>, vector<1x32x24xf32>
    %3 = vector.shape_cast %2 : vector<1x32x24xf32> to vector<32x24xf32>
    %cst = arith.constant 0.000000e+00 : f32
    %4 = vector.broadcast %cst : f32 to vector<16x24xf32>
    %c0_i32 = arith.constant 0 : i32
    %c5_i32 = arith.constant 5 : i32
    %5 = arith.addi %c0_i32, %c5_i32 : i32
    %c1_i32 = arith.constant 1 : i32
    %6 = scf.for %arg10 = %c0_i32 to %5 step %c1_i32 iter_args(%arg11 = %4) -> (vector<16x24xf32>)  : i32 {
      %c2_i32 = arith.constant 2 : i32
      %14 = arith.cmpi slt, %arg10, %c2_i32 : i32
      %cst_11 = arith.constant 1.000000e+00 : f32
      %cst_12 = arith.constant -1.000000e+00 : f32
      %15 = arith.select %14, %cst_11, %cst_12 : f32
      %16 = arith.index_cast %arg10 : i32 to index
      %c0_13 = arith.constant 0 : index
      %c0_14 = arith.constant 0 : index
      %17 = vector.load %arg5[%16, %c0_13, %c0_14] : memref<5x32x64xf32, #tpu.memory_space<vmem>>, vector<1x32x64xf32>
      %18 = vector.shape_cast %17 : vector<1x32x64xf32> to vector<32x64xf32>
      %cst_15 = arith.constant dense<0.000000e+00> : vector<16x64xf32>
      %19 = tpu.matmul %1, %18, %cst_15 {dimension_numbers = #tpu.dot_dimension_numbers<[1], [0], [0], [1], [0, 0, 1, 1], [], []>} : vector<16x32xf32>, vector<32x64xf32>, vector<16x64xf32> -> vector<16x64xf32>
      %20 = arith.index_cast %arg10 : i32 to index
      %c0_16 = arith.constant 0 : index
      %c0_17 = arith.constant 0 : index
      %21 = vector.load %arg7[%20, %c0_16, %c0_17] : memref<5x1x64xf32, #tpu.memory_space<vmem>>, vector<1x1x64xf32>
      %22 = vector.shape_cast %21 : vector<1x1x64xf32> to vector<1x64xf32>
      %23 = vector.broadcast %22 : vector<1x64xf32> to vector<16x64xf32>
      %24 = arith.addf %19, %23 : vector<16x64xf32>
      %25 = arith.index_cast %arg10 : i32 to index
      %c0_18 = arith.constant 0 : index
      %c0_19 = arith.constant 0 : index
      %26 = vector.load %arg6[%25, %c0_18, %c0_19] : memref<5x64x32xf32, #tpu.memory_space<vmem>>, vector<1x64x32xf32>
      %27 = vector.shape_cast %26 : vector<1x64x32xf32> to vector<64x32xf32>
      %cst_20 = arith.constant dense<0.000000e+00> : vector<64x24xf32>
      %28 = tpu.matmul %27, %3, %cst_20 {dimension_numbers = #tpu.dot_dimension_numbers<[1], [0], [0], [1], [0, 0, 1, 1], [], []>} : vector<64x32xf32>, vector<32x24xf32>, vector<64x24xf32> -> vector<64x24xf32>
      %29 = vector.shape_cast %24 : vector<16x64xf32> to vector<16x64x1xf32>
      %30 = vector.broadcast %29 : vector<16x64x1xf32> to vector<16x64x24xf32>
      %31 = vector.shape_cast %28 : vector<64x24xf32> to vector<1x64x24xf32>
      %32 = vector.broadcast %31 : vector<1x64x24xf32> to vector<16x64x24xf32>
      %33 = arith.addf %30, %32 : vector<16x64x24xf32>
      %cst_21 = arith.constant 0.000000e+00 : f32
      %34 = vector.broadcast %cst_21 : f32 to vector<16x64x24xf32>
      %35 = arith.maximumf %33, %34 : vector<16x64x24xf32>
      %cst_22 = arith.constant dense<0.000000e+00> : vector<16x24xf32>
      %36 = vector.multi_reduction <add>, %35, %cst_22 [1] : vector<16x64x24xf32> to vector<16x24xf32>
      %37 = vector.broadcast %15 : f32 to vector<16x24xf32>
      %38 = arith.mulf %37, %36 : vector<16x24xf32>
      %39 = arith.addf %arg11, %38 : vector<16x24xf32>
      scf.yield %39 : vector<16x24xf32>
    }
    %c5_i32_5 = arith.constant 5 : i32
    %c0_6 = arith.constant 0 : index
    %c0_7 = arith.constant 0 : index
    %7 = vector.load %arg8[%c0_6, %c0_7] : memref<1x1xf32, #tpu.memory_space<vmem>>, vector<1x1xf32>
    %8 = vector.extract %7[0, 0] : f32 from vector<1x1xf32>
    %9 = vector.broadcast %8 : f32 to vector<16x24xf32>
    %10 = arith.addf %6, %9 : vector<16x24xf32>
    %c0_8 = arith.constant 0 : index
    %c0_9 = arith.constant 0 : index
    %c0_10 = arith.constant 0 : index
    %11 = vector.load %arg9[%c0_8, %c0_9, %c0_10] : memref<1x16x24xf32, #tpu.memory_space<vmem>>, vector<1x16x24xf32>
    %12 = vector.shape_cast %11 : vector<1x16x24xf32> to vector<16x24xf32>
    %13 = vector.shape_cast %10 : vector<16x24xf32> to vector<1x16x24xf32>
    tpu.vector_store %arg9[%c0_8, %c0_9, %c0_10], %13 {strides = array<i32>} : memref<1x16x24xf32, #tpu.memory_space<vmem>>, vector<1x16x24xf32>,
    return
  }
  func.func @transform_0(%arg0: i32, %arg1: i32, %arg2: i32) -> (i32, i32, i32) {
    %c0_i32 = arith.constant 0 : i32
    %c0_i32_0 = arith.constant 0 : i32
    return %arg0, %arg1, %c0_i32 : i32, i32, i32
  }
  func.func @transform_1(%arg0: i32, %arg1: i32, %arg2: i32) -> (i32, i32, i32) {
    %c0_i32 = arith.constant 0 : i32
    %c0_i32_0 = arith.constant 0 : i32
    return %arg0, %c0_i32, %arg2 : i32, i32, i32
  }
  func.func @transform_2(%arg0: i32, %arg1: i32, %arg2: i32) -> (i32, i32, i32) {
    %c0_i32 = arith.constant 0 : i32
    %c0_i32_0 = arith.constant 0 : i32
    %c0_i32_1 = arith.constant 0 : i32
    %c0_i32_2 = arith.constant 0 : i32
    return %c0_i32, %c0_i32_0, %c0_i32_1 : i32, i32, i32
  }
  func.func @transform_3(%arg0: i32, %arg1: i32, %arg2: i32) -> (i32, i32, i32) {
    %c0_i32 = arith.constant 0 : i32
    %c0_i32_0 = arith.constant 0 : i32
    %c0_i32_1 = arith.constant 0 : i32
    %c0_i32_2 = arith.constant 0 : i32
    return %c0_i32, %c0_i32_0, %c0_i32_1 : i32, i32, i32
  }
  func.func @transform_4(%arg0: i32, %arg1: i32, %arg2: i32) -> (i32, i32, i32) {
    %c0_i32 = arith.constant 0 : i32
    %c0_i32_0 = arith.constant 0 : i32
    %c0_i32_1 = arith.constant 0 : i32
    %c0_i32_2 = arith.constant 0 : i32
    return %c0_i32, %c0_i32_0, %c0_i32_1 : i32, i32, i32
  }
  func.func @transform_5(%arg0: i32, %arg1: i32, %arg2: i32) -> (i32, i32) {
    %c0_i32 = arith.constant 0 : i32
    %c0_i32_0 = arith.constant 0 : i32
    %c0_i32_1 = arith.constant 0 : i32
    return %c0_i32, %c0_i32_0 : i32, i32
  }
  func.func @transform_6(%arg0: i32, %arg1: i32, %arg2: i32) -> (i32, i32, i32) {
    %c0_i32 = arith.constant 0 : i32
    return %arg0, %arg1, %arg2 : i32, i32, i32
  }
}

module attributes {stable_mosaic.version = 11 : i64} {
  func.func @affinity_kernel(%arg0: i32, %arg1: i32, %arg2: i32, %arg3: memref<1x16x32xf32, #tpu.memory_space<vmem>>, %arg4: memref<1x32x24xf32, #tpu.memory_space<vmem>>, %arg5: memref<5x32x64xf32, #tpu.memory_space<vmem>>, %arg6: memref<5x64x32xf32, #tpu.memory_space<vmem>>, %arg7: memref<5x1x64xf32, #tpu.memory_space<vmem>>, %arg8: memref<1x1xf32, #tpu.memory_space<vmem>>, %arg9: memref<1x16x24xf32, #tpu.memory_space<vmem>>) attributes {dimension_semantics = [#tpu.dimension_semantics<parallel>, #tpu.dimension_semantics<parallel>, #tpu.dimension_semantics<parallel>], iteration_bounds = array<i64: 2, 1, 1>, scalar_prefetch = 0 : i64, scratch_operands = 0 : i64, tpu.core_type = #tpu.core_type<tc>, window_params = [{transform_indices = @transform_0, window_bounds = array<i64: 1, 16, 32>}, {transform_indices = @transform_1, window_bounds = array<i64: 1, 32, 24>}, {pipeline_mode = #tpu.pipeline_mode<synchronous>, transform_indices = @transform_2, window_bounds = array<i64: 5, 32, 64>}, {pipeline_mode = #tpu.pipeline_mode<synchronous>, transform_indices = @transform_3, window_bounds = array<i64: 5, 64, 32>}, {pipeline_mode = #tpu.pipeline_mode<synchronous>, transform_indices = @transform_4, window_bounds = array<i64: 5, 1, 64>}, {pipeline_mode = #tpu.pipeline_mode<synchronous>, transform_indices = @transform_5, window_bounds = array<i64: 1, 1>}, {transform_indices = @transform_6, window_bounds = array<i64: 1, 16, 24>}]} {
    %c0 = arith.constant 0 : index
    %c0_0 = arith.constant 0 : index
    %c0_1 = arith.constant 0 : index
    %0 = vector.load %arg3[%c0, %c0_0, %c0_1] : memref<1x16x32xf32, #tpu.memory_space<vmem>>, vector<1x16x32xf32>
    %1 = vector.shape_cast %0 : vector<1x16x32xf32> to vector<16x32xf32>
    %c0_2 = arith.constant 0 : index
    %c0_3 = arith.constant 0 : index
    %c0_4 = arith.constant 0 : index
    %2 = vector.load %arg4[%c0_2, %c0_3, %c0_4] : memref<1x32x24xf32, #tpu.memory_space<vmem>>, vector<1x32x24xf32>
    %3 = vector.shape_cast %2 : vector<1x32x24xf32> to vector<32x24xf32>
    %cst = arith.constant 0.000000e+00 : f32
    %4 = vector.broadcast %cst : f32 to vector<16x24xf32>
    %c0_i32 = arith.constant 0 : i32
    %c5_i32 = arith.constant 5 : i32
    %5 = arith.addi %c0_i32, %c5_i32 : i32
    %c1_i32 = arith.constant 1 : i32
    %6 = scf.for %arg10 = %c0_i32 to %5 step %c1_i32 iter_args(%arg11 = %4) -> (vector<16x24xf32>)  : i32 {
      %c2_i32 = arith.constant 2 : i32
      %14 = arith.cmpi slt, %arg10, %c2_i32 : i32
      %cst_11 = arith.constant 1.000000e+00 : f32
      %cst_12 = arith.constant -1.000000e+00 : f32
      %15 = arith.select %14, %cst_11, %cst_12 : f32
      %16 = arith.index_cast %arg10 : i32 to index
      %c0_13 = arith.constant 0 : index
      %c0_14 = arith.constant 0 : index
      %17 = vector.load %arg5[%16, %c0_13, %c0_14] : memref<5x32x64xf32, #tpu.memory_space<vmem>>, vector<1x32x64xf32>
      %18 = vector.shape_cast %17 : vector<1x32x64xf32> to vector<32x64xf32>
      %cst_15 = arith.constant dense<0.000000e+00> : vector<16x64xf32>
      %19 = tpu.matmul %1, %18, %cst_15 {dimension_numbers = #tpu.dot_dimension_numbers<[1], [0], [0], [1], [0, 0, 1, 1], [], []>} : vector<16x32xf32>, vector<32x64xf32>, vector<16x64xf32> -> vector<16x64xf32>
      %20 = arith.index_cast %arg10 : i32 to index
      %c0_16 = arith.constant 0 : index
      %c0_17 = arith.constant 0 : index
      %21 = vector.load %arg7[%20, %c0_16, %c0_17] : memref<5x1x64xf32, #tpu.memory_space<vmem>>, vector<1x1x64xf32>
      %22 = vector.shape_cast %21 : vector<1x1x64xf32> to vector<1x64xf32>
      %23 = vector.broadcast %22 : vector<1x64xf32> to vector<16x64xf32>
      %24 = arith.addf %19, %23 : vector<16x64xf32>
      %25 = arith.index_cast %arg10 : i32 to index
      %c0_18 = arith.constant 0 : index
      %c0_19 = arith.constant 0 : index
      %26 = vector.load %arg6[%25, %c0_18, %c0_19] : memref<5x64x32xf32, #tpu.memory_space<vmem>>, vector<1x64x32xf32>
      %27 = vector.shape_cast %26 : vector<1x64x32xf32> to vector<64x32xf32>
      %cst_20 = arith.constant dense<0.000000e+00> : vector<64x24xf32>
      %28 = tpu.matmul %27, %3, %cst_20 {dimension_numbers = #tpu.dot_dimension_numbers<[1], [0], [0], [1], [0, 0, 1, 1], [], []>} : vector<64x32xf32>, vector<32x24xf32>, vector<64x24xf32> -> vector<64x24xf32>
      %29 = vector.shape_cast %24 : vector<16x64xf32> to vector<16x1x64xf32>
      %30 = tpu.transpose %28, [1, 0] : vector<64x24xf32> -> vector<24x64xf32>
      %31 = vector.shape_cast %30 : vector<24x64xf32> to vector<1x24x64xf32>
      %32 = vector.broadcast %29 : vector<16x1x64xf32> to vector<16x24x64xf32>
      %33 = vector.broadcast %31 : vector<1x24x64xf32> to vector<16x24x64xf32>
      %34 = arith.addf %32, %33 : vector<16x24x64xf32>
      %cst_21 = arith.constant 0.000000e+00 : f32
      %35 = vector.broadcast %cst_21 : f32 to vector<16x24x64xf32>
      %36 = arith.maximumf %34, %35 : vector<16x24x64xf32>
      %cst_22 = arith.constant dense<0.000000e+00> : vector<16x24xf32>
      %37 = vector.multi_reduction <add>, %36, %cst_22 [2] : vector<16x24x64xf32> to vector<16x24xf32>
      %38 = vector.broadcast %15 : f32 to vector<16x24xf32>
      %39 = arith.mulf %38, %37 : vector<16x24xf32>
      %40 = arith.addf %arg11, %39 : vector<16x24xf32>
      scf.yield %40 : vector<16x24xf32>
    }
    %c5_i32_5 = arith.constant 5 : i32
    %c0_6 = arith.constant 0 : index
    %c0_7 = arith.constant 0 : index
    %7 = vector.load %arg8[%c0_6, %c0_7] : memref<1x1xf32, #tpu.memory_space<vmem>>, vector<1x1xf32>
    %8 = vector.extract %7[0, 0] : f32 from vector<1x1xf32>
    %9 = vector.broadcast %8 : f32 to vector<16x24xf32>
    %10 = arith.addf %6, %9 : vector<16x24xf32>
    %c0_8 = arith.constant 0 : index
    %c0_9 = arith.constant 0 : index
    %c0_10 = arith.constant 0 : index
    %11 = vector.load %arg9[%c0_8, %c0_9, %c0_10] : memref<1x16x24xf32, #tpu.memory_space<vmem>>, vector<1x16x24xf32>
    %12 = vector.shape_cast %11 : vector<1x16x24xf32> to vector<16x24xf32>
    %13 = vector.shape_cast %10 : vector<16x24xf32> to vector<1x16x24xf32>
    tpu.vector_store %arg9[%c0_8, %c0_9, %c0_10], %13 {strides = array<i32>} : memref<1x16x24xf32, #tpu.memory_space<vmem>>, vector<1x16x24xf32>,
    return
  }
  func.func @transform_0(%arg0: i32, %arg1: i32, %arg2: i32) -> (i32, i32, i32) {
    %c0_i32 = arith.constant 0 : i32
    %c0_i32_0 = arith.constant 0 : i32
    return %arg0, %arg1, %c0_i32 : i32, i32, i32
  }
  func.func @transform_1(%arg0: i32, %arg1: i32, %arg2: i32) -> (i32, i32, i32) {
    %c0_i32 = arith.constant 0 : i32
    %c0_i32_0 = arith.constant 0 : i32
    return %arg0, %c0_i32, %arg2 : i32, i32, i32
  }
  func.func @transform_2(%arg0: i32, %arg1: i32, %arg2: i32) -> (i32, i32, i32) {
    %c0_i32 = arith.constant 0 : i32
    %c0_i32_0 = arith.constant 0 : i32
    %c0_i32_1 = arith.constant 0 : i32
    %c0_i32_2 = arith.constant 0 : i32
    return %c0_i32, %c0_i32_0, %c0_i32_1 : i32, i32, i32
  }
  func.func @transform_3(%arg0: i32, %arg1: i32, %arg2: i32) -> (i32, i32, i32) {
    %c0_i32 = arith.constant 0 : i32
    %c0_i32_0 = arith.constant 0 : i32
    %c0_i32_1 = arith.constant 0 : i32
    %c0_i32_2 = arith.constant 0 : i32
    return %c0_i32, %c0_i32_0, %c0_i32_1 : i32, i32, i32
  }
  func.func @transform_4(%arg0: i32, %arg1: i32, %arg2: i32) -> (i32, i32, i32) {
    %c0_i32 = arith.constant 0 : i32
    %c0_i32_0 = arith.constant 0 : i32
    %c0_i32_1 = arith.constant 0 : i32
    %c0_i32_2 = arith.constant 0 : i32
    return %c0_i32, %c0_i32_0, %c0_i32_1 : i32, i32, i32
  }
  func.func @transform_5(%arg0: i32, %arg1: i32, %arg2: i32) -> (i32, i32) {
    %c0_i32 = arith.constant 0 : i32
    %c0_i32_0 = arith.constant 0 : i32
    %c0_i32_1 = arith.constant 0 : i32
    return %c0_i32, %c0_i32_0 : i32, i32
  }
  func.func @transform_6(%arg0: i32, %arg1: i32, %arg2: i32) -> (i32, i32, i32) {
    %c0_i32 = arith.constant 0 : i32
    return %arg0, %arg1, %arg2 : i32, i32, i32
  }
}

</mosaic_0001>

<llo_original>
// kernel: tpu_custom_call.1
$region0: #{tpu_custom_call.1}
  #allocation0 [shape = 'u32[]', space=smem, size = 0x4, offset = 0x4, fixed_abs, tag = 'smem constant byte address 0x4 - core index']
  #allocation1 [shape = 'u32[72,128]{1,0:T(1,128)}', space=vmem, size = 0x9000, scoped, tag = 'internal scratch']
  #allocation2 [shape = 'f32[1,1]{1,0:T(1,128)S(1)}', space=vmem, size = 0x200, scoped, tag = 'scoped memory for tpu_custom_call.1']
  %s0 = inlined_call_operand.vmem [shape: f32[2,16,32], index: 0, kind: input, shape index: {}]
  %s1 = inlined_call_operand.vmem [shape: f32[2,32,24], index: 1, kind: input, shape index: {}]
  %s2 = inlined_call_operand.vmem [shape: f32[5,32,64], index: 2, kind: input, shape index: {}]
  %s3 = inlined_call_operand.vmem [shape: f32[5,64,32], index: 3, kind: input, shape index: {}]
  %s4 = inlined_call_operand.vmem [shape: f32[5,1,64], index: 4, kind: input, shape index: {}]
  %s5 = inlined_call_operand.<no memory space> [shape: f32[1,1], index: 5, kind: input, shape index: {}]
  %s6 = inlined_call_operand.hbm [shape: f32[2,16,24], index: 6, kind: output, shape index: {}]
  %s7 = sld [smem:[#allocation0]]
  $region64: #{tpu_custom_call.1} parent=0
    _
  %s9 = ssub.s32 1, %s7
  %s10 = scalar_select 0, %s9, %s7
  %v11 = vstv %s5
  %12 = vst [vmem:[#allocation2] sm:$0x1] %v11
  $region1: #{tpu_custom_call.1} parent=0
    #allocation3 [shape = 'u8[16384]{0}', space=vmem, size = 0x4000, scoped, tag = 'output window, operand 0']
    #allocation4 [shape = 's32[2]{0}', space=sflag, size = 0x8, scoped, tag = 'scoped memory for tpu_custom_call.1']
    %13 = vsyncpa [#allocation4], 0
    %s14 = scalar_lea.sflag [#allocation4], 1
    %15 = vsyncpa %s14, 0
    loop: start=0, step=1, limit=4
    $region2: #{tpu_custom_call.1} parent=1 // loop_pre_header
      _
    $region3: #{tpu_custom_call.1} parent=1 // loop_header
      %s17 = sphi 0, %s21
      %p18 = scmp.ge.s32.totalorder %s17, 4
      %s24 = sphi 0, %s43
      %s25 = sphi 0, %s39
      %s26 = sphi 0, %s35
      %s27 = sphi 0, %s24
      %s28 = sphi 0, %s25
      %s29 = sphi 0, %s26
      %s30 = sphi 0, %s27
      %s31 = sphi 0, %s28
      %s32 = sphi 0, %s29
      %s48 = sphi 0, %s50
      %s51 = sphi 0, %s48
      %s52 = sphi 0, %s51
      %s68 = sphi 0, %s52
      %s76 = sphi 0, %s78
      %s79 = sphi 0, %s76
      %s80 = sphi 0, %s79
      %s96 = sphi 0, %s80
      %s100 = sphi 0, %s100
      %s102 = sphi 0, %s100
      %s103 = sphi 0, %s102
      %s117 = sphi 0, %s103
      %s121 = sphi 0, %s121
      %s123 = sphi 0, %s121
      %s124 = sphi 0, %s123
      %s138 = sphi 0, %s124
      %s142 = sphi 0, %s142
      %s144 = sphi 0, %s142
      %s145 = sphi 0, %s144
      %s159 = sphi 0, %s145
      %s163 = sphi 0, %s163
      %s165 = sphi 0, %s163
      %s166 = sphi 0, %s165
      %s180 = sphi 0, %s166
      %s190 = sphi 0, %s192
      %s193 = sphi 0, %s190
      %s194 = sphi 0, %s193
      %s210 = sphi 0, %s194
    $region4: #{tpu_custom_call.1} parent=1 // loop_header_branch
      %20 = sbr.rel (%p18) target = $region8
    $region5: #{tpu_custom_call.1} parent=1 // loop_body
      %s22 = ssub.s32 %s17, 1
      %s23 = ssub.s32 %s17, 2
      %s33 = sadd.s32 1, %s26
      %p34 = scmp.ge.s32.totalorder %s33, 1
      %s35 = scalar_select %p34, 0, %s33
      %s36 = sadd.s32 1, %s25
      %s37 = scalar_select %p34, %s36, %s25
      %p38 = scmp.ge.s32.totalorder %s37, 1
      %s39 = scalar_select %p38, 0, %s37
      %s40 = sadd.s32 1, %s24
      %s41 = scalar_select %p38, %s40, %s24
      %p42 = scmp.ge.s32.totalorder %s41, 2
      %s43 = scalar_select %p42, 0, %s41
      %s44 = ssub.s32 %s24, %s43
      %s45 = ssub.s32 %s25, %s39
      %s46 = sor.u32 %s44, %s45
      %p47 = scmp.eq.s32.totalorder %s46, 0
      %s49 = sadd.s32 %s48, 1
      %s50 = scalar_select %p47, %s48, %s49
      %p53 = pneg %p47
      %p54 = scmp.eq.s32.totalorder %s17, 1
      %p55 = por %p53, %p54
      %p56 = scmp.ne.s32.totalorder %s48, %s51
      %p57 = scmp.eq.s32.totalorder %s17, 0
      %p58 = por %p56, %p57
      %p59 = scmp.ne.s32.totalorder %s48, %s51
      %p60 = scmp.eq.s32.totalorder %s22, 1
      %p61 = por %p59, %p60
      %p62 = scmp.ne.s32.totalorder %s51, %s52
      %p63 = scmp.eq.s32.totalorder %s22, 0
      %p64 = por %p62, %p63
      %p65 = scmp.ne.s32.totalorder %s51, %s52
      %p66 = scmp.eq.s32.totalorder %s23, 1
      %p67 = por %p65, %p66
      %p69 = scmp.ne.s32.totalorder %s52, %s68
      %p70 = scmp.eq.s32.totalorder %s23, 0
      %p71 = por %p69, %p70
      %s72 = ssub.s32 %s24, %s43
      %s73 = ssub.s32 %s26, %s35
      %s74 = sor.u32 %s72, %s73
      %p75 = scmp.eq.s32.totalorder %s74, 0
      %s77 = sadd.s32 %s76, 1
      %s78 = scalar_select %p75, %s76, %s77
      %p81 = pneg %p75
      %p82 = scmp.eq.s32.totalorder %s17, 1
      %p83 = por %p81, %p82
      %p84 = scmp.ne.s32.totalorder %s76, %s79
      %p85 = scmp.eq.s32.totalorder %s17, 0
      %p86 = por %p84, %p85
      %p87 = scmp.ne.s32.totalorder %s76, %s79
      %p88 = scmp.eq.s32.totalorder %s22, 1
      %p89 = por %p87, %p88
      %p90 = scmp.ne.s32.totalorder %s79, %s80
      %p91 = scmp.eq.s32.totalorder %s22, 0
      %p92 = por %p90, %p91
      %p93 = scmp.ne.s32.totalorder %s79, %s80
      %p94 = scmp.eq.s32.totalorder %s23, 1
      %p95 = por %p93, %p94
      %p97 = scmp.ne.s32.totalorder %s80, %s96
      %p98 = scmp.eq.s32.totalorder %s23, 0
      %p99 = por %p97, %p98
      %s101 = sadd.s32 %s100, 1
      %p104 = scmp.eq.s32.totalorder %s17, 1
      %p105 = scmp.ne.s32.totalorder %s100, %s102
      %p106 = scmp.eq.s32.totalorder %s17, 0
      %p107 = por %p105, %p106
      %p108 = scmp.ne.s32.totalorder %s100, %s102
      %p109 = scmp.eq.s32.totalorder %s22, 1
      %p110 = por %p108, %p109
      %p111 = scmp.ne.s32.totalorder %s102, %s103
      %p112 = scmp.eq.s32.totalorder %s22, 0
      %p113 = por %p111, %p112
      %p114 = scmp.ne.s32.totalorder %s102, %s103
      %p115 = scmp.eq.s32.totalorder %s23, 1
      %p116 = por %p114, %p115
      %p118 = scmp.ne.s32.totalorder %s103, %s117
      %p119 = scmp.eq.s32.totalorder %s23, 0
      %p120 = por %p118, %p119
      %s122 = sadd.s32 %s121, 1
      %p125 = scmp.eq.s32.totalorder %s17, 1
      %p126 = scmp.ne.s32.totalorder %s121, %s123
      %p127 = scmp.eq.s32.totalorder %s17, 0
      %p128 = por %p126, %p127
      %p129 = scmp.ne.s32.totalorder %s121, %s123
      %p130 = scmp.eq.s32.totalorder %s22, 1
      %p131 = por %p129, %p130
      %p132 = scmp.ne.s32.totalorder %s123, %s124
      %p133 = scmp.eq.s32.totalorder %s22, 0
      %p134 = por %p132, %p133
      %p135 = scmp.ne.s32.totalorder %s123, %s124
      %p136 = scmp.eq.s32.totalorder %s23, 1
      %p137 = por %p135, %p136
      %p139 = scmp.ne.s32.totalorder %s124, %s138
      %p140 = scmp.eq.s32.totalorder %s23, 0
      %p141 = por %p139, %p140
      %s143 = sadd.s32 %s142, 1
      %p146 = scmp.eq.s32.totalorder %s17, 1
      %p147 = scmp.ne.s32.totalorder %s142, %s144
      %p148 = scmp.eq.s32.totalorder %s17, 0
      %p149 = por %p147, %p148
      %p150 = scmp.ne.s32.totalorder %s142, %s144
      %p151 = scmp.eq.s32.totalorder %s22, 1
      %p152 = por %p150, %p151
      %p153 = scmp.ne.s32.totalorder %s144, %s145
      %p154 = scmp.eq.s32.totalorder %s22, 0
      %p155 = por %p153, %p154
      %p156 = scmp.ne.s32.totalorder %s144, %s145
      %p157 = scmp.eq.s32.totalorder %s23, 1
      %p158 = por %p156, %p157
      %p160 = scmp.ne.s32.totalorder %s145, %s159
      %p161 = scmp.eq.s32.totalorder %s23, 0
      %p162 = por %p160, %p161
      %s164 = sadd.s32 %s163, 1
      %p167 = scmp.eq.s32.totalorder %s17, 1
      %p168 = scmp.ne.s32.totalorder %s163, %s165
      %p169 = scmp.eq.s32.totalorder %s17, 0
      %p170 = por %p168, %p169
      %p171 = scmp.ne.s32.totalorder %s163, %s165
      %p172 = scmp.eq.s32.totalorder %s22, 1
      %p173 = por %p171, %p172
      %p174 = scmp.ne.s32.totalorder %s165, %s166
      %p175 = scmp.eq.s32.totalorder %s22, 0
      %p176 = por %p174, %p175
      %p177 = scmp.ne.s32.totalorder %s165, %s166
      %p178 = scmp.eq.s32.totalorder %s23, 1
      %p179 = por %p177, %p178
      %p181 = scmp.ne.s32.totalorder %s166, %s180
      %p182 = scmp.eq.s32.totalorder %s23, 0
      %p183 = por %p181, %p182
      %s184 = ssub.s32 %s24, %s43
      %s185 = ssub.s32 %s25, %s39
      %s186 = sor.u32 %s184, %s185
      %s187 = ssub.s32 %s26, %s35
      %s188 = sor.u32 %s186, %s187
      %p189 = scmp.eq.s32.totalorder %s188, 0
      %s191 = sadd.s32 %s190, 1
      %s192 = scalar_select %p189, %s190, %s191
      %p195 = pneg %p189
      %p196 = scmp.eq.s32.totalorder %s17, 1
      %p197 = por %p195, %p196
      %p198 = scmp.ne.s32.totalorder %s190, %s193
      %p199 = scmp.eq.s32.totalorder %s17, 0
      %p200 = por %p198, %p199
      %p201 = scmp.ne.s32.totalorder %s190, %s193
      %p202 = scmp.eq.s32.totalorder %s22, 1
      %p203 = por %p201, %p202
      %p204 = scmp.ne.s32.totalorder %s193, %s194
      %p205 = scmp.eq.s32.totalorder %s22, 0
      %p206 = por %p204, %p205
      %p207 = scmp.ne.s32.totalorder %s193, %s194
      %p208 = scmp.eq.s32.totalorder %s23, 1
      %p209 = por %p207, %p208
      %p211 = scmp.ne.s32.totalorder %s194, %s210
      %p212 = scmp.eq.s32.totalorder %s23, 0
      %p213 = por %p211, %p212
      %p214 = scmp.le.s32.totalorder 1, %s17
      %p215 = scmp.lt.s32.totalorder %s17, 3
      %p216 = pnand %p214, %p215
      %p217 = pneg %p216
      // Predicated region
      $region9: #{tpu_custom_call.1} parent=5 // pred_check
        _
      $region10: #{tpu_custom_call.1} parent=5 // pred_check_branch
        %219 = sbr.rel (%p216) target = $region12
      $region11: #{tpu_custom_call.1} parent=5 // pred_region
        %s220 = ssub.s32 %s17, 1
        // Predicated region
        $region13: #{tpu_custom_call.1} parent=11 // pred_check
          %p221 = pneg %p113
        $region14: #{tpu_custom_call.1} parent=11 // pred_check_branch
          %223 = sbr.rel (%p221) target = $region16
        $region15: #{tpu_custom_call.1} parent=11 // pred_region
          _
        $region16: #{tpu_custom_call.1} parent=11 // pred_fallthru
          _
        // Predicated region
        $region17: #{tpu_custom_call.1} parent=11 // pred_check
          %p224 = pneg %p134
        $region18: #{tpu_custom_call.1} parent=11 // pred_check_branch
          %226 = sbr.rel (%p224) target = $region20
        $region19: #{tpu_custom_call.1} parent=11 // pred_region
          _
        $region20: #{tpu_custom_call.1} parent=11 // pred_fallthru
          _
        // Predicated region
        $region21: #{tpu_custom_call.1} parent=11 // pred_check
          %p227 = pneg %p155
        $region22: #{tpu_custom_call.1} parent=11 // pred_check_branch
          %229 = sbr.rel (%p227) target = $region24
        $region23: #{tpu_custom_call.1} parent=11 // pred_region
          _
        $region24: #{tpu_custom_call.1} parent=11 // pred_fallthru
          _
        // Predicated region
        $region25: #{tpu_custom_call.1} parent=11 // pred_check
          %p230 = pneg %p176
        $region26: #{tpu_custom_call.1} parent=11 // pred_check_branch
          %232 = sbr.rel (%p230) target = $region28
        $region27: #{tpu_custom_call.1} parent=11 // pred_region
          _
        $region28: #{tpu_custom_call.1} parent=11 // pred_fallthru
          _
      $region12: #{tpu_custom_call.1} parent=5 // pred_fallthru
        _
      %p233 = scmp.lt.s32.totalorder %s17, 2
      // Predicated region
      $region29: #{tpu_custom_call.1} parent=5 // pred_check
        %p234 = pneg %p233
      $region30: #{tpu_custom_call.1} parent=5 // pred_check_branch
        %236 = sbr.rel (%p234) target = $region32
      $region31: #{tpu_custom_call.1} parent=5 // pred_region
        // Predicated region
        $region33: #{tpu_custom_call.1} parent=31 // pred_check
          %p237 = pneg %p58
        $region34: #{tpu_custom_call.1} parent=31 // pred_check_branch
          %239 = sbr.rel (%p237) target = $region36
        $region35: #{tpu_custom_call.1} parent=31 // pred_region
          %s240 = smul.u32 2, %s25
          %p241 = scmp.lt.s32.totalorder %s24, 1
          %s242 = scalar_select %p241, %s24, 1
          %p243 = scmp.lt.s32.totalorder %s240, 1
          %s244 = scalar_select %p243, %s240, 1
          %s245 = smul.addr %s242, 2
          %s246 = sadd.s32 %s244, %s245
          %s247 = smul.addr %s246, 8
          %s248 = scalar_lea.vmem %s0, %s247
          %s249 = smul.u32 2, %s25
        $region36: #{tpu_custom_call.1} parent=31 // pred_fallthru
          _
        // Predicated region
        $region37: #{tpu_custom_call.1} parent=31 // pred_check
          %p250 = pneg %p86
        $region38: #{tpu_custom_call.1} parent=31 // pred_check_branch
          %252 = sbr.rel (%p250) target = $region40
        $region39: #{tpu_custom_call.1} parent=31 // pred_region
          %p253 = scmp.lt.s32.totalorder %s24, 1
          %s254 = scalar_select %p253, %s24, 1
          %p255 = scmp.lt.s32.totalorder %s26, 0
          %s256 = scalar_select %p255, %s26, 0
          %s257 = smul.addr %s254, 4
          %s258 = sadd.s32 %s256, %s257
          %s259 = smul.addr %s258, 8
          %s260 = scalar_lea.vmem %s1, %s259
        $region40: #{tpu_custom_call.1} parent=31 // pred_fallthru
          _
      $region32: #{tpu_custom_call.1} parent=5 // pred_fallthru
        _
      %p261 = scmp.le.s32.totalorder 1, %s17
      %p262 = scmp.lt.s32.totalorder %s17, 3
      %p263 = pnand %p261, %p262
      %p264 = pneg %p263
      // Predicated region
      $region41: #{tpu_custom_call.1} parent=5 // pred_check
        _
      $region42: #{tpu_custom_call.1} parent=5 // pred_check_branch
        %266 = sbr.rel (%p263) target = $region44
      $region43: #{tpu_custom_call.1} parent=5 // pred_region
        %s267 = ssub.s32 %s17, 1
        %s268 = smul.u32 2, %s28
        %p269 = scmp.lt.s32.totalorder %s27, 1
        %s270 = scalar_select %p269, %s27, 1
        %p271 = scmp.lt.s32.totalorder %s268, 1
        %s272 = scalar_select %p271, %s268, 1
        %s273 = smul.addr %s270, 2
        %s274 = sadd.s32 %s272, %s273
        %s275 = smul.addr %s274, 8
        %s276 = scalar_lea.vmem %s0, %s275
        %p277 = pneg %p64
        %p278 = pneg %p61
        %p279 = scmp.lt.s32.totalorder %s27, 1
        %s280 = scalar_select %p279, %s27, 1
        %p281 = scmp.lt.s32.totalorder %s29, 0
        %s282 = scalar_select %p281, %s29, 0
        %s283 = smul.addr %s280, 4
        %s284 = sadd.s32 %s282, %s283
        %s285 = smul.addr %s284, 8
        %s286 = scalar_lea.vmem %s1, %s285
        %p287 = pneg %p92
        %p288 = pneg %p89
        %p289 = pneg %p113
        %p290 = pneg %p110
        %p291 = pneg %p134
        %p292 = pneg %p131
        %p293 = pneg %p155
        %p294 = pneg %p152
        %p295 = pneg %p176
        %p296 = pneg %p173
        %p297 = pneg %p206
        %p298 = pneg %p203
        %s299 = sand.u32 %s193, 1
        %s300 = scalar_lea.sflag [#allocation4], %s299
        %s301 = sand.u32 %s193, 1
        %s302 = smul.addr %s301, 16
        %s303 = scalar_lea.vmem [#allocation3], %s302
        %s304 = smul.u32 2, %s28
        %p305 = scmp.lt.s32.totalorder %s27, 1
        %s306 = scalar_select %p305, %s27, 1
        %p307 = scmp.lt.s32.totalorder %s304, 1
        %s308 = scalar_select %p307, %s304, 1
        %s309 = smul.addr %s306, 2
        %s310 = sadd.s32 %s308, %s309
        %s311 = smul.addr %s310, 8
        %s312 = scalar_lea.vmem %s0, %s311
        %s313 = smul.u32 2, %s28
        %p314 = scmp.lt.s32.totalorder %s27, 1
        %s315 = scalar_select %p314, %s27, 1
        %p316 = scmp.lt.s32.totalorder %s29, 0
        %s317 = scalar_select %p316, %s29, 0
        %s318 = smul.addr %s315, 4
        %s319 = sadd.s32 %s317, %s318
        %s320 = smul.addr %s319, 8
        %s321 = scalar_lea.vmem %s1, %s320
        %s322 = smul.u32 2, %s28
        %v323 = vld [vmem:[%s312] sm:$0xff]
        %v324 = vld [vmem:[%s312 + $0x8] sm:$0xff]
        %v325 = vld [vmem:[%s321] sm:$0xff]
        %v326 = vld [vmem:[%s321 + $0x8] sm:$0xff]
        %v327 = vld [vmem:[%s321 + $0x10] sm:$0xff]
        %v328 = vld [vmem:[%s321 + $0x18] sm:$0xff]
        loop: start=0, step=1, limit=5
        $region45: #{tpu_custom_call.1} parent=43 // loop_pre_header
          _
        $region46: #{tpu_custom_call.1} parent=43 // loop_header
          %s330 = sphi 0, %s334
          %p331 = scmp.ge.s32.totalorder %s330, 5
          %v335 = vphi 0.0, %v1863
          %v336 = vphi 0.0, %v1864
          %v337 = vphi 0.0, %v1865
          %v338 = vphi 0.0, %v1866
          %v339 = vphi 0.0, %v1867
          %v340 = vphi 0.0, %v1868
          %v341 = vphi 0.0, %v1869
          %v342 = vphi 0.0, %v1870
          %v343 = vphi 0.0, %v1871
          %v344 = vphi 0.0, %v1872
          %v345 = vphi 0.0, %v1873
          %v346 = vphi 0.0, %v1874
          %v347 = vphi 0.0, %v1875
          %v348 = vphi 0.0, %v1876
          %v349 = vphi 0.0, %v1877
          %v350 = vphi 0.0, %v1878
        $region47: #{tpu_custom_call.1} parent=43 // loop_header_branch
          %333 = sbr.rel (%p331) target = $region51
        $region48: #{tpu_custom_call.1} parent=43 // loop_body
          %p351 = scmp.lt.s32.totalorder %s330, 2
          %s352 = scalar_select %p351, 1.0, -1.0
          %s353 = smul.u32 %s330, 32
          %s354 = scalar_lea.vmem %s2, %s353
          %v355 = vld [vmem:[%s354] sm:$0xff]
          %v356 = vld [vmem:[%s354 + $0x8] sm:$0xff]
          %v357 = vld [vmem:[%s354 + $0x10] sm:$0xff]
          %v358 = vld [vmem:[%s354 + $0x18] sm:$0xff]
          %s359 = scalar_lea.vmem %s4, %s330
          %v360 = vld [vmem:[%s359] sm:$0x1]
          %v362 = vperm.slane %v360, 0
          %vm364 = vcmask 261120
          %v366 = vsel %vm364, %v323, 0
          %v369 = vsel %vm364, %v324, 0
          %371 = vmatpush.msra.mxu0 0.0
          %372 = vmatpush.msra.mxu0 0.0
          %373 = vmatpush.msra.mxu0 0.0
          %374 = vmatpush.msra.mxu0 0.0
          %375 = vmatpush.msra.mxu0 0.0
          %376 = vmatpush.msra.mxu0 0.0
          %377 = vmatpush.msra.mxu0 0.0
          %378 = vmatpush.msra.mxu0 0.0
          %379 = vmatpush.msra.mxu0 0.0
          %380 = vmatpush.msra.mxu0 0.0
          %381 = vmatpush.msra.mxu0 0.0
          %382 = vmatpush.msra.mxu0 0.0
          %383 = vmatpush.msra.mxu0 %v358
          %384 = vmatpush.msra.mxu0 %v357
          %385 = vmatpush.msra.mxu0 %v356
          %386 = vmatpush.msra.mxu0 %v355
          %387 = vmatmul.f32.gmra.mxu0 %v366
          %v388 = vpop.f32.mrf.mxu0
          %v389 = vadd.f32 %v362, %v388
          %390 = vmatmul.f32.gmra.mxu0 %v369
          %v391 = vpop.f32.mrf.mxu0
          %v392 = vadd.f32 %v362, %v391
          %393 = vdwg.mxu0
          %s394 = smul.u32 %s330, 64
          %s395 = scalar_lea.vmem %s3, %s394
          %v396 = vld [vmem:[%s395] sm:$0xff]
          %v397 = vld [vmem:[%s395 + $0x8] sm:$0xff]
          %v398 = vld [vmem:[%s395 + $0x10] sm:$0xff]
          %v399 = vld [vmem:[%s395 + $0x18] sm:$0xff]
          %v400 = vld [vmem:[%s395 + $0x20] sm:$0xff]
          %v401 = vld [vmem:[%s395 + $0x28] sm:$0xff]
          %v402 = vld [vmem:[%s395 + $0x30] sm:$0xff]
          %v403 = vld [vmem:[%s395 + $0x38] sm:$0xff]
          %v405 = vsel %vm364, %v396, 0
          %v408 = vsel %vm364, %v397, 0
          %v411 = vsel %vm364, %v398, 0
          %v414 = vsel %vm364, %v399, 0
          %v417 = vsel %vm364, %v400, 0
          %v420 = vsel %vm364, %v401, 0
          %v423 = vsel %vm364, %v402, 0
          %v426 = vsel %vm364, %v403, 0
          %428 = vmatpush.msra.mxu0 0.0
          %429 = vmatpush.msra.mxu0 0.0
          %430 = vmatpush.msra.mxu0 0.0
          %431 = vmatpush.msra.mxu0 0.0
          %432 = vmatpush.msra.mxu0 0.0
          %433 = vmatpush.msra.mxu0 0.0
          %434 = vmatpush.msra.mxu0 0.0
          %435 = vmatpush.msra.mxu0 0.0
          %436 = vmatpush.msra.mxu0 0.0
          %437 = vmatpush.msra.mxu0 0.0
          %438 = vmatpush.msra.mxu0 0.0
          %439 = vmatpush.msra.mxu0 0.0
          %440 = vmatpush.msra.mxu0 %v328
          %441 = vmatpush.msra.mxu0 %v327
          %442 = vmatpush.msra.mxu0 %v326
          %443 = vmatpush.msra.mxu0 %v325
          %444 = vmatmul.f32.gmra.mxu0 %v405
          %v445 = vpop.f32.mrf.mxu0
          %v446 = vadd.f32 0.0, %v445
          %447 = vmatmul.f32.gmra.mxu0 %v408
          %v448 = vpop.f32.mrf.mxu0
          %v449 = vadd.f32 0.0, %v448
          %450 = vmatmul.f32.gmra.mxu0 %v411
          %v451 = vpop.f32.mrf.mxu0
          %v452 = vadd.f32 0.0, %v451
          %453 = vmatmul.f32.gmra.mxu0 %v414
          %v454 = vpop.f32.mrf.mxu0
          %v455 = vadd.f32 0.0, %v454
          %456 = vmatmul.f32.gmra.mxu0 %v417
          %v457 = vpop.f32.mrf.mxu0
          %v458 = vadd.f32 0.0, %v457
          %459 = vmatmul.f32.gmra.mxu0 %v420
          %v460 = vpop.f32.mrf.mxu0
          %v461 = vadd.f32 0.0, %v460
          %462 = vmatmul.f32.gmra.mxu0 %v423
          %v463 = vpop.f32.mrf.mxu0
          %v464 = vadd.f32 0.0, %v463
          %465 = vmatmul.f32.gmra.mxu0 %v426
          %v466 = vpop.f32.mrf.mxu0
          %v467 = vadd.f32 0.0, %v466
          %468 = vdwg.mxu0
          %v469 = vperm.slane %v389, 0
          %v470 = vlaneseq
          %v471 = vshrl.u32 %v470, 7
          %473 = vset.pattern.permute.xlu0 %v471
          %474 = vperm.xlu0 %473, %v469
          %v475 = vpop.permute.xlu0 %474
          %v476 = vlaneseq
          %v477 = vshrl.u32 %v476, 7
          %v478 = vadd.s32 %v477, 8
          %479 = vset.pattern.permute.xlu0 %v478
          %480 = vperm.xlu0 %479, %v469
          %v481 = vpop.permute.xlu0 %480
          %v482 = vlaneseq
          %v483 = vshrl.u32 %v482, 7
          %v484 = vadd.s32 %v483, 16
          %485 = vset.pattern.permute.xlu0 %v484
          %486 = vperm.xlu0 %485, %v469
          %v487 = vpop.permute.xlu0 %486
          %v488 = vlaneseq
          %v489 = vshrl.u32 %v488, 7
          %v490 = vadd.s32 %v489, 24
          %491 = vset.pattern.permute.xlu0 %v490
          %492 = vperm.xlu0 %491, %v469
          %v493 = vpop.permute.xlu0 %492
          %v494 = vlaneseq
          %v495 = vshrl.u32 %v494, 7
          %v496 = vadd.s32 %v495, 32
          %497 = vset.pattern.permute.xlu0 %v496
          %498 = vperm.xlu0 %497, %v469
          %v499 = vpop.permute.xlu0 %498
          %v500 = vlaneseq
          %v501 = vshrl.u32 %v500, 7
          %v502 = vadd.s32 %v501, 40
          %503 = vset.pattern.permute.xlu0 %v502
          %504 = vperm.xlu0 %503, %v469
          %v505 = vpop.permute.xlu0 %504
          %v506 = vlaneseq
          %v507 = vshrl.u32 %v506, 7
          %v508 = vadd.s32 %v507, 48
          %509 = vset.pattern.permute.xlu0 %v508
          %510 = vperm.xlu0 %509, %v469
          %v511 = vpop.permute.xlu0 %510
          %v512 = vlaneseq
          %v513 = vshrl.u32 %v512, 7
          %v514 = vadd.s32 %v513, 56
          %515 = vset.pattern.permute.xlu0 %v514
          %516 = vperm.xlu0 %515, %v469
          %v517 = vpop.permute.xlu0 %516
          %v518 = vperm.slane %v389, 1
          %v519 = vlaneseq
          %v520 = vshrl.u32 %v519, 7
          %522 = vset.pattern.permute.xlu0 %v520
          %523 = vperm.xlu0 %522, %v518
          %v524 = vpop.permute.xlu0 %523
          %v525 = vlaneseq
          %v526 = vshrl.u32 %v525, 7
          %v527 = vadd.s32 %v526, 8
          %528 = vset.pattern.permute.xlu0 %v527
          %529 = vperm.xlu0 %528, %v518
          %v530 = vpop.permute.xlu0 %529
          %v531 = vlaneseq
          %v532 = vshrl.u32 %v531, 7
          %v533 = vadd.s32 %v532, 16
          %534 = vset.pattern.permute.xlu0 %v533
          %535 = vperm.xlu0 %534, %v518
          %v536 = vpop.permute.xlu0 %535
          %v537 = vlaneseq
          %v538 = vshrl.u32 %v537, 7
          %v539 = vadd.s32 %v538, 24
          %540 = vset.pattern.permute.xlu0 %v539
          %541 = vperm.xlu0 %540, %v518
          %v542 = vpop.permute.xlu0 %541
          %v543 = vlaneseq
          %v544 = vshrl.u32 %v543, 7
          %v545 = vadd.s32 %v544, 32
          %546 = vset.pattern.permute.xlu0 %v545
          %547 = vperm.xlu0 %546, %v518
          %v548 = vpop.permute.xlu0 %547
          %v549 = vlaneseq
          %v550 = vshrl.u32 %v549, 7
          %v551 = vadd.s32 %v550, 40
          %552 = vset.pattern.permute.xlu0 %v551
          %553 = vperm.xlu0 %552, %v518
          %v554 = vpop.permute.xlu0 %553
          %v555 = vlaneseq
          %v556 = vshrl.u32 %v555, 7
          %v557 = vadd.s32 %v556, 48
          %558 = vset.pattern.permute.xlu0 %v557
          %559 = vperm.xlu0 %558, %v518
          %v560 = vpop.permute.xlu0 %559
          %v561 = vlaneseq
          %v562 = vshrl.u32 %v561, 7
          %v563 = vadd.s32 %v562, 56
          %564 = vset.pattern.permute.xlu0 %v563
          %565 = vperm.xlu0 %564, %v518
          %v566 = vpop.permute.xlu0 %565
          %v567 = vperm.slane %v389, 2
          %v568 = vlaneseq
          %v569 = vshrl.u32 %v568, 7
          %571 = vset.pattern.permute.xlu0 %v569
          %572 = vperm.xlu0 %571, %v567
          %v573 = vpop.permute.xlu0 %572
          %v574 = vlaneseq
          %v575 = vshrl.u32 %v574, 7
          %v576 = vadd.s32 %v575, 8
          %577 = vset.pattern.permute.xlu0 %v576
          %578 = vperm.xlu0 %577, %v567
          %v579 = vpop.permute.xlu0 %578
          %v580 = vlaneseq
          %v581 = vshrl.u32 %v580, 7
          %v582 = vadd.s32 %v581, 16
          %583 = vset.pattern.permute.xlu0 %v582
          %584 = vperm.xlu0 %583, %v567
          %v585 = vpop.permute.xlu0 %584
          %v586 = vlaneseq
          %v587 = vshrl.u32 %v586, 7
          %v588 = vadd.s32 %v587, 24
          %589 = vset.pattern.permute.xlu0 %v588
          %590 = vperm.xlu0 %589, %v567
          %v591 = vpop.permute.xlu0 %590
          %v592 = vlaneseq
          %v593 = vshrl.u32 %v592, 7
          %v594 = vadd.s32 %v593, 32
          %595 = vset.pattern.permute.xlu0 %v594
          %596 = vperm.xlu0 %595, %v567
          %v597 = vpop.permute.xlu0 %596
          %v598 = vlaneseq
          %v599 = vshrl.u32 %v598, 7
          %v600 = vadd.s32 %v599, 40
          %601 = vset.pattern.permute.xlu0 %v600
          %602 = vperm.xlu0 %601, %v567
          %v603 = vpop.permute.xlu0 %602
          %v604 = vlaneseq
          %v605 = vshrl.u32 %v604, 7
          %v606 = vadd.s32 %v605, 48
          %607 = vset.pattern.permute.xlu0 %v606
          %608 = vperm.xlu0 %607, %v567
          %v609 = vpop.permute.xlu0 %608
          %v610 = vlaneseq
          %v611 = vshrl.u32 %v610, 7
          %v612 = vadd.s32 %v611, 56
          %613 = vset.pattern.permute.xlu0 %v612
          %614 = vperm.xlu0 %613, %v567
          %v615 = vpop.permute.xlu0 %614
          %v616 = vperm.slane %v389, 3
          %v617 = vlaneseq
          %v618 = vshrl.u32 %v617, 7
          %620 = vset.pattern.permute.xlu0 %v618
          %621 = vperm.xlu0 %620, %v616
          %v622 = vpop.permute.xlu0 %621
          %v623 = vlaneseq
          %v624 = vshrl.u32 %v623, 7
          %v625 = vadd.s32 %v624, 8
          %626 = vset.pattern.permute.xlu0 %v625
          %627 = vperm.xlu0 %626, %v616
          %v628 = vpop.permute.xlu0 %627
          %v629 = vlaneseq
          %v630 = vshrl.u32 %v629, 7
          %v631 = vadd.s32 %v630, 16
          %632 = vset.pattern.permute.xlu0 %v631
          %633 = vperm.xlu0 %632, %v616
          %v634 = vpop.permute.xlu0 %633
          %v635 = vlaneseq
          %v636 = vshrl.u32 %v635, 7
          %v637 = vadd.s32 %v636, 24
          %638 = vset.pattern.permute.xlu0 %v637
          %639 = vperm.xlu0 %638, %v616
          %v640 = vpop.permute.xlu0 %639
          %v641 = vlaneseq
          %v642 = vshrl.u32 %v641, 7
          %v643 = vadd.s32 %v642, 32
          %644 = vset.pattern.permute.xlu0 %v643
          %645 = vperm.xlu0 %644, %v616
          %v646 = vpop.permute.xlu0 %645
          %v647 = vlaneseq
          %v648 = vshrl.u32 %v647, 7
          %v649 = vadd.s32 %v648, 40
          %650 = vset.pattern.permute.xlu0 %v649
          %651 = vperm.xlu0 %650, %v616
          %v652 = vpop.permute.xlu0 %651
          %v653 = vlaneseq
          %v654 = vshrl.u32 %v653, 7
          %v655 = vadd.s32 %v654, 48
          %656 = vset.pattern.permute.xlu0 %v655
          %657 = vperm.xlu0 %656, %v616
          %v658 = vpop.permute.xlu0 %657
          %v659 = vlaneseq
          %v660 = vshrl.u32 %v659, 7
          %v661 = vadd.s32 %v660, 56
          %662 = vset.pattern.permute.xlu0 %v661
          %663 = vperm.xlu0 %662, %v616
          %v664 = vpop.permute.xlu0 %663
          %v665 = vperm.slane %v389, 4
          %v666 = vlaneseq
          %v667 = vshrl.u32 %v666, 7
          %669 = vset.pattern.permute.xlu0 %v667
          %670 = vperm.xlu0 %669, %v665
          %v671 = vpop.permute.xlu0 %670
          %v672 = vlaneseq
          %v673 = vshrl.u32 %v672, 7
          %v674 = vadd.s32 %v673, 8
          %675 = vset.pattern.permute.xlu0 %v674
          %676 = vperm.xlu0 %675, %v665
          %v677 = vpop.permute.xlu0 %676
          %v678 = vlaneseq
          %v679 = vshrl.u32 %v678, 7
          %v680 = vadd.s32 %v679, 16
          %681 = vset.pattern.permute.xlu0 %v680
          %682 = vperm.xlu0 %681, %v665
          %v683 = vpop.permute.xlu0 %682
          %v684 = vlaneseq
          %v685 = vshrl.u32 %v684, 7
          %v686 = vadd.s32 %v685, 24
          %687 = vset.pattern.permute.xlu0 %v686
          %688 = vperm.xlu0 %687, %v665
          %v689 = vpop.permute.xlu0 %688
          %v690 = vlaneseq
          %v691 = vshrl.u32 %v690, 7
          %v692 = vadd.s32 %v691, 32
          %693 = vset.pattern.permute.xlu0 %v692
          %694 = vperm.xlu0 %693, %v665
          %v695 = vpop.permute.xlu0 %694
          %v696 = vlaneseq
          %v697 = vshrl.u32 %v696, 7
          %v698 = vadd.s32 %v697, 40
          %699 = vset.pattern.permute.xlu0 %v698
          %700 = vperm.xlu0 %699, %v665
          %v701 = vpop.permute.xlu0 %700
          %v702 = vlaneseq
          %v703 = vshrl.u32 %v702, 7
          %v704 = vadd.s32 %v703, 48
          %705 = vset.pattern.permute.xlu0 %v704
          %706 = vperm.xlu0 %705, %v665
          %v707 = vpop.permute.xlu0 %706
          %v708 = vlaneseq
          %v709 = vshrl.u32 %v708, 7
          %v710 = vadd.s32 %v709, 56
          %711 = vset.pattern.permute.xlu0 %v710
          %712 = vperm.xlu0 %711, %v665
          %v713 = vpop.permute.xlu0 %712
          %v714 = vperm.slane %v389, 5
          %v715 = vlaneseq
          %v716 = vshrl.u32 %v715, 7
          %718 = vset.pattern.permute.xlu0 %v716
          %719 = vperm.xlu0 %718, %v714
          %v720 = vpop.permute.xlu0 %719
          %v721 = vlaneseq
          %v722 = vshrl.u32 %v721, 7
          %v723 = vadd.s32 %v722, 8
          %724 = vset.pattern.permute.xlu0 %v723
          %725 = vperm.xlu0 %724, %v714
          %v726 = vpop.permute.xlu0 %725
          %v727 = vlaneseq
          %v728 = vshrl.u32 %v727, 7
          %v729 = vadd.s32 %v728, 16
          %730 = vset.pattern.permute.xlu0 %v729
          %731 = vperm.xlu0 %730, %v714
          %v732 = vpop.permute.xlu0 %731
          %v733 = vlaneseq
          %v734 = vshrl.u32 %v733, 7
          %v735 = vadd.s32 %v734, 24
          %736 = vset.pattern.permute.xlu0 %v735
          %737 = vperm.xlu0 %736, %v714
          %v738 = vpop.permute.xlu0 %737
          %v739 = vlaneseq
          %v740 = vshrl.u32 %v739, 7
          %v741 = vadd.s32 %v740, 32
          %742 = vset.pattern.permute.xlu0 %v741
          %743 = vperm.xlu0 %742, %v714
          %v744 = vpop.permute.xlu0 %743
          %v745 = vlaneseq
          %v746 = vshrl.u32 %v745, 7
          %v747 = vadd.s32 %v746, 40
          %748 = vset.pattern.permute.xlu0 %v747
          %749 = vperm.xlu0 %748, %v714
          %v750 = vpop.permute.xlu0 %749
          %v751 = vlaneseq
          %v752 = vshrl.u32 %v751, 7
          %v753 = vadd.s32 %v752, 48
          %754 = vset.pattern.permute.xlu0 %v753
          %755 = vperm.xlu0 %754, %v714
          %v756 = vpop.permute.xlu0 %755
          %v757 = vlaneseq
          %v758 = vshrl.u32 %v757, 7
          %v759 = vadd.s32 %v758, 56
          %760 = vset.pattern.permute.xlu0 %v759
          %761 = vperm.xlu0 %760, %v714
          %v762 = vpop.permute.xlu0 %761
          %v763 = vperm.slane %v389, 6
          %v764 = vlaneseq
          %v765 = vshrl.u32 %v764, 7
          %767 = vset.pattern.permute.xlu0 %v765
          %768 = vperm.xlu0 %767, %v763
          %v769 = vpop.permute.xlu0 %768
          %v770 = vlaneseq
          %v771 = vshrl.u32 %v770, 7
          %v772 = vadd.s32 %v771, 8
          %773 = vset.pattern.permute.xlu0 %v772
          %774 = vperm.xlu0 %773, %v763
          %v775 = vpop.permute.xlu0 %774
          %v776 = vlaneseq
          %v777 = vshrl.u32 %v776, 7
          %v778 = vadd.s32 %v777, 16
          %779 = vset.pattern.permute.xlu0 %v778
          %780 = vperm.xlu0 %779, %v763
          %v781 = vpop.permute.xlu0 %780
          %v782 = vlaneseq
          %v783 = vshrl.u32 %v782, 7
          %v784 = vadd.s32 %v783, 24
          %785 = vset.pattern.permute.xlu0 %v784
          %786 = vperm.xlu0 %785, %v763
          %v787 = vpop.permute.xlu0 %786
          %v788 = vlaneseq
          %v789 = vshrl.u32 %v788, 7
          %v790 = vadd.s32 %v789, 32
          %791 = vset.pattern.permute.xlu0 %v790
          %792 = vperm.xlu0 %791, %v763
          %v793 = vpop.permute.xlu0 %792
          %v794 = vlaneseq
          %v795 = vshrl.u32 %v794, 7
          %v796 = vadd.s32 %v795, 40
          %797 = vset.pattern.permute.xlu0 %v796
          %798 = vperm.xlu0 %797, %v763
          %v799 = vpop.permute.xlu0 %798
          %v800 = vlaneseq
          %v801 = vshrl.u32 %v800, 7
          %v802 = vadd.s32 %v801, 48
          %803 = vset.pattern.permute.xlu0 %v802
          %804 = vperm.xlu0 %803, %v763
          %v805 = vpop.permute.xlu0 %804
          %v806 = vlaneseq
          %v807 = vshrl.u32 %v806, 7
          %v808 = vadd.s32 %v807, 56
          %809 = vset.pattern.permute.xlu0 %v808
          %810 = vperm.xlu0 %809, %v763
          %v811 = vpop.permute.xlu0 %810
          %v812 = vperm.slane %v389, 7
          %v813 = vlaneseq
          %v814 = vshrl.u32 %v813, 7
          %816 = vset.pattern.permute.xlu0 %v814
          %817 = vperm.xlu0 %816, %v812
          %v818 = vpop.permute.xlu0 %817
          %v819 = vlaneseq
          %v820 = vshrl.u32 %v819, 7
          %v821 = vadd.s32 %v820, 8
          %822 = vset.pattern.permute.xlu0 %v821
          %823 = vperm.xlu0 %822, %v812
          %v824 = vpop.permute.xlu0 %823
          %v825 = vlaneseq
          %v826 = vshrl.u32 %v825, 7
          %v827 = vadd.s32 %v826, 16
          %828 = vset.pattern.permute.xlu0 %v827
          %829 = vperm.xlu0 %828, %v812
          %v830 = vpop.permute.xlu0 %829
          %v831 = vlaneseq
          %v832 = vshrl.u32 %v831, 7
          %v833 = vadd.s32 %v832, 24
          %834 = vset.pattern.permute.xlu0 %v833
          %835 = vperm.xlu0 %834, %v812
          %v836 = vpop.permute.xlu0 %835
          %v837 = vlaneseq
          %v838 = vshrl.u32 %v837, 7
          %v839 = vadd.s32 %v838, 32
          %840 = vset.pattern.permute.xlu0 %v839
          %841 = vperm.xlu0 %840, %v812
          %v842 = vpop.permute.xlu0 %841
          %v843 = vlaneseq
          %v844 = vshrl.u32 %v843, 7
          %v845 = vadd.s32 %v844, 40
          %846 = vset.pattern.permute.xlu0 %v845
          %847 = vperm.xlu0 %846, %v812
          %v848 = vpop.permute.xlu0 %847
          %v849 = vlaneseq
          %v850 = vshrl.u32 %v849, 7
          %v851 = vadd.s32 %v850, 48
          %852 = vset.pattern.permute.xlu0 %v851
          %853 = vperm.xlu0 %852, %v812
          %v854 = vpop.permute.xlu0 %853
          %v855 = vlaneseq
          %v856 = vshrl.u32 %v855, 7
          %v857 = vadd.s32 %v856, 56
          %858 = vset.pattern.permute.xlu0 %v857
          %859 = vperm.xlu0 %858, %v812
          %v860 = vpop.permute.xlu0 %859
          %v861 = vperm.slane %v392, 0
          %v862 = vlaneseq
          %v863 = vshrl.u32 %v862, 7
          %865 = vset.pattern.permute.xlu0 %v863
          %866 = vperm.xlu0 %865, %v861
          %v867 = vpop.permute.xlu0 %866
          %v868 = vlaneseq
          %v869 = vshrl.u32 %v868, 7
          %v870 = vadd.s32 %v869, 8
          %871 = vset.pattern.permute.xlu0 %v870
          %872 = vperm.xlu0 %871, %v861
          %v873 = vpop.permute.xlu0 %872
          %v874 = vlaneseq
          %v875 = vshrl.u32 %v874, 7
          %v876 = vadd.s32 %v875, 16
          %877 = vset.pattern.permute.xlu0 %v876
          %878 = vperm.xlu0 %877, %v861
          %v879 = vpop.permute.xlu0 %878
          %v880 = vlaneseq
          %v881 = vshrl.u32 %v880, 7
          %v882 = vadd.s32 %v881, 24
          %883 = vset.pattern.permute.xlu0 %v882
          %884 = vperm.xlu0 %883, %v861
          %v885 = vpop.permute.xlu0 %884
          %v886 = vlaneseq
          %v887 = vshrl.u32 %v886, 7
          %v888 = vadd.s32 %v887, 32
          %889 = vset.pattern.permute.xlu0 %v888
          %890 = vperm.xlu0 %889, %v861
          %v891 = vpop.permute.xlu0 %890
          %v892 = vlaneseq
          %v893 = vshrl.u32 %v892, 7
          %v894 = vadd.s32 %v893, 40
          %895 = vset.pattern.permute.xlu0 %v894
          %896 = vperm.xlu0 %895, %v861
          %v897 = vpop.permute.xlu0 %896
          %v898 = vlaneseq
          %v899 = vshrl.u32 %v898, 7
          %v900 = vadd.s32 %v899, 48
          %901 = vset.pattern.permute.xlu0 %v900
          %902 = vperm.xlu0 %901, %v861
          %v903 = vpop.permute.xlu0 %902
          %v904 = vlaneseq
          %v905 = vshrl.u32 %v904, 7
          %v906 = vadd.s32 %v905, 56
          %907 = vset.pattern.permute.xlu0 %v906
          %908 = vperm.xlu0 %907, %v861
          %v909 = vpop.permute.xlu0 %908
          %v910 = vperm.slane %v392, 1
          %v911 = vlaneseq
          %v912 = vshrl.u32 %v911, 7
          %914 = vset.pattern.permute.xlu0 %v912
          %915 = vperm.xlu0 %914, %v910
          %v916 = vpop.permute.xlu0 %915
          %v917 = vlaneseq
          %v918 = vshrl.u32 %v917, 7
          %v919 = vadd.s32 %v918, 8
          %920 = vset.pattern.permute.xlu0 %v919
          %921 = vperm.xlu0 %920, %v910
          %v922 = vpop.permute.xlu0 %921
          %v923 = vlaneseq
          %v924 = vshrl.u32 %v923, 7
          %v925 = vadd.s32 %v924, 16
          %926 = vset.pattern.permute.xlu0 %v925
          %927 = vperm.xlu0 %926, %v910
          %v928 = vpop.permute.xlu0 %927
          %v929 = vlaneseq
          %v930 = vshrl.u32 %v929, 7
          %v931 = vadd.s32 %v930, 24
          %932 = vset.pattern.permute.xlu0 %v931
          %933 = vperm.xlu0 %932, %v910
          %v934 = vpop.permute.xlu0 %933
          %v935 = vlaneseq
          %v936 = vshrl.u32 %v935, 7
          %v937 = vadd.s32 %v936, 32
          %938 = vset.pattern.permute.xlu0 %v937
          %939 = vperm.xlu0 %938, %v910
          %v940 = vpop.permute.xlu0 %939
          %v941 = vlaneseq
          %v942 = vshrl.u32 %v941, 7
          %v943 = vadd.s32 %v942, 40
          %944 = vset.pattern.permute.xlu0 %v943
          %945 = vperm.xlu0 %944, %v910
          %v946 = vpop.permute.xlu0 %945
          %v947 = vlaneseq
          %v948 = vshrl.u32 %v947, 7
          %v949 = vadd.s32 %v948, 48
          %950 = vset.pattern.permute.xlu0 %v949
          %951 = vperm.xlu0 %950, %v910
          %v952 = vpop.permute.xlu0 %951
          %v953 = vlaneseq
          %v954 = vshrl.u32 %v953, 7
          %v955 = vadd.s32 %v954, 56
          %956 = vset.pattern.permute.xlu0 %v955
          %957 = vperm.xlu0 %956, %v910
          %v958 = vpop.permute.xlu0 %957
          %v959 = vperm.slane %v392, 2
          %v960 = vlaneseq
          %v961 = vshrl.u32 %v960, 7
          %963 = vset.pattern.permute.xlu0 %v961
          %964 = vperm.xlu0 %963, %v959
          %v965 = vpop.permute.xlu0 %964
          %v966 = vlaneseq
          %v967 = vshrl.u32 %v966, 7
          %v968 = vadd.s32 %v967, 8
          %969 = vset.pattern.permute.xlu0 %v968
          %970 = vperm.xlu0 %969, %v959
          %v971 = vpop.permute.xlu0 %970
          %v972 = vlaneseq
          %v973 = vshrl.u32 %v972, 7
          %v974 = vadd.s32 %v973, 16
          %975 = vset.pattern.permute.xlu0 %v974
          %976 = vperm.xlu0 %975, %v959
          %v977 = vpop.permute.xlu0 %976
          %v978 = vlaneseq
          %v979 = vshrl.u32 %v978, 7
          %v980 = vadd.s32 %v979, 24
          %981 = vset.pattern.permute.xlu0 %v980
          %982 = vperm.xlu0 %981, %v959
          %v983 = vpop.permute.xlu0 %982
          %v984 = vlaneseq
          %v985 = vshrl.u32 %v984, 7
          %v986 = vadd.s32 %v985, 32
          %987 = vset.pattern.permute.xlu0 %v986
          %988 = vperm.xlu0 %987, %v959
          %v989 = vpop.permute.xlu0 %988
          %v990 = vlaneseq
          %v991 = vshrl.u32 %v990, 7
          %v992 = vadd.s32 %v991, 40
          %993 = vset.pattern.permute.xlu0 %v992
          %994 = vperm.xlu0 %993, %v959
          %v995 = vpop.permute.xlu0 %994
          %v996 = vlaneseq
          %v997 = vshrl.u32 %v996, 7
          %v998 = vadd.s32 %v997, 48
          %999 = vset.pattern.permute.xlu0 %v998
          %1000 = vperm.xlu0 %999, %v959
          %v1001 = vpop.permute.xlu0 %1000
          %v1002 = vlaneseq
          %v1003 = vshrl.u32 %v1002, 7
          %v1004 = vadd.s32 %v1003, 56
          %1005 = vset.pattern.permute.xlu0 %v1004
          %1006 = vperm.xlu0 %1005, %v959
          %v1007 = vpop.permute.xlu0 %1006
          %v1008 = vperm.slane %v392, 3
          %v1009 = vlaneseq
          %v1010 = vshrl.u32 %v1009, 7
          %1012 = vset.pattern.permute.xlu0 %v1010
          %1013 = vperm.xlu0 %1012, %v1008
          %v1014 = vpop.permute.xlu0 %1013
          %v1015 = vlaneseq
          %v1016 = vshrl.u32 %v1015, 7
          %v1017 = vadd.s32 %v1016, 8
          %1018 = vset.pattern.permute.xlu0 %v1017
          %1019 = vperm.xlu0 %1018, %v1008
          %v1020 = vpop.permute.xlu0 %1019
          %v1021 = vlaneseq
          %v1022 = vshrl.u32 %v1021, 7
          %v1023 = vadd.s32 %v1022, 16
          %1024 = vset.pattern.permute.xlu0 %v1023
          %1025 = vperm.xlu0 %1024, %v1008
          %v1026 = vpop.permute.xlu0 %1025
          %v1027 = vlaneseq
          %v1028 = vshrl.u32 %v1027, 7
          %v1029 = vadd.s32 %v1028, 24
          %1030 = vset.pattern.permute.xlu0 %v1029
          %1031 = vperm.xlu0 %1030, %v1008
          %v1032 = vpop.permute.xlu0 %1031
          %v1033 = vlaneseq
          %v1034 = vshrl.u32 %v1033, 7
          %v1035 = vadd.s32 %v1034, 32
          %1036 = vset.pattern.permute.xlu0 %v1035
          %1037 = vperm.xlu0 %1036, %v1008
          %v1038 = vpop.permute.xlu0 %1037
          %v1039 = vlaneseq
          %v1040 = vshrl.u32 %v1039, 7
          %v1041 = vadd.s32 %v1040, 40
          %1042 = vset.pattern.permute.xlu0 %v1041
          %1043 = vperm.xlu0 %1042, %v1008
          %v1044 = vpop.permute.xlu0 %1043
          %v1045 = vlaneseq
          %v1046 = vshrl.u32 %v1045, 7
          %v1047 = vadd.s32 %v1046, 48
          %1048 = vset.pattern.permute.xlu0 %v1047
          %1049 = vperm.xlu0 %1048, %v1008
          %v1050 = vpop.permute.xlu0 %1049
          %v1051 = vlaneseq
          %v1052 = vshrl.u32 %v1051, 7
          %v1053 = vadd.s32 %v1052, 56
          %1054 = vset.pattern.permute.xlu0 %v1053
          %1055 = vperm.xlu0 %1054, %v1008
          %v1056 = vpop.permute.xlu0 %1055
          %v1057 = vperm.slane %v392, 4
          %v1058 = vlaneseq
          %v1059 = vshrl.u32 %v1058, 7
          %1061 = vset.pattern.permute.xlu0 %v1059
          %1062 = vperm.xlu0 %1061, %v1057
          %v1063 = vpop.permute.xlu0 %1062
          %v1064 = vlaneseq
          %v1065 = vshrl.u32 %v1064, 7
          %v1066 = vadd.s32 %v1065, 8
          %1067 = vset.pattern.permute.xlu0 %v1066
          %1068 = vperm.xlu0 %1067, %v1057
          %v1069 = vpop.permute.xlu0 %1068
          %v1070 = vlaneseq
          %v1071 = vshrl.u32 %v1070, 7
          %v1072 = vadd.s32 %v1071, 16
          %1073 = vset.pattern.permute.xlu0 %v1072
          %1074 = vperm.xlu0 %1073, %v1057
          %v1075 = vpop.permute.xlu0 %1074
          %v1076 = vlaneseq
          %v1077 = vshrl.u32 %v1076, 7
          %v1078 = vadd.s32 %v1077, 24
          %1079 = vset.pattern.permute.xlu0 %v1078
          %1080 = vperm.xlu0 %1079, %v1057
          %v1081 = vpop.permute.xlu0 %1080
          %v1082 = vlaneseq
          %v1083 = vshrl.u32 %v1082, 7
          %v1084 = vadd.s32 %v1083, 32
          %1085 = vset.pattern.permute.xlu0 %v1084
          %1086 = vperm.xlu0 %1085, %v1057
          %v1087 = vpop.permute.xlu0 %1086
          %v1088 = vlaneseq
          %v1089 = vshrl.u32 %v1088, 7
          %v1090 = vadd.s32 %v1089, 40
          %1091 = vset.pattern.permute.xlu0 %v1090
          %1092 = vperm.xlu0 %1091, %v1057
          %v1093 = vpop.permute.xlu0 %1092
          %v1094 = vlaneseq
          %v1095 = vshrl.u32 %v1094, 7
          %v1096 = vadd.s32 %v1095, 48
          %1097 = vset.pattern.permute.xlu0 %v1096
          %1098 = vperm.xlu0 %1097, %v1057
          %v1099 = vpop.permute.xlu0 %1098
          %v1100 = vlaneseq
          %v1101 = vshrl.u32 %v1100, 7
          %v1102 = vadd.s32 %v1101, 56
          %1103 = vset.pattern.permute.xlu0 %v1102
          %1104 = vperm.xlu0 %1103, %v1057
          %v1105 = vpop.permute.xlu0 %1104
          %v1106 = vperm.slane %v392, 5
          %v1107 = vlaneseq
          %v1108 = vshrl.u32 %v1107, 7
          %1110 = vset.pattern.permute.xlu0 %v1108
          %1111 = vperm.xlu0 %1110, %v1106
          %v1112 = vpop.permute.xlu0 %1111
          %v1113 = vlaneseq
          %v1114 = vshrl.u32 %v1113, 7
          %v1115 = vadd.s32 %v1114, 8
          %1116 = vset.pattern.permute.xlu0 %v1115
          %1117 = vperm.xlu0 %1116, %v1106
          %v1118 = vpop.permute.xlu0 %1117
          %v1119 = vlaneseq
          %v1120 = vshrl.u32 %v1119, 7
          %v1121 = vadd.s32 %v1120, 16
          %1122 = vset.pattern.permute.xlu0 %v1121
          %1123 = vperm.xlu0 %1122, %v1106
          %v1124 = vpop.permute.xlu0 %1123
          %v1125 = vlaneseq
          %v1126 = vshrl.u32 %v1125, 7
          %v1127 = vadd.s32 %v1126, 24
          %1128 = vset.pattern.permute.xlu0 %v1127
          %1129 = vperm.xlu0 %1128, %v1106
          %v1130 = vpop.permute.xlu0 %1129
          %v1131 = vlaneseq
          %v1132 = vshrl.u32 %v1131, 7
          %v1133 = vadd.s32 %v1132, 32
          %1134 = vset.pattern.permute.xlu0 %v1133
          %1135 = vperm.xlu0 %1134, %v1106
          %v1136 = vpop.permute.xlu0 %1135
          %v1137 = vlaneseq
          %v1138 = vshrl.u32 %v1137, 7
          %v1139 = vadd.s32 %v1138, 40
          %1140 = vset.pattern.permute.xlu0 %v1139
          %1141 = vperm.xlu0 %1140, %v1106
          %v1142 = vpop.permute.xlu0 %1141
          %v1143 = vlaneseq
          %v1144 = vshrl.u32 %v1143, 7
          %v1145 = vadd.s32 %v1144, 48
          %1146 = vset.pattern.permute.xlu0 %v1145
          %1147 = vperm.xlu0 %1146, %v1106
          %v1148 = vpop.permute.xlu0 %1147
          %v1149 = vlaneseq
          %v1150 = vshrl.u32 %v1149, 7
          %v1151 = vadd.s32 %v1150, 56
          %1152 = vset.pattern.permute.xlu0 %v1151
          %1153 = vperm.xlu0 %1152, %v1106
          %v1154 = vpop.permute.xlu0 %1153
          %v1155 = vperm.slane %v392, 6
          %v1156 = vlaneseq
          %v1157 = vshrl.u32 %v1156, 7
          %1159 = vset.pattern.permute.xlu0 %v1157
          %1160 = vperm.xlu0 %1159, %v1155
          %v1161 = vpop.permute.xlu0 %1160
          %v1162 = vlaneseq
          %v1163 = vshrl.u32 %v1162, 7
          %v1164 = vadd.s32 %v1163, 8
          %1165 = vset.pattern.permute.xlu0 %v1164
          %1166 = vperm.xlu0 %1165, %v1155
          %v1167 = vpop.permute.xlu0 %1166
          %v1168 = vlaneseq
          %v1169 = vshrl.u32 %v1168, 7
          %v1170 = vadd.s32 %v1169, 16
          %1171 = vset.pattern.permute.xlu0 %v1170
          %1172 = vperm.xlu0 %1171, %v1155
          %v1173 = vpop.permute.xlu0 %1172
          %v1174 = vlaneseq
          %v1175 = vshrl.u32 %v1174, 7
          %v1176 = vadd.s32 %v1175, 24
          %1177 = vset.pattern.permute.xlu0 %v1176
          %1178 = vperm.xlu0 %1177, %v1155
          %v1179 = vpop.permute.xlu0 %1178
          %v1180 = vlaneseq
          %v1181 = vshrl.u32 %v1180, 7
          %v1182 = vadd.s32 %v1181, 32
          %1183 = vset.pattern.permute.xlu0 %v1182
          %1184 = vperm.xlu0 %1183, %v1155
          %v1185 = vpop.permute.xlu0 %1184
          %v1186 = vlaneseq
          %v1187 = vshrl.u32 %v1186, 7
          %v1188 = vadd.s32 %v1187, 40
          %1189 = vset.pattern.permute.xlu0 %v1188
          %1190 = vperm.xlu0 %1189, %v1155
          %v1191 = vpop.permute.xlu0 %1190
          %v1192 = vlaneseq
          %v1193 = vshrl.u32 %v1192, 7
          %v1194 = vadd.s32 %v1193, 48
          %1195 = vset.pattern.permute.xlu0 %v1194
          %1196 = vperm.xlu0 %1195, %v1155
          %v1197 = vpop.permute.xlu0 %1196
          %v1198 = vlaneseq
          %v1199 = vshrl.u32 %v1198, 7
          %v1200 = vadd.s32 %v1199, 56
          %1201 = vset.pattern.permute.xlu0 %v1200
          %1202 = vperm.xlu0 %1201, %v1155
          %v1203 = vpop.permute.xlu0 %1202
          %v1204 = vperm.slane %v392, 7
          %v1205 = vlaneseq
          %v1206 = vshrl.u32 %v1205, 7
          %1208 = vset.pattern.permute.xlu0 %v1206
          %1209 = vperm.xlu0 %1208, %v1204
          %v1210 = vpop.permute.xlu0 %1209
          %v1211 = vlaneseq
          %v1212 = vshrl.u32 %v1211, 7
          %v1213 = vadd.s32 %v1212, 8
          %1214 = vset.pattern.permute.xlu0 %v1213
          %1215 = vperm.xlu0 %1214, %v1204
          %v1216 = vpop.permute.xlu0 %1215
          %v1217 = vlaneseq
          %v1218 = vshrl.u32 %v1217, 7
          %v1219 = vadd.s32 %v1218, 16
          %1220 = vset.pattern.permute.xlu0 %v1219
          %1221 = vperm.xlu0 %1220, %v1204
          %v1222 = vpop.permute.xlu0 %1221
          %v1223 = vlaneseq
          %v1224 = vshrl.u32 %v1223, 7
          %v1225 = vadd.s32 %v1224, 24
          %1226 = vset.pattern.permute.xlu0 %v1225
          %1227 = vperm.xlu0 %1226, %v1204
          %v1228 = vpop.permute.xlu0 %1227
          %v1229 = vlaneseq
          %v1230 = vshrl.u32 %v1229, 7
          %v1231 = vadd.s32 %v1230, 32
          %1232 = vset.pattern.permute.xlu0 %v1231
          %1233 = vperm.xlu0 %1232, %v1204
          %v1234 = vpop.permute.xlu0 %1233
          %v1235 = vlaneseq
          %v1236 = vshrl.u32 %v1235, 7
          %v1237 = vadd.s32 %v1236, 40
          %1238 = vset.pattern.permute.xlu0 %v1237
          %1239 = vperm.xlu0 %1238, %v1204
          %v1240 = vpop.permute.xlu0 %1239
          %v1241 = vlaneseq
          %v1242 = vshrl.u32 %v1241, 7
          %v1243 = vadd.s32 %v1242, 48
          %1244 = vset.pattern.permute.xlu0 %v1243
          %1245 = vperm.xlu0 %1244, %v1204
          %v1246 = vpop.permute.xlu0 %1245
          %v1247 = vlaneseq
          %v1248 = vshrl.u32 %v1247, 7
          %v1249 = vadd.s32 %v1248, 56
          %1250 = vset.pattern.permute.xlu0 %v1249
          %1251 = vperm.xlu0 %1250, %v1204
          %v1252 = vpop.permute.xlu0 %1251
          %v1253 = vadd.f32 %v475, %v446
          %v1254 = vadd.f32 %v481, %v449
          %v1255 = vadd.f32 %v487, %v452
          %v1256 = vadd.f32 %v493, %v455
          %v1257 = vadd.f32 %v499, %v458
          %v1258 = vadd.f32 %v505, %v461
          %v1259 = vadd.f32 %v511, %v464
          %v1260 = vadd.f32 %v517, %v467
          %v1261 = vadd.f32 %v524, %v446
          %v1262 = vadd.f32 %v530, %v449
          %v1263 = vadd.f32 %v536, %v452
          %v1264 = vadd.f32 %v542, %v455
          %v1265 = vadd.f32 %v548, %v458
          %v1266 = vadd.f32 %v554, %v461
          %v1267 = vadd.f32 %v560, %v464
          %v1268 = vadd.f32 %v566, %v467
          %v1269 = vadd.f32 %v573, %v446
          %v1270 = vadd.f32 %v579, %v449
          %v1271 = vadd.f32 %v585, %v452
          %v1272 = vadd.f32 %v591, %v455
          %v1273 = vadd.f32 %v597, %v458
          %v1274 = vadd.f32 %v603, %v461
          %v1275 = vadd.f32 %v609, %v464
          %v1276 = vadd.f32 %v615, %v467
          %v1277 = vadd.f32 %v622, %v446
          %v1278 = vadd.f32 %v628, %v449
          %v1279 = vadd.f32 %v634, %v452
          %v1280 = vadd.f32 %v640, %v455
          %v1281 = vadd.f32 %v646, %v458
          %v1282 = vadd.f32 %v652, %v461
          %v1283 = vadd.f32 %v658, %v464
          %v1284 = vadd.f32 %v664, %v467
          %v1285 = vadd.f32 %v671, %v446
          %v1286 = vadd.f32 %v677, %v449
          %v1287 = vadd.f32 %v683, %v452
          %v1288 = vadd.f32 %v689, %v455
          %v1289 = vadd.f32 %v695, %v458
          %v1290 = vadd.f32 %v701, %v461
          %v1291 = vadd.f32 %v707, %v464
          %v1292 = vadd.f32 %v713, %v467
          %v1293 = vadd.f32 %v720, %v446
          %v1294 = vadd.f32 %v726, %v449
          %v1295 = vadd.f32 %v732, %v452
          %v1296 = vadd.f32 %v738, %v455
          %v1297 = vadd.f32 %v744, %v458
          %v1298 = vadd.f32 %v750, %v461
          %v1299 = vadd.f32 %v756, %v464
          %v1300 = vadd.f32 %v762, %v467
          %v1301 = vadd.f32 %v769, %v446
          %v1302 = vadd.f32 %v775, %v449
          %v1303 = vadd.f32 %v781, %v452
          %v1304 = vadd.f32 %v787, %v455
          %v1305 = vadd.f32 %v793, %v458
          %v1306 = vadd.f32 %v799, %v461
          %v1307 = vadd.f32 %v805, %v464
          %v1308 = vadd.f32 %v811, %v467
          %v1309 = vadd.f32 %v818, %v446
          %v1310 = vadd.f32 %v824, %v449
          %v1311 = vadd.f32 %v830, %v452
          %v1312 = vadd.f32 %v836, %v455
          %v1313 = vadd.f32 %v842, %v458
          %v1314 = vadd.f32 %v848, %v461
          %v1315 = vadd.f32 %v854, %v464
          %v1316 = vadd.f32 %v860, %v467
          %v1317 = vadd.f32 %v867, %v446
          %v1318 = vadd.f32 %v873, %v449
          %v1319 = vadd.f32 %v879, %v452
          %v1320 = vadd.f32 %v885, %v455
          %v1321 = vadd.f32 %v891, %v458
          %v1322 = vadd.f32 %v897, %v461
          %v1323 = vadd.f32 %v903, %v464
          %v1324 = vadd.f32 %v909, %v467
          %v1325 = vadd.f32 %v916, %v446
          %v1326 = vadd.f32 %v922, %v449
          %v1327 = vadd.f32 %v928, %v452
          %v1328 = vadd.f32 %v934, %v455
          %v1329 = vadd.f32 %v940, %v458
          %v1330 = vadd.f32 %v946, %v461
          %v1331 = vadd.f32 %v952, %v464
          %v1332 = vadd.f32 %v958, %v467
          %v1333 = vadd.f32 %v965, %v446
          %v1334 = vadd.f32 %v971, %v449
          %v1335 = vadd.f32 %v977, %v452
          %v1336 = vadd.f32 %v983, %v455
          %v1337 = vadd.f32 %v989, %v458
          %v1338 = vadd.f32 %v995, %v461
          %v1339 = vadd.f32 %v1001, %v464
          %v1340 = vadd.f32 %v1007, %v467
          %v1341 = vadd.f32 %v1014, %v446
          %v1342 = vadd.f32 %v1020, %v449
          %v1343 = vadd.f32 %v1026, %v452
          %v1344 = vadd.f32 %v1032, %v455
          %v1345 = vadd.f32 %v1038, %v458
          %v1346 = vadd.f32 %v1044, %v461
          %v1347 = vadd.f32 %v1050, %v464
          %v1348 = vadd.f32 %v1056, %v467
          %v1349 = vadd.f32 %v1063, %v446
          %v1350 = vadd.f32 %v1069, %v449
          %v1351 = vadd.f32 %v1075, %v452
          %v1352 = vadd.f32 %v1081, %v455
          %v1353 = vadd.f32 %v1087, %v458
          %v1354 = vadd.f32 %v1093, %v461
          %v1355 = vadd.f32 %v1099, %v464
          %v1356 = vadd.f32 %v1105, %v467
          %v1357 = vadd.f32 %v1112, %v446
          %v1358 = vadd.f32 %v1118, %v449
          %v1359 = vadd.f32 %v1124, %v452
          %v1360 = vadd.f32 %v1130, %v455
          %v1361 = vadd.f32 %v1136, %v458
          %v1362 = vadd.f32 %v1142, %v461
          %v1363 = vadd.f32 %v1148, %v464
          %v1364 = vadd.f32 %v1154, %v467
          %v1365 = vadd.f32 %v1161, %v446
          %v1366 = vadd.f32 %v1167, %v449
          %v1367 = vadd.f32 %v1173, %v452
          %v1368 = vadd.f32 %v1179, %v455
          %v1369 = vadd.f32 %v1185, %v458
          %v1370 = vadd.f32 %v1191, %v461
          %v1371 = vadd.f32 %v1197, %v464
          %v1372 = vadd.f32 %v1203, %v467
          %v1373 = vadd.f32 %v1210, %v446
          %v1374 = vadd.f32 %v1216, %v449
          %v1375 = vadd.f32 %v1222, %v452
          %v1376 = vadd.f32 %v1228, %v455
          %v1377 = vadd.f32 %v1234, %v458
          %v1378 = vadd.f32 %v1240, %v461
          %v1379 = vadd.f32 %v1246, %v464
          %v1380 = vadd.f32 %v1252, %v467
          %v1381 = vmax.f32 %v1253, 0.0
          %v1382 = vmax.f32 %v1254, 0.0
          %v1383 = vmax.f32 %v1255, 0.0
          %v1384 = vmax.f32 %v1256, 0.0
          %v1385 = vmax.f32 %v1257, 0.0
          %v1386 = vmax.f32 %v1258, 0.0
          %v1387 = vmax.f32 %v1259, 0.0
          %v1388 = vmax.f32 %v1260, 0.0
          %v1389 = vmax.f32 %v1261, 0.0
          %v1390 = vmax.f32 %v1262, 0.0
          %v1391 = vmax.f32 %v1263, 0.0
          %v1392 = vmax.f32 %v1264, 0.0
          %v1393 = vmax.f32 %v1265, 0.0
          %v1394 = vmax.f32 %v1266, 0.0
          %v1395 = vmax.f32 %v1267, 0.0
          %v1396 = vmax.f32 %v1268, 0.0
          %v1397 = vmax.f32 %v1269, 0.0
          %v1398 = vmax.f32 %v1270, 0.0
          %v1399 = vmax.f32 %v1271, 0.0
          %v1400 = vmax.f32 %v1272, 0.0
          %v1401 = vmax.f32 %v1273, 0.0
          %v1402 = vmax.f32 %v1274, 0.0
          %v1403 = vmax.f32 %v1275, 0.0
          %v1404 = vmax.f32 %v1276, 0.0
          %v1405 = vmax.f32 %v1277, 0.0
          %v1406 = vmax.f32 %v1278, 0.0
          %v1407 = vmax.f32 %v1279, 0.0
          %v1408 = vmax.f32 %v1280, 0.0
          %v1409 = vmax.f32 %v1281, 0.0
          %v1410 = vmax.f32 %v1282, 0.0
          %v1411 = vmax.f32 %v1283, 0.0
          %v1412 = vmax.f32 %v1284, 0.0
          %v1413 = vmax.f32 %v1285, 0.0
          %v1414 = vmax.f32 %v1286, 0.0
          %v1415 = vmax.f32 %v1287, 0.0
          %v1416 = vmax.f32 %v1288, 0.0
          %v1417 = vmax.f32 %v1289, 0.0
          %v1418 = vmax.f32 %v1290, 0.0
          %v1419 = vmax.f32 %v1291, 0.0
          %v1420 = vmax.f32 %v1292, 0.0
          %v1421 = vmax.f32 %v1293, 0.0
          %v1422 = vmax.f32 %v1294, 0.0
          %v1423 = vmax.f32 %v1295, 0.0
          %v1424 = vmax.f32 %v1296, 0.0
          %v1425 = vmax.f32 %v1297, 0.0
          %v1426 = vmax.f32 %v1298, 0.0
          %v1427 = vmax.f32 %v1299, 0.0
          %v1428 = vmax.f32 %v1300, 0.0
          %v1429 = vmax.f32 %v1301, 0.0
          %v1430 = vmax.f32 %v1302, 0.0
          %v1431 = vmax.f32 %v1303, 0.0
          %v1432 = vmax.f32 %v1304, 0.0
          %v1433 = vmax.f32 %v1305, 0.0
          %v1434 = vmax.f32 %v1306, 0.0
          %v1435 = vmax.f32 %v1307, 0.0
          %v1436 = vmax.f32 %v1308, 0.0
          %v1437 = vmax.f32 %v1309, 0.0
          %v1438 = vmax.f32 %v1310, 0.0
          %v1439 = vmax.f32 %v1311, 0.0
          %v1440 = vmax.f32 %v1312, 0.0
          %v1441 = vmax.f32 %v1313, 0.0
          %v1442 = vmax.f32 %v1314, 0.0
          %v1443 = vmax.f32 %v1315, 0.0
          %v1444 = vmax.f32 %v1316, 0.0
          %v1445 = vmax.f32 %v1317, 0.0
          %v1446 = vmax.f32 %v1318, 0.0
          %v1447 = vmax.f32 %v1319, 0.0
          %v1448 = vmax.f32 %v1320, 0.0
          %v1449 = vmax.f32 %v1321, 0.0
          %v1450 = vmax.f32 %v1322, 0.0
          %v1451 = vmax.f32 %v1323, 0.0
          %v1452 = vmax.f32 %v1324, 0.0
          %v1453 = vmax.f32 %v1325, 0.0
          %v1454 = vmax.f32 %v1326, 0.0
          %v1455 = vmax.f32 %v1327, 0.0
          %v1456 = vmax.f32 %v1328, 0.0
          %v1457 = vmax.f32 %v1329, 0.0
          %v1458 = vmax.f32 %v1330, 0.0
          %v1459 = vmax.f32 %v1331, 0.0
          %v1460 = vmax.f32 %v1332, 0.0
          %v1461 = vmax.f32 %v1333, 0.0
          %v1462 = vmax.f32 %v1334, 0.0
          %v1463 = vmax.f32 %v1335, 0.0
          %v1464 = vmax.f32 %v1336, 0.0
          %v1465 = vmax.f32 %v1337, 0.0
          %v1466 = vmax.f32 %v1338, 0.0
          %v1467 = vmax.f32 %v1339, 0.0
          %v1468 = vmax.f32 %v1340, 0.0
          %v1469 = vmax.f32 %v1341, 0.0
          %v1470 = vmax.f32 %v1342, 0.0
          %v1471 = vmax.f32 %v1343, 0.0
          %v1472 = vmax.f32 %v1344, 0.0
          %v1473 = vmax.f32 %v1345, 0.0
          %v1474 = vmax.f32 %v1346, 0.0
          %v1475 = vmax.f32 %v1347, 0.0
          %v1476 = vmax.f32 %v1348, 0.0
          %v1477 = vmax.f32 %v1349, 0.0
          %v1478 = vmax.f32 %v1350, 0.0
          %v1479 = vmax.f32 %v1351, 0.0
          %v1480 = vmax.f32 %v1352, 0.0
          %v1481 = vmax.f32 %v1353, 0.0
          %v1482 = vmax.f32 %v1354, 0.0
          %v1483 = vmax.f32 %v1355, 0.0
          %v1484 = vmax.f32 %v1356, 0.0
          %v1485 = vmax.f32 %v1357, 0.0
          %v1486 = vmax.f32 %v1358, 0.0
          %v1487 = vmax.f32 %v1359, 0.0
          %v1488 = vmax.f32 %v1360, 0.0
          %v1489 = vmax.f32 %v1361, 0.0
          %v1490 = vmax.f32 %v1362, 0.0
          %v1491 = vmax.f32 %v1363, 0.0
          %v1492 = vmax.f32 %v1364, 0.0
          %v1493 = vmax.f32 %v1365, 0.0
          %v1494 = vmax.f32 %v1366, 0.0
          %v1495 = vmax.f32 %v1367, 0.0
          %v1496 = vmax.f32 %v1368, 0.0
          %v1497 = vmax.f32 %v1369, 0.0
          %v1498 = vmax.f32 %v1370, 0.0
          %v1499 = vmax.f32 %v1371, 0.0
          %v1500 = vmax.f32 %v1372, 0.0
          %v1501 = vmax.f32 %v1373, 0.0
          %v1502 = vmax.f32 %v1374, 0.0
          %v1503 = vmax.f32 %v1375, 0.0
          %v1504 = vmax.f32 %v1376, 0.0
          %v1505 = vmax.f32 %v1377, 0.0
          %v1506 = vmax.f32 %v1378, 0.0
          %v1507 = vmax.f32 %v1379, 0.0
          %v1508 = vmax.f32 %v1380, 0.0
          %vm1509 = vcmask 195584
          %v1510 = vsel %vm1509, %v1381, 0.0
          %v1511 = vsel %vm1509, %v1382, 0.0
          %v1512 = vadd.f32 %v1510, %v1511
          %v1513 = vsel %vm1509, %v1383, 0.0
          %v1514 = vadd.f32 %v1512, %v1513
          %v1515 = vsel %vm1509, %v1384, 0.0
          %v1516 = vadd.f32 %v1514, %v1515
          %v1517 = vsel %vm1509, %v1385, 0.0
          %v1518 = vadd.f32 %v1516, %v1517
          %v1519 = vsel %vm1509, %v1386, 0.0
          %v1520 = vadd.f32 %v1518, %v1519
          %v1521 = vsel %vm1509, %v1387, 0.0
          %v1522 = vadd.f32 %v1520, %v1521
          %v1523 = vsel %vm1509, %v1388, 0.0
          %v1524 = vadd.f32 %v1522, %v1523
          %v1525 = vrot.slane %v1524, 4
          %v1526 = vadd.f32 %v1524, %v1525
          %v1527 = vrot.slane %v1526, 2
          %v1528 = vadd.f32 %v1526, %v1527
          %v1529 = vrot.slane %v1528, 1
          %v1530 = vadd.f32 %v1528, %v1529
          %v1531 = vsel %vm1509, %v1389, 0.0
          %v1532 = vsel %vm1509, %v1390, 0.0
          %v1533 = vadd.f32 %v1531, %v1532
          %v1534 = vsel %vm1509, %v1391, 0.0
          %v1535 = vadd.f32 %v1533, %v1534
          %v1536 = vsel %vm1509, %v1392, 0.0
          %v1537 = vadd.f32 %v1535, %v1536
          %v1538 = vsel %vm1509, %v1393, 0.0
          %v1539 = vadd.f32 %v1537, %v1538
          %v1540 = vsel %vm1509, %v1394, 0.0
          %v1541 = vadd.f32 %v1539, %v1540
          %v1542 = vsel %vm1509, %v1395, 0.0
          %v1543 = vadd.f32 %v1541, %v1542
          %v1544 = vsel %vm1509, %v1396, 0.0
          %v1545 = vadd.f32 %v1543, %v1544
          %v1546 = vrot.slane %v1545, 4
          %v1547 = vadd.f32 %v1545, %v1546
          %v1548 = vrot.slane %v1547, 2
          %v1549 = vadd.f32 %v1547, %v1548
          %v1550 = vrot.slane %v1549, 1
          %v1551 = vadd.f32 %v1549, %v1550
          %v1552 = vsel %vm1509, %v1397, 0.0
          %v1553 = vsel %vm1509, %v1398, 0.0
          %v1554 = vadd.f32 %v1552, %v1553
          %v1555 = vsel %vm1509, %v1399, 0.0
          %v1556 = vadd.f32 %v1554, %v1555
          %v1557 = vsel %vm1509, %v1400, 0.0
          %v1558 = vadd.f32 %v1556, %v1557
          %v1559 = vsel %vm1509, %v1401, 0.0
          %v1560 = vadd.f32 %v1558, %v1559
          %v1561 = vsel %vm1509, %v1402, 0.0
          %v1562 = vadd.f32 %v1560, %v1561
          %v1563 = vsel %vm1509, %v1403, 0.0
          %v1564 = vadd.f32 %v1562, %v1563
          %v1565 = vsel %vm1509, %v1404, 0.0
          %v1566 = vadd.f32 %v1564, %v1565
          %v1567 = vrot.slane %v1566, 4
          %v1568 = vadd.f32 %v1566, %v1567
          %v1569 = vrot.slane %v1568, 2
          %v1570 = vadd.f32 %v1568, %v1569
          %v1571 = vrot.slane %v1570, 1
          %v1572 = vadd.f32 %v1570, %v1571
          %v1573 = vsel %vm1509, %v1405, 0.0
          %v1574 = vsel %vm1509, %v1406, 0.0
          %v1575 = vadd.f32 %v1573, %v1574
          %v1576 = vsel %vm1509, %v1407, 0.0
          %v1577 = vadd.f32 %v1575, %v1576
          %v1578 = vsel %vm1509, %v1408, 0.0
          %v1579 = vadd.f32 %v1577, %v1578
          %v1580 = vsel %vm1509, %v1409, 0.0
          %v1581 = vadd.f32 %v1579, %v1580
          %v1582 = vsel %vm1509, %v1410, 0.0
          %v1583 = vadd.f32 %v1581, %v1582
          %v1584 = vsel %vm1509, %v1411, 0.0
          %v1585 = vadd.f32 %v1583, %v1584
          %v1586 = vsel %vm1509, %v1412, 0.0
          %v1587 = vadd.f32 %v1585, %v1586
          %v1588 = vrot.slane %v1587, 4
          %v1589 = vadd.f32 %v1587, %v1588
          %v1590 = vrot.slane %v1589, 2
          %v1591 = vadd.f32 %v1589, %v1590
          %v1592 = vrot.slane %v1591, 1
          %v1593 = vadd.f32 %v1591, %v1592
          %v1594 = vsel %vm1509, %v1413, 0.0
          %v1595 = vsel %vm1509, %v1414, 0.0
          %v1596 = vadd.f32 %v1594, %v1595
          %v1597 = vsel %vm1509, %v1415, 0.0
          %v1598 = vadd.f32 %v1596, %v1597
          %v1599 = vsel %vm1509, %v1416, 0.0
          %v1600 = vadd.f32 %v1598, %v1599
          %v1601 = vsel %vm1509, %v1417, 0.0
          %v1602 = vadd.f32 %v1600, %v1601
          %v1603 = vsel %vm1509, %v1418, 0.0
          %v1604 = vadd.f32 %v1602, %v1603
          %v1605 = vsel %vm1509, %v1419, 0.0
          %v1606 = vadd.f32 %v1604, %v1605
          %v1607 = vsel %vm1509, %v1420, 0.0
          %v1608 = vadd.f32 %v1606, %v1607
          %v1609 = vrot.slane %v1608, 4
          %v1610 = vadd.f32 %v1608, %v1609
          %v1611 = vrot.slane %v1610, 2
          %v1612 = vadd.f32 %v1610, %v1611
          %v1613 = vrot.slane %v1612, 1
          %v1614 = vadd.f32 %v1612, %v1613
          %v1615 = vsel %vm1509, %v1421, 0.0
          %v1616 = vsel %vm1509, %v1422, 0.0
          %v1617 = vadd.f32 %v1615, %v1616
          %v1618 = vsel %vm1509, %v1423, 0.0
          %v1619 = vadd.f32 %v1617, %v1618
          %v1620 = vsel %vm1509, %v1424, 0.0
          %v1621 = vadd.f32 %v1619, %v1620
          %v1622 = vsel %vm1509, %v1425, 0.0
          %v1623 = vadd.f32 %v1621, %v1622
          %v1624 = vsel %vm1509, %v1426, 0.0
          %v1625 = vadd.f32 %v1623, %v1624
          %v1626 = vsel %vm1509, %v1427, 0.0
          %v1627 = vadd.f32 %v1625, %v1626
          %v1628 = vsel %vm1509, %v1428, 0.0
          %v1629 = vadd.f32 %v1627, %v1628
          %v1630 = vrot.slane %v1629, 4
          %v1631 = vadd.f32 %v1629, %v1630
          %v1632 = vrot.slane %v1631, 2
          %v1633 = vadd.f32 %v1631, %v1632
          %v1634 = vrot.slane %v1633, 1
          %v1635 = vadd.f32 %v1633, %v1634
          %v1636 = vsel %vm1509, %v1429, 0.0
          %v1637 = vsel %vm1509, %v1430, 0.0
          %v1638 = vadd.f32 %v1636, %v1637
          %v1639 = vsel %vm1509, %v1431, 0.0
          %v1640 = vadd.f32 %v1638, %v1639
          %v1641 = vsel %vm1509, %v1432, 0.0
          %v1642 = vadd.f32 %v1640, %v1641
          %v1643 = vsel %vm1509, %v1433, 0.0
          %v1644 = vadd.f32 %v1642, %v1643
          %v1645 = vsel %vm1509, %v1434, 0.0
          %v1646 = vadd.f32 %v1644, %v1645
          %v1647 = vsel %vm1509, %v1435, 0.0
          %v1648 = vadd.f32 %v1646, %v1647
          %v1649 = vsel %vm1509, %v1436, 0.0
          %v1650 = vadd.f32 %v1648, %v1649
          %v1651 = vrot.slane %v1650, 4
          %v1652 = vadd.f32 %v1650, %v1651
          %v1653 = vrot.slane %v1652, 2
          %v1654 = vadd.f32 %v1652, %v1653
          %v1655 = vrot.slane %v1654, 1
          %v1656 = vadd.f32 %v1654, %v1655
          %v1657 = vsel %vm1509, %v1437, 0.0
          %v1658 = vsel %vm1509, %v1438, 0.0
          %v1659 = vadd.f32 %v1657, %v1658
          %v1660 = vsel %vm1509, %v1439, 0.0
          %v1661 = vadd.f32 %v1659, %v1660
          %v1662 = vsel %vm1509, %v1440, 0.0
          %v1663 = vadd.f32 %v1661, %v1662
          %v1664 = vsel %vm1509, %v1441, 0.0
          %v1665 = vadd.f32 %v1663, %v1664
          %v1666 = vsel %vm1509, %v1442, 0.0
          %v1667 = vadd.f32 %v1665, %v1666
          %v1668 = vsel %vm1509, %v1443, 0.0
          %v1669 = vadd.f32 %v1667, %v1668
          %v1670 = vsel %vm1509, %v1444, 0.0
          %v1671 = vadd.f32 %v1669, %v1670
          %v1672 = vrot.slane %v1671, 4
          %v1673 = vadd.f32 %v1671, %v1672
          %v1674 = vrot.slane %v1673, 2
          %v1675 = vadd.f32 %v1673, %v1674
          %v1676 = vrot.slane %v1675, 1
          %v1677 = vadd.f32 %v1675, %v1676
          %v1678 = vsel %vm1509, %v1445, 0.0
          %v1679 = vsel %vm1509, %v1446, 0.0
          %v1680 = vadd.f32 %v1678, %v1679
          %v1681 = vsel %vm1509, %v1447, 0.0
          %v1682 = vadd.f32 %v1680, %v1681
          %v1683 = vsel %vm1509, %v1448, 0.0
          %v1684 = vadd.f32 %v1682, %v1683
          %v1685 = vsel %vm1509, %v1449, 0.0
          %v1686 = vadd.f32 %v1684, %v1685
          %v1687 = vsel %vm1509, %v1450, 0.0
          %v1688 = vadd.f32 %v1686, %v1687
          %v1689 = vsel %vm1509, %v1451, 0.0
          %v1690 = vadd.f32 %v1688, %v1689
          %v1691 = vsel %vm1509, %v1452, 0.0
          %v1692 = vadd.f32 %v1690, %v1691
          %v1693 = vrot.slane %v1692, 4
          %v1694 = vadd.f32 %v1692, %v1693
          %v1695 = vrot.slane %v1694, 2
          %v1696 = vadd.f32 %v1694, %v1695
          %v1697 = vrot.slane %v1696, 1
          %v1698 = vadd.f32 %v1696, %v1697
          %v1699 = vsel %vm1509, %v1453, 0.0
          %v1700 = vsel %vm1509, %v1454, 0.0
          %v1701 = vadd.f32 %v1699, %v1700
          %v1702 = vsel %vm1509, %v1455, 0.0
          %v1703 = vadd.f32 %v1701, %v1702
          %v1704 = vsel %vm1509, %v1456, 0.0
          %v1705 = vadd.f32 %v1703, %v1704
          %v1706 = vsel %vm1509, %v1457, 0.0
          %v1707 = vadd.f32 %v1705, %v1706
          %v1708 = vsel %vm1509, %v1458, 0.0
          %v1709 = vadd.f32 %v1707, %v1708
          %v1710 = vsel %vm1509, %v1459, 0.0
          %v1711 = vadd.f32 %v1709, %v1710
          %v1712 = vsel %vm1509, %v1460, 0.0
          %v1713 = vadd.f32 %v1711, %v1712
          %v1714 = vrot.slane %v1713, 4
          %v1715 = vadd.f32 %v1713, %v1714
          %v1716 = vrot.slane %v1715, 2
          %v1717 = vadd.f32 %v1715, %v1716
          %v1718 = vrot.slane %v1717, 1
          %v1719 = vadd.f32 %v1717, %v1718
          %v1720 = vsel %vm1509, %v1461, 0.0
          %v1721 = vsel %vm1509, %v1462, 0.0
          %v1722 = vadd.f32 %v1720, %v1721
          %v1723 = vsel %vm1509, %v1463, 0.0
          %v1724 = vadd.f32 %v1722, %v1723
          %v1725 = vsel %vm1509, %v1464, 0.0
          %v1726 = vadd.f32 %v1724, %v1725
          %v1727 = vsel %vm1509, %v1465, 0.0
          %v1728 = vadd.f32 %v1726, %v1727
          %v1729 = vsel %vm1509, %v1466, 0.0
          %v1730 = vadd.f32 %v1728, %v1729
          %v1731 = vsel %vm1509, %v1467, 0.0
          %v1732 = vadd.f32 %v1730, %v1731
          %v1733 = vsel %vm1509, %v1468, 0.0
          %v1734 = vadd.f32 %v1732, %v1733
          %v1735 = vrot.slane %v1734, 4
          %v1736 = vadd.f32 %v1734, %v1735
          %v1737 = vrot.slane %v1736, 2
          %v1738 = vadd.f32 %v1736, %v1737
          %v1739 = vrot.slane %v1738, 1
          %v1740 = vadd.f32 %v1738, %v1739
          %v1741 = vsel %vm1509, %v1469, 0.0
          %v1742 = vsel %vm1509, %v1470, 0.0
          %v1743 = vadd.f32 %v1741, %v1742
          %v1744 = vsel %vm1509, %v1471, 0.0
          %v1745 = vadd.f32 %v1743, %v1744
          %v1746 = vsel %vm1509, %v1472, 0.0
          %v1747 = vadd.f32 %v1745, %v1746
          %v1748 = vsel %vm1509, %v1473, 0.0
          %v1749 = vadd.f32 %v1747, %v1748
          %v1750 = vsel %vm1509, %v1474, 0.0
          %v1751 = vadd.f32 %v1749, %v1750
          %v1752 = vsel %vm1509, %v1475, 0.0
          %v1753 = vadd.f32 %v1751, %v1752
          %v1754 = vsel %vm1509, %v1476, 0.0
          %v1755 = vadd.f32 %v1753, %v1754
          %v1756 = vrot.slane %v1755, 4
          %v1757 = vadd.f32 %v1755, %v1756
          %v1758 = vrot.slane %v1757, 2
          %v1759 = vadd.f32 %v1757, %v1758
          %v1760 = vrot.slane %v1759, 1
          %v1761 = vadd.f32 %v1759, %v1760
          %v1762 = vsel %vm1509, %v1477, 0.0
          %v1763 = vsel %vm1509, %v1478, 0.0
          %v1764 = vadd.f32 %v1762, %v1763
          %v1765 = vsel %vm1509, %v1479, 0.0
          %v1766 = vadd.f32 %v1764, %v1765
          %v1767 = vsel %vm1509, %v1480, 0.0
          %v1768 = vadd.f32 %v1766, %v1767
          %v1769 = vsel %vm1509, %v1481, 0.0
          %v1770 = vadd.f32 %v1768, %v1769
          %v1771 = vsel %vm1509, %v1482, 0.0
          %v1772 = vadd.f32 %v1770, %v1771
          %v1773 = vsel %vm1509, %v1483, 0.0
          %v1774 = vadd.f32 %v1772, %v1773
          %v1775 = vsel %vm1509, %v1484, 0.0
          %v1776 = vadd.f32 %v1774, %v1775
          %v1777 = vrot.slane %v1776, 4
          %v1778 = vadd.f32 %v1776, %v1777
          %v1779 = vrot.slane %v1778, 2
          %v1780 = vadd.f32 %v1778, %v1779
          %v1781 = vrot.slane %v1780, 1
          %v1782 = vadd.f32 %v1780, %v1781
          %v1783 = vsel %vm1509, %v1485, 0.0
          %v1784 = vsel %vm1509, %v1486, 0.0
          %v1785 = vadd.f32 %v1783, %v1784
          %v1786 = vsel %vm1509, %v1487, 0.0
          %v1787 = vadd.f32 %v1785, %v1786
          %v1788 = vsel %vm1509, %v1488, 0.0
          %v1789 = vadd.f32 %v1787, %v1788
          %v1790 = vsel %vm1509, %v1489, 0.0
          %v1791 = vadd.f32 %v1789, %v1790
          %v1792 = vsel %vm1509, %v1490, 0.0
          %v1793 = vadd.f32 %v1791, %v1792
          %v1794 = vsel %vm1509, %v1491, 0.0
          %v1795 = vadd.f32 %v1793, %v1794
          %v1796 = vsel %vm1509, %v1492, 0.0
          %v1797 = vadd.f32 %v1795, %v1796
          %v1798 = vrot.slane %v1797, 4
          %v1799 = vadd.f32 %v1797, %v1798
          %v1800 = vrot.slane %v1799, 2
          %v1801 = vadd.f32 %v1799, %v1800
          %v1802 = vrot.slane %v1801, 1
          %v1803 = vadd.f32 %v1801, %v1802
          %v1804 = vsel %vm1509, %v1493, 0.0
          %v1805 = vsel %vm1509, %v1494, 0.0
          %v1806 = vadd.f32 %v1804, %v1805
          %v1807 = vsel %vm1509, %v1495, 0.0
          %v1808 = vadd.f32 %v1806, %v1807
          %v1809 = vsel %vm1509, %v1496, 0.0
          %v1810 = vadd.f32 %v1808, %v1809
          %v1811 = vsel %vm1509, %v1497, 0.0
          %v1812 = vadd.f32 %v1810, %v1811
          %v1813 = vsel %vm1509, %v1498, 0.0
          %v1814 = vadd.f32 %v1812, %v1813
          %v1815 = vsel %vm1509, %v1499, 0.0
          %v1816 = vadd.f32 %v1814, %v1815
          %v1817 = vsel %vm1509, %v1500, 0.0
          %v1818 = vadd.f32 %v1816, %v1817
          %v1819 = vrot.slane %v1818, 4
          %v1820 = vadd.f32 %v1818, %v1819
          %v1821 = vrot.slane %v1820, 2
          %v1822 = vadd.f32 %v1820, %v1821
          %v1823 = vrot.slane %v1822, 1
          %v1824 = vadd.f32 %v1822, %v1823
          %v1825 = vsel %vm1509, %v1501, 0.0
          %v1826 = vsel %vm1509, %v1502, 0.0
          %v1827 = vadd.f32 %v1825, %v1826
          %v1828 = vsel %vm1509, %v1503, 0.0
          %v1829 = vadd.f32 %v1827, %v1828
          %v1830 = vsel %vm1509, %v1504, 0.0
          %v1831 = vadd.f32 %v1829, %v1830
          %v1832 = vsel %vm1509, %v1505, 0.0
          %v1833 = vadd.f32 %v1831, %v1832
          %v1834 = vsel %vm1509, %v1506, 0.0
          %v1835 = vadd.f32 %v1833, %v1834
          %v1836 = vsel %vm1509, %v1507, 0.0
          %v1837 = vadd.f32 %v1835, %v1836
          %v1838 = vsel %vm1509, %v1508, 0.0
          %v1839 = vadd.f32 %v1837, %v1838
          %v1840 = vrot.slane %v1839, 4
          %v1841 = vadd.f32 %v1839, %v1840
          %v1842 = vrot.slane %v1841, 2
          %v1843 = vadd.f32 %v1841, %v1842
          %v1844 = vrot.slane %v1843, 1
          %v1845 = vadd.f32 %v1843, %v1844
          %v1846 = vstv %s352
          %v1847 = vmul.f32 %v1846, %v1530
          %v1848 = vmul.f32 %v1846, %v1551
          %v1849 = vmul.f32 %v1846, %v1572
          %v1850 = vmul.f32 %v1846, %v1593
          %v1851 = vmul.f32 %v1846, %v1614
          %v1852 = vmul.f32 %v1846, %v1635
          %v1853 = vmul.f32 %v1846, %v1656
          %v1854 = vmul.f32 %v1846, %v1677
          %v1855 = vmul.f32 %v1846, %v1698
          %v1856 = vmul.f32 %v1846, %v1719
          %v1857 = vmul.f32 %v1846, %v1740
          %v1858 = vmul.f32 %v1846, %v1761
          %v1859 = vmul.f32 %v1846, %v1782
          %v1860 = vmul.f32 %v1846, %v1803
          %v1861 = vmul.f32 %v1846, %v1824
          %v1862 = vmul.f32 %v1846, %v1845
          %v1863 = vadd.f32 %v335, %v1847
          %v1864 = vadd.f32 %v336, %v1848
          %v1865 = vadd.f32 %v337, %v1849
          %v1866 = vadd.f32 %v338, %v1850
          %v1867 = vadd.f32 %v339, %v1851
          %v1868 = vadd.f32 %v340, %v1852
          %v1869 = vadd.f32 %v341, %v1853
          %v1870 = vadd.f32 %v342, %v1854
          %v1871 = vadd.f32 %v343, %v1855
          %v1872 = vadd.f32 %v344, %v1856
          %v1873 = vadd.f32 %v345, %v1857
          %v1874 = vadd.f32 %v346, %v1858
          %v1875 = vadd.f32 %v347, %v1859
          %v1876 = vadd.f32 %v348, %v1860
          %v1877 = vadd.f32 %v349, %v1861
          %v1878 = vadd.f32 %v350, %v1862
        $region49: #{tpu_custom_call.1} parent=43 // loop_footer
          %s334 = sadd.s32 1, %s330
        $region50: #{tpu_custom_call.1} parent=43 // loop_footer_branch
          %329 = sbr.rel target = $region46
        $region51: #{tpu_custom_call.1} parent=43 // loop_exit
          _
        %v1879 = vld [vmem:[#allocation2] sm:$0x1]
        %s1880 = vtos %v1879
        %v1881 = vstv %s1880
        %v1882 = vadd.f32 %v335, %v1881
        %v1883 = vadd.f32 %v336, %v1881
        %v1884 = vadd.f32 %v337, %v1881
        %v1885 = vadd.f32 %v338, %v1881
        %v1886 = vadd.f32 %v339, %v1881
        %v1887 = vadd.f32 %v340, %v1881
        %v1888 = vadd.f32 %v341, %v1881
        %v1889 = vadd.f32 %v342, %v1881
        %v1890 = vadd.f32 %v343, %v1881
        %v1891 = vadd.f32 %v344, %v1881
        %v1892 = vadd.f32 %v345, %v1881
        %v1893 = vadd.f32 %v346, %v1881
        %v1894 = vadd.f32 %v347, %v1881
        %v1895 = vadd.f32 %v348, %v1881
        %v1896 = vadd.f32 %v349, %v1881
        %v1897 = vadd.f32 %v350, %v1881
        %vm1914 = vcmask 1041409
        %v1915 = vsel %vm1914, %v1883, %v1882
        %vm1916 = vcmask 1042434
        %v1917 = vsel %vm1916, %v1884, %v1915
        %vm1918 = vcmask 1043459
        %v1919 = vsel %vm1918, %v1885, %v1917
        %vm1920 = vcmask 1044484
        %v1921 = vsel %vm1920, %v1886, %v1919
        %vm1922 = vcmask 1045509
        %v1923 = vsel %vm1922, %v1887, %v1921
        %vm1924 = vcmask 1046534
        %v1925 = vsel %vm1924, %v1888, %v1923
        %vm1926 = vcmask 1047559
        %v1927 = vsel %vm1926, %v1889, %v1925
        %v1928 = vsel %vm1914, %v1891, %v1890
        %v1929 = vsel %vm1916, %v1892, %v1928
        %v1930 = vsel %vm1918, %v1893, %v1929
        %v1931 = vsel %vm1920, %v1894, %v1930
        %v1932 = vsel %vm1922, %v1895, %v1931
        %v1933 = vsel %vm1924, %v1896, %v1932
        %v1934 = vsel %vm1926, %v1897, %v1933
        %vm1937 = vcmask 195584
        %1938 = vst.msk [vmem:[%s303] sm:$0xff] %vm1937, %v1927
        %1939 = vst.msk [vmem:[%s303 + $0x8] sm:$0xff] %vm1937, %v1934
        %s1940 = sand.u32 %s193, 1
        %s1941 = scalar_lea.sflag [#allocation4], %s1940
        %s1942 = sand.u32 %s193, 1
        %s1943 = smul.addr %s1942, 16
        %s1944 = scalar_lea.vmem [#allocation3], %s1943
        // Predicated region
        $region52: #{tpu_custom_call.1} parent=43 // pred_check
          %p1945 = pneg %p203
        $region53: #{tpu_custom_call.1} parent=43 // pred_check_branch
          %1947 = sbr.rel (%p1945) target = $region55
        $region54: #{tpu_custom_call.1} parent=43 // pred_region
          %s1948 = smul.u32 2, %s28
          %1950 = vsyncadd %s1941, 0
          %s1951 = sadd.s32 %s29, %s1948
          %s1952 = smul.addr %s27, 2
          %s1953 = sadd.s32 %s1951, %s1952
          %s1954 = smul.addr %s1953, 8
          %s1955 = scalar_lea.hbm %s6, %s1954
          %s1956 = sshll.u32 %s1944, 4
          %s1957 = int_to_ptr.vmem [resolvable:$true] %s1956
          %s1958 = sshll.u32 %s1955, 4
          %s1959 = int_to_ptr.hbm [resolvable:$true] %s1958
          %1964 = dma.vmem_to_hbm [thread:$0]  %s1957, 256, %s1959, %s1941, 128, 128, 8
        $region55: #{tpu_custom_call.1} parent=43 // pred_fallthru
          _
      $region44: #{tpu_custom_call.1} parent=5 // pred_fallthru
        _
      %p1965 = scmp.le.s32.totalorder 2, %s17
      // Predicated region
      $region56: #{tpu_custom_call.1} parent=5 // pred_check
        %p1966 = pneg %p1965
      $region57: #{tpu_custom_call.1} parent=5 // pred_check_branch
        %1968 = sbr.rel (%p1966) target = $region59
      $region58: #{tpu_custom_call.1} parent=5 // pred_region
        %s1969 = ssub.s32 %s17, 2
        // Predicated region
        $region60: #{tpu_custom_call.1} parent=58 // pred_check
          %p1970 = pneg %p209
        $region61: #{tpu_custom_call.1} parent=58 // pred_check_branch
          %1972 = sbr.rel (%p1970) target = $region63
        $region62: #{tpu_custom_call.1} parent=58 // pred_region
          %s1973 = sand.u32 %s194, 1
          %s1974 = scalar_lea.sflag [#allocation4], %s1973
          %s1975 = sand.u32 %s194, 1
          %s1976 = smul.addr %s1975, 16
          %s1977 = scalar_lea.vmem [#allocation3], %s1976
          %1979 = dma.done %s1974, 256
        $region63: #{tpu_custom_call.1} parent=58 // pred_fallthru
          _
      $region59: #{tpu_custom_call.1} parent=5 // pred_fallthru
        _
    $region6: #{tpu_custom_call.1} parent=1 // loop_footer
      %s21 = sadd.s32 1, %s17
    $region7: #{tpu_custom_call.1} parent=1 // loop_footer_branch
      %16 = sbr.rel target = $region3
    $region8: #{tpu_custom_call.1} parent=1 // loop_exit
      _
    %1980 = vsyncpa [#allocation4], 1
    %s1981 = scalar_lea.sflag [#allocation4], 1
    %1982 = vsyncpa %s1981, 1

// kernel: tpu_custom_call.1
$region0: #{tpu_custom_call.1}
  #allocation0 [shape = 'u32[]', space=smem, size = 0x4, offset = 0x4, fixed_abs, tag = 'smem constant byte address 0x4 - core index']
  #allocation1 [shape = 'u32[72,128]{1,0:T(1,128)}', space=vmem, size = 0x9000, scoped, tag = 'internal scratch']
  #allocation2 [shape = 'f32[1,1]{1,0:T(1,128)S(1)}', space=vmem, size = 0x200, scoped, tag = 'scoped memory for tpu_custom_call.1']
  %s0 = inlined_call_operand.vmem [shape: f32[2,16,32], index: 0, kind: input, shape index: {}]
  %s1 = inlined_call_operand.vmem [shape: f32[2,32,24], index: 1, kind: input, shape index: {}]
  %s2 = inlined_call_operand.vmem [shape: f32[5,32,64], index: 2, kind: input, shape index: {}]
  %s3 = inlined_call_operand.vmem [shape: f32[5,64,32], index: 3, kind: input, shape index: {}]
  %s4 = inlined_call_operand.vmem [shape: f32[5,1,64], index: 4, kind: input, shape index: {}]
  %s5 = inlined_call_operand.<no memory space> [shape: f32[1,1], index: 5, kind: input, shape index: {}]
  %s6 = inlined_call_operand.hbm [shape: f32[2,16,24], index: 6, kind: output, shape index: {}]
  %s7 = sld [smem:[#allocation0]]
  $region64: #{tpu_custom_call.1} parent=0
    _
  %s9 = ssub.s32 1, %s7
  %s10 = scalar_select 0, %s9, %s7
  %v11 = vstv %s5
  %12 = vst [vmem:[#allocation2] sm:$0x1] %v11
  $region1: #{tpu_custom_call.1} parent=0
    #allocation3 [shape = 'u8[16384]{0}', space=vmem, size = 0x4000, scoped, tag = 'output window, operand 0']
    #allocation4 [shape = 's32[2]{0}', space=sflag, size = 0x8, scoped, tag = 'scoped memory for tpu_custom_call.1']
    %13 = vsyncpa [#allocation4], 0
    %s14 = scalar_lea.sflag [#allocation4], 1
    %15 = vsyncpa %s14, 0
    loop: start=0, step=1, limit=4
    $region2: #{tpu_custom_call.1} parent=1 // loop_pre_header
      _
    $region3: #{tpu_custom_call.1} parent=1 // loop_header
      %s17 = sphi 0, %s21
      %p18 = scmp.ge.s32.totalorder %s17, 4
      %s24 = sphi 0, %s43
      %s25 = sphi 0, %s39
      %s26 = sphi 0, %s35
      %s27 = sphi 0, %s24
      %s28 = sphi 0, %s25
      %s29 = sphi 0, %s26
      %s30 = sphi 0, %s27
      %s31 = sphi 0, %s28
      %s32 = sphi 0, %s29
      %s48 = sphi 0, %s50
      %s51 = sphi 0, %s48
      %s52 = sphi 0, %s51
      %s68 = sphi 0, %s52
      %s76 = sphi 0, %s78
      %s79 = sphi 0, %s76
      %s80 = sphi 0, %s79
      %s96 = sphi 0, %s80
      %s100 = sphi 0, %s100
      %s102 = sphi 0, %s100
      %s103 = sphi 0, %s102
      %s117 = sphi 0, %s103
      %s121 = sphi 0, %s121
      %s123 = sphi 0, %s121
      %s124 = sphi 0, %s123
      %s138 = sphi 0, %s124
      %s142 = sphi 0, %s142
      %s144 = sphi 0, %s142
      %s145 = sphi 0, %s144
      %s159 = sphi 0, %s145
      %s163 = sphi 0, %s163
      %s165 = sphi 0, %s163
      %s166 = sphi 0, %s165
      %s180 = sphi 0, %s166
      %s190 = sphi 0, %s192
      %s193 = sphi 0, %s190
      %s194 = sphi 0, %s193
      %s210 = sphi 0, %s194
    $region4: #{tpu_custom_call.1} parent=1 // loop_header_branch
      %20 = sbr.rel (%p18) target = $region8
    $region5: #{tpu_custom_call.1} parent=1 // loop_body
      %s22 = ssub.s32 %s17, 1
      %s23 = ssub.s32 %s17, 2
      %s33 = sadd.s32 1, %s26
      %p34 = scmp.ge.s32.totalorder %s33, 1
      %s35 = scalar_select %p34, 0, %s33
      %s36 = sadd.s32 1, %s25
      %s37 = scalar_select %p34, %s36, %s25
      %p38 = scmp.ge.s32.totalorder %s37, 1
      %s39 = scalar_select %p38, 0, %s37
      %s40 = sadd.s32 1, %s24
      %s41 = scalar_select %p38, %s40, %s24
      %p42 = scmp.ge.s32.totalorder %s41, 2
      %s43 = scalar_select %p42, 0, %s41
      %s44 = ssub.s32 %s24, %s43
      %s45 = ssub.s32 %s25, %s39
      %s46 = sor.u32 %s44, %s45
      %p47 = scmp.eq.s32.totalorder %s46, 0
      %s49 = sadd.s32 %s48, 1
      %s50 = scalar_select %p47, %s48, %s49
      %p53 = pneg %p47
      %p54 = scmp.eq.s32.totalorder %s17, 1
      %p55 = por %p53, %p54
      %p56 = scmp.ne.s32.totalorder %s48, %s51
      %p57 = scmp.eq.s32.totalorder %s17, 0
      %p58 = por %p56, %p57
      %p59 = scmp.ne.s32.totalorder %s48, %s51
      %p60 = scmp.eq.s32.totalorder %s22, 1
      %p61 = por %p59, %p60
      %p62 = scmp.ne.s32.totalorder %s51, %s52
      %p63 = scmp.eq.s32.totalorder %s22, 0
      %p64 = por %p62, %p63
      %p65 = scmp.ne.s32.totalorder %s51, %s52
      %p66 = scmp.eq.s32.totalorder %s23, 1
      %p67 = por %p65, %p66
      %p69 = scmp.ne.s32.totalorder %s52, %s68
      %p70 = scmp.eq.s32.totalorder %s23, 0
      %p71 = por %p69, %p70
      %s72 = ssub.s32 %s24, %s43
      %s73 = ssub.s32 %s26, %s35
      %s74 = sor.u32 %s72, %s73
      %p75 = scmp.eq.s32.totalorder %s74, 0
      %s77 = sadd.s32 %s76, 1
      %s78 = scalar_select %p75, %s76, %s77
      %p81 = pneg %p75
      %p82 = scmp.eq.s32.totalorder %s17, 1
      %p83 = por %p81, %p82
      %p84 = scmp.ne.s32.totalorder %s76, %s79
      %p85 = scmp.eq.s32.totalorder %s17, 0
      %p86 = por %p84, %p85
      %p87 = scmp.ne.s32.totalorder %s76, %s79
      %p88 = scmp.eq.s32.totalorder %s22, 1
      %p89 = por %p87, %p88
      %p90 = scmp.ne.s32.totalorder %s79, %s80
      %p91 = scmp.eq.s32.totalorder %s22, 0
      %p92 = por %p90, %p91
      %p93 = scmp.ne.s32.totalorder %s79, %s80
      %p94 = scmp.eq.s32.totalorder %s23, 1
      %p95 = por %p93, %p94
      %p97 = scmp.ne.s32.totalorder %s80, %s96
      %p98 = scmp.eq.s32.totalorder %s23, 0
      %p99 = por %p97, %p98
      %s101 = sadd.s32 %s100, 1
      %p104 = scmp.eq.s32.totalorder %s17, 1
      %p105 = scmp.ne.s32.totalorder %s100, %s102
      %p106 = scmp.eq.s32.totalorder %s17, 0
      %p107 = por %p105, %p106
      %p108 = scmp.ne.s32.totalorder %s100, %s102
      %p109 = scmp.eq.s32.totalorder %s22, 1
      %p110 = por %p108, %p109
      %p111 = scmp.ne.s32.totalorder %s102, %s103
      %p112 = scmp.eq.s32.totalorder %s22, 0
      %p113 = por %p111, %p112
      %p114 = scmp.ne.s32.totalorder %s102, %s103
      %p115 = scmp.eq.s32.totalorder %s23, 1
      %p116 = por %p114, %p115
      %p118 = scmp.ne.s32.totalorder %s103, %s117
      %p119 = scmp.eq.s32.totalorder %s23, 0
      %p120 = por %p118, %p119
      %s122 = sadd.s32 %s121, 1
      %p125 = scmp.eq.s32.totalorder %s17, 1
      %p126 = scmp.ne.s32.totalorder %s121, %s123
      %p127 = scmp.eq.s32.totalorder %s17, 0
      %p128 = por %p126, %p127
      %p129 = scmp.ne.s32.totalorder %s121, %s123
      %p130 = scmp.eq.s32.totalorder %s22, 1
      %p131 = por %p129, %p130
      %p132 = scmp.ne.s32.totalorder %s123, %s124
      %p133 = scmp.eq.s32.totalorder %s22, 0
      %p134 = por %p132, %p133
      %p135 = scmp.ne.s32.totalorder %s123, %s124
      %p136 = scmp.eq.s32.totalorder %s23, 1
      %p137 = por %p135, %p136
      %p139 = scmp.ne.s32.totalorder %s124, %s138
      %p140 = scmp.eq.s32.totalorder %s23, 0
      %p141 = por %p139, %p140
      %s143 = sadd.s32 %s142, 1
      %p146 = scmp.eq.s32.totalorder %s17, 1
      %p147 = scmp.ne.s32.totalorder %s142, %s144
      %p148 = scmp.eq.s32.totalorder %s17, 0
      %p149 = por %p147, %p148
      %p150 = scmp.ne.s32.totalorder %s142, %s144
      %p151 = scmp.eq.s32.totalorder %s22, 1
      %p152 = por %p150, %p151
      %p153 = scmp.ne.s32.totalorder %s144, %s145
      %p154 = scmp.eq.s32.totalorder %s22, 0
      %p155 = por %p153, %p154
      %p156 = scmp.ne.s32.totalorder %s144, %s145
      %p157 = scmp.eq.s32.totalorder %s23, 1
      %p158 = por %p156, %p157
      %p160 = scmp.ne.s32.totalorder %s145, %s159
      %p161 = scmp.eq.s32.totalorder %s23, 0
      %p162 = por %p160, %p161
      %s164 = sadd.s32 %s163, 1
      %p167 = scmp.eq.s32.totalorder %s17, 1
      %p168 = scmp.ne.s32.totalorder %s163, %s165
      %p169 = scmp.eq.s32.totalorder %s17, 0
      %p170 = por %p168, %p169
      %p171 = scmp.ne.s32.totalorder %s163, %s165
      %p172 = scmp.eq.s32.totalorder %s22, 1
      %p173 = por %p171, %p172
      %p174 = scmp.ne.s32.totalorder %s165, %s166
      %p175 = scmp.eq.s32.totalorder %s22, 0
      %p176 = por %p174, %p175
      %p177 = scmp.ne.s32.totalorder %s165, %s166
      %p178 = scmp.eq.s32.totalorder %s23, 1
      %p179 = por %p177, %p178
      %p181 = scmp.ne.s32.totalorder %s166, %s180
      %p182 = scmp.eq.s32.totalorder %s23, 0
      %p183 = por %p181, %p182
      %s184 = ssub.s32 %s24, %s43
      %s185 = ssub.s32 %s25, %s39
      %s186 = sor.u32 %s184, %s185
      %s187 = ssub.s32 %s26, %s35
      %s188 = sor.u32 %s186, %s187
      %p189 = scmp.eq.s32.totalorder %s188, 0
      %s191 = sadd.s32 %s190, 1
      %s192 = scalar_select %p189, %s190, %s191
      %p195 = pneg %p189
      %p196 = scmp.eq.s32.totalorder %s17, 1
      %p197 = por %p195, %p196
      %p198 = scmp.ne.s32.totalorder %s190, %s193
      %p199 = scmp.eq.s32.totalorder %s17, 0
      %p200 = por %p198, %p199
      %p201 = scmp.ne.s32.totalorder %s190, %s193
      %p202 = scmp.eq.s32.totalorder %s22, 1
      %p203 = por %p201, %p202
      %p204 = scmp.ne.s32.totalorder %s193, %s194
      %p205 = scmp.eq.s32.totalorder %s22, 0
      %p206 = por %p204, %p205
      %p207 = scmp.ne.s32.totalorder %s193, %s194
      %p208 = scmp.eq.s32.totalorder %s23, 1
      %p209 = por %p207, %p208
      %p211 = scmp.ne.s32.totalorder %s194, %s210
      %p212 = scmp.eq.s32.totalorder %s23, 0
      %p213 = por %p211, %p212
      %p214 = scmp.le.s32.totalorder 1, %s17
      %p215 = scmp.lt.s32.totalorder %s17, 3
      %p216 = pnand %p214, %p215
      %p217 = pneg %p216
      // Predicated region
      $region9: #{tpu_custom_call.1} parent=5 // pred_check
        _
      $region10: #{tpu_custom_call.1} parent=5 // pred_check_branch
        %219 = sbr.rel (%p216) target = $region12
      $region11: #{tpu_custom_call.1} parent=5 // pred_region
        %s220 = ssub.s32 %s17, 1
        // Predicated region
        $region13: #{tpu_custom_call.1} parent=11 // pred_check
          %p221 = pneg %p113
        $region14: #{tpu_custom_call.1} parent=11 // pred_check_branch
          %223 = sbr.rel (%p221) target = $region16
        $region15: #{tpu_custom_call.1} parent=11 // pred_region
          _
        $region16: #{tpu_custom_call.1} parent=11 // pred_fallthru
          _
        // Predicated region
        $region17: #{tpu_custom_call.1} parent=11 // pred_check
          %p224 = pneg %p134
        $region18: #{tpu_custom_call.1} parent=11 // pred_check_branch
          %226 = sbr.rel (%p224) target = $region20
        $region19: #{tpu_custom_call.1} parent=11 // pred_region
          _
        $region20: #{tpu_custom_call.1} parent=11 // pred_fallthru
          _
        // Predicated region
        $region21: #{tpu_custom_call.1} parent=11 // pred_check
          %p227 = pneg %p155
        $region22: #{tpu_custom_call.1} parent=11 // pred_check_branch
          %229 = sbr.rel (%p227) target = $region24
        $region23: #{tpu_custom_call.1} parent=11 // pred_region
          _
        $region24: #{tpu_custom_call.1} parent=11 // pred_fallthru
          _
        // Predicated region
        $region25: #{tpu_custom_call.1} parent=11 // pred_check
          %p230 = pneg %p176
        $region26: #{tpu_custom_call.1} parent=11 // pred_check_branch
          %232 = sbr.rel (%p230) target = $region28
        $region27: #{tpu_custom_call.1} parent=11 // pred_region
          _
        $region28: #{tpu_custom_call.1} parent=11 // pred_fallthru
          _
      $region12: #{tpu_custom_call.1} parent=5 // pred_fallthru
        _
      %p233 = scmp.lt.s32.totalorder %s17, 2
      // Predicated region
      $region29: #{tpu_custom_call.1} parent=5 // pred_check
        %p234 = pneg %p233
      $region30: #{tpu_custom_call.1} parent=5 // pred_check_branch
        %236 = sbr.rel (%p234) target = $region32
      $region31: #{tpu_custom_call.1} parent=5 // pred_region
        // Predicated region
        $region33: #{tpu_custom_call.1} parent=31 // pred_check
          %p237 = pneg %p58
        $region34: #{tpu_custom_call.1} parent=31 // pred_check_branch
          %239 = sbr.rel (%p237) target = $region36
        $region35: #{tpu_custom_call.1} parent=31 // pred_region
          %s240 = smul.u32 2, %s25
          %p241 = scmp.lt.s32.totalorder %s24, 1
          %s242 = scalar_select %p241, %s24, 1
          %p243 = scmp.lt.s32.totalorder %s240, 1
          %s244 = scalar_select %p243, %s240, 1
          %s245 = smul.addr %s242, 2
          %s246 = sadd.s32 %s244, %s245
          %s247 = smul.addr %s246, 8
          %s248 = scalar_lea.vmem %s0, %s247
          %s249 = smul.u32 2, %s25
        $region36: #{tpu_custom_call.1} parent=31 // pred_fallthru
          _
        // Predicated region
        $region37: #{tpu_custom_call.1} parent=31 // pred_check
          %p250 = pneg %p86
        $region38: #{tpu_custom_call.1} parent=31 // pred_check_branch
          %252 = sbr.rel (%p250) target = $region40
        $region39: #{tpu_custom_call.1} parent=31 // pred_region
          %p253 = scmp.lt.s32.totalorder %s24, 1
          %s254 = scalar_select %p253, %s24, 1
          %p255 = scmp.lt.s32.totalorder %s26, 0
          %s256 = scalar_select %p255, %s26, 0
          %s257 = smul.addr %s254, 4
          %s258 = sadd.s32 %s256, %s257
          %s259 = smul.addr %s258, 8
          %s260 = scalar_lea.vmem %s1, %s259
        $region40: #{tpu_custom_call.1} parent=31 // pred_fallthru
          _
      $region32: #{tpu_custom_call.1} parent=5 // pred_fallthru
        _
      %p261 = scmp.le.s32.totalorder 1, %s17
      %p262 = scmp.lt.s32.totalorder %s17, 3
      %p263 = pnand %p261, %p262
      %p264 = pneg %p263
      // Predicated region
      $region41: #{tpu_custom_call.1} parent=5 // pred_check
        _
      $region42: #{tpu_custom_call.1} parent=5 // pred_check_branch
        %266 = sbr.rel (%p263) target = $region44
      $region43: #{tpu_custom_call.1} parent=5 // pred_region
        %s267 = ssub.s32 %s17, 1
        %s268 = smul.u32 2, %s28
        %p269 = scmp.lt.s32.totalorder %s27, 1
        %s270 = scalar_select %p269, %s27, 1
        %p271 = scmp.lt.s32.totalorder %s268, 1
        %s272 = scalar_select %p271, %s268, 1
        %s273 = smul.addr %s270, 2
        %s274 = sadd.s32 %s272, %s273
        %s275 = smul.addr %s274, 8
        %s276 = scalar_lea.vmem %s0, %s275
        %p277 = pneg %p64
        %p278 = pneg %p61
        %p279 = scmp.lt.s32.totalorder %s27, 1
        %s280 = scalar_select %p279, %s27, 1
        %p281 = scmp.lt.s32.totalorder %s29, 0
        %s282 = scalar_select %p281, %s29, 0
        %s283 = smul.addr %s280, 4
        %s284 = sadd.s32 %s282, %s283
        %s285 = smul.addr %s284, 8
        %s286 = scalar_lea.vmem %s1, %s285
        %p287 = pneg %p92
        %p288 = pneg %p89
        %p289 = pneg %p113
        %p290 = pneg %p110
        %p291 = pneg %p134
        %p292 = pneg %p131
        %p293 = pneg %p155
        %p294 = pneg %p152
        %p295 = pneg %p176
        %p296 = pneg %p173
        %p297 = pneg %p206
        %p298 = pneg %p203
        %s299 = sand.u32 %s193, 1
        %s300 = scalar_lea.sflag [#allocation4], %s299
        %s301 = sand.u32 %s193, 1
        %s302 = smul.addr %s301, 16
        %s303 = scalar_lea.vmem [#allocation3], %s302
        %s304 = smul.u32 2, %s28
        %p305 = scmp.lt.s32.totalorder %s27, 1
        %s306 = scalar_select %p305, %s27, 1
        %p307 = scmp.lt.s32.totalorder %s304, 1
        %s308 = scalar_select %p307, %s304, 1
        %s309 = smul.addr %s306, 2
        %s310 = sadd.s32 %s308, %s309
        %s311 = smul.addr %s310, 8
        %s312 = scalar_lea.vmem %s0, %s311
        %s313 = smul.u32 2, %s28
        %p314 = scmp.lt.s32.totalorder %s27, 1
        %s315 = scalar_select %p314, %s27, 1
        %p316 = scmp.lt.s32.totalorder %s29, 0
        %s317 = scalar_select %p316, %s29, 0
        %s318 = smul.addr %s315, 4
        %s319 = sadd.s32 %s317, %s318
        %s320 = smul.addr %s319, 8
        %s321 = scalar_lea.vmem %s1, %s320
        %s322 = smul.u32 2, %s28
        %v323 = vld [vmem:[%s312] sm:$0xff]
        %v324 = vld [vmem:[%s312 + $0x8] sm:$0xff]
        %v325 = vld [vmem:[%s321] sm:$0xff]
        %v326 = vld [vmem:[%s321 + $0x8] sm:$0xff]
        %v327 = vld [vmem:[%s321 + $0x10] sm:$0xff]
        %v328 = vld [vmem:[%s321 + $0x18] sm:$0xff]
        loop: start=0, step=1, limit=5
        $region45: #{tpu_custom_call.1} parent=43 // loop_pre_header
          _
        $region46: #{tpu_custom_call.1} parent=43 // loop_header
          %s330 = sphi 0, %s334
          %p331 = scmp.ge.s32.totalorder %s330, 5
          %v335 = vphi 0.0, %v871
          %v336 = vphi 0.0, %v872
          %v337 = vphi 0.0, %v873
          %v338 = vphi 0.0, %v874
          %v339 = vphi 0.0, %v875
          %v340 = vphi 0.0, %v876
          %v341 = vphi 0.0, %v877
          %v342 = vphi 0.0, %v878
          %v343 = vphi 0.0, %v879
          %v344 = vphi 0.0, %v880
          %v345 = vphi 0.0, %v881
          %v346 = vphi 0.0, %v882
          %v347 = vphi 0.0, %v883
          %v348 = vphi 0.0, %v884
          %v349 = vphi 0.0, %v885
          %v350 = vphi 0.0, %v886
          %v351 = vphi 0.0, %v887
          %v352 = vphi 0.0, %v888
          %v353 = vphi 0.0, %v889
          %v354 = vphi 0.0, %v890
          %v355 = vphi 0.0, %v891
          %v356 = vphi 0.0, %v892
          %v357 = vphi 0.0, %v893
          %v358 = vphi 0.0, %v894
          %v359 = vphi 0.0, %v895
          %v360 = vphi 0.0, %v896
          %v361 = vphi 0.0, %v897
          %v362 = vphi 0.0, %v898
          %v363 = vphi 0.0, %v899
          %v364 = vphi 0.0, %v900
          %v365 = vphi 0.0, %v901
          %v366 = vphi 0.0, %v902
          %v367 = vphi 0.0, %v903
          %v368 = vphi 0.0, %v904
          %v369 = vphi 0.0, %v905
          %v370 = vphi 0.0, %v906
          %v371 = vphi 0.0, %v907
          %v372 = vphi 0.0, %v908
          %v373 = vphi 0.0, %v909
          %v374 = vphi 0.0, %v910
          %v375 = vphi 0.0, %v911
          %v376 = vphi 0.0, %v912
          %v377 = vphi 0.0, %v913
          %v378 = vphi 0.0, %v914
          %v379 = vphi 0.0, %v915
          %v380 = vphi 0.0, %v916
          %v381 = vphi 0.0, %v917
          %v382 = vphi 0.0, %v918
        $region47: #{tpu_custom_call.1} parent=43 // loop_header_branch
          %333 = sbr.rel (%p331) target = $region51
        $region48: #{tpu_custom_call.1} parent=43 // loop_body
          %p383 = scmp.lt.s32.totalorder %s330, 2
          %s384 = scalar_select %p383, 1.0, -1.0
          %s385 = smul.u32 %s330, 32
          %s386 = scalar_lea.vmem %s2, %s385
          %v387 = vld [vmem:[%s386] sm:$0xff]
          %v388 = vld [vmem:[%s386 + $0x8] sm:$0xff]
          %v389 = vld [vmem:[%s386 + $0x10] sm:$0xff]
          %v390 = vld [vmem:[%s386 + $0x18] sm:$0xff]
          %s391 = scalar_lea.vmem %s4, %s330
          %v392 = vld [vmem:[%s391] sm:$0x1]
          %v394 = vperm.slane %v392, 0
          %vm396 = vcmask 261120
          %v398 = vsel %vm396, %v323, 0
          %v401 = vsel %vm396, %v324, 0
          %403 = vmatpush.msra.mxu0 0.0
          %404 = vmatpush.msra.mxu0 0.0
          %405 = vmatpush.msra.mxu0 0.0
          %406 = vmatpush.msra.mxu0 0.0
          %407 = vmatpush.msra.mxu0 0.0
          %408 = vmatpush.msra.mxu0 0.0
          %409 = vmatpush.msra.mxu0 0.0
          %410 = vmatpush.msra.mxu0 0.0
          %411 = vmatpush.msra.mxu0 0.0
          %412 = vmatpush.msra.mxu0 0.0
          %413 = vmatpush.msra.mxu0 0.0
          %414 = vmatpush.msra.mxu0 0.0
          %415 = vmatpush.msra.mxu0 %v390
          %416 = vmatpush.msra.mxu0 %v389
          %417 = vmatpush.msra.mxu0 %v388
          %418 = vmatpush.msra.mxu0 %v387
          %419 = vmatmul.f32.gmra.mxu0 %v398
          %v420 = vpop.f32.mrf.mxu0
          %v421 = vadd.f32 %v394, %v420
          %422 = vmatmul.f32.gmra.mxu0 %v401
          %v423 = vpop.f32.mrf.mxu0
          %v424 = vadd.f32 %v394, %v423
          %425 = vdwg.mxu0
          %s426 = smul.u32 %s330, 64
          %s427 = scalar_lea.vmem %s3, %s426
          %v428 = vld [vmem:[%s427] sm:$0xff]
          %v429 = vld [vmem:[%s427 + $0x8] sm:$0xff]
          %v430 = vld [vmem:[%s427 + $0x10] sm:$0xff]
          %v431 = vld [vmem:[%s427 + $0x18] sm:$0xff]
          %v432 = vld [vmem:[%s427 + $0x20] sm:$0xff]
          %v433 = vld [vmem:[%s427 + $0x28] sm:$0xff]
          %v434 = vld [vmem:[%s427 + $0x30] sm:$0xff]
          %v435 = vld [vmem:[%s427 + $0x38] sm:$0xff]
          %v437 = vsel %vm396, %v428, 0
          %v440 = vsel %vm396, %v429, 0
          %v443 = vsel %vm396, %v430, 0
          %v446 = vsel %vm396, %v431, 0
          %v449 = vsel %vm396, %v432, 0
          %v452 = vsel %vm396, %v433, 0
          %v455 = vsel %vm396, %v434, 0
          %v458 = vsel %vm396, %v435, 0
          %460 = vmatpush.msra.mxu0 0.0
          %461 = vmatpush.msra.mxu0 0.0
          %462 = vmatpush.msra.mxu0 0.0
          %463 = vmatpush.msra.mxu0 0.0
          %464 = vmatpush.msra.mxu0 0.0
          %465 = vmatpush.msra.mxu0 0.0
          %466 = vmatpush.msra.mxu0 0.0
          %467 = vmatpush.msra.mxu0 0.0
          %468 = vmatpush.msra.mxu0 0.0
          %469 = vmatpush.msra.mxu0 0.0
          %470 = vmatpush.msra.mxu0 0.0
          %471 = vmatpush.msra.mxu0 0.0
          %472 = vmatpush.msra.mxu0 %v328
          %473 = vmatpush.msra.mxu0 %v327
          %474 = vmatpush.msra.mxu0 %v326
          %475 = vmatpush.msra.mxu0 %v325
          %476 = vmatmul.f32.gmra.mxu0 %v437
          %v477 = vpop.f32.mrf.mxu0
          %v478 = vadd.f32 0.0, %v477
          %479 = vmatmul.f32.gmra.mxu0 %v440
          %v480 = vpop.f32.mrf.mxu0
          %v481 = vadd.f32 0.0, %v480
          %482 = vmatmul.f32.gmra.mxu0 %v443
          %v483 = vpop.f32.mrf.mxu0
          %v484 = vadd.f32 0.0, %v483
          %485 = vmatmul.f32.gmra.mxu0 %v446
          %v486 = vpop.f32.mrf.mxu0
          %v487 = vadd.f32 0.0, %v486
          %488 = vmatmul.f32.gmra.mxu0 %v449
          %v489 = vpop.f32.mrf.mxu0
          %v490 = vadd.f32 0.0, %v489
          %491 = vmatmul.f32.gmra.mxu0 %v452
          %v492 = vpop.f32.mrf.mxu0
          %v493 = vadd.f32 0.0, %v492
          %494 = vmatmul.f32.gmra.mxu0 %v455
          %v495 = vpop.f32.mrf.mxu0
          %v496 = vadd.f32 0.0, %v495
          %497 = vmatmul.f32.gmra.mxu0 %v458
          %v498 = vpop.f32.mrf.mxu0
          %v499 = vadd.f32 0.0, %v498
          %500 = vdwg.mxu0
          %v503 = vrot.slane %v421, 1
          %v504 = vrot.slane %v421, 2
          %v505 = vrot.slane %v421, 3
          %v506 = vrot.slane %v421, 4
          %v507 = vrot.slane %v421, 5
          %v508 = vrot.slane %v421, 6
          %v509 = vrot.slane %v421, 7
          %v510 = vrot.slane %v424, 1
          %v511 = vrot.slane %v424, 2
          %v512 = vrot.slane %v424, 3
          %v513 = vrot.slane %v424, 4
          %v514 = vrot.slane %v424, 5
          %v515 = vrot.slane %v424, 6
          %v516 = vrot.slane %v424, 7
          %517 = vxpose.xlu0.b32.start [1/16] %v478, 128
          %518 = vxpose.xlu0.b32.cont [2/16] %v481, 128
          %519 = vxpose.xlu0.b32.cont [3/16] %v484, 128
          %520 = vxpose.xlu0.b32.cont [4/16] %v487, 128
          %521 = vxpose.xlu0.b32.cont [5/16] %v490, 128
          %522 = vxpose.xlu0.b32.cont [6/16] %v493, 128
          %523 = vxpose.xlu0.b32.cont [7/16] %v496, 128
          %524 = vxpose.xlu0.b32.cont [8/16] %v499, 128
          %525 = vxpose.xlu0.b32.cont [9/16] 0.0, 128
          %526 = vxpose.xlu0.b32.cont [10/16] 0.0, 128
          %527 = vxpose.xlu0.b32.cont [11/16] 0.0, 128
          %528 = vxpose.xlu0.b32.cont [12/16] 0.0, 128
          %529 = vxpose.xlu0.b32.cont [13/16] 0.0, 128
          %530 = vxpose.xlu0.b32.cont [14/16] 0.0, 128
          %531 = vxpose.xlu0.b32.cont [15/16] 0.0, 128
          %532 = vxpose.xlu0.b32.end [16/16] 0.0, 128
          %v533 = vpop.trf.xlu0
          %v534 = vpop.trf.xlu0
          %v535 = vpop.trf.xlu0
          %v536 = vpop.trf.xlu0
          %v537 = vpop.trf.xlu0
          %v538 = vpop.trf.xlu0
          %v539 = vpop.trf.xlu0
          %v540 = vpop.trf.xlu0
          %v541 = vpop.trf.xlu0
          %v542 = vpop.trf.xlu0
          %v543 = vpop.trf.xlu0
          %v544 = vpop.trf.xlu0
          %v545 = vpop.trf.xlu0
          %v546 = vpop.trf.xlu0
          %v547 = vpop.trf.xlu0
          %v548 = vpop.trf.xlu0
          %v549 = vperm.slane %v421, 0
          %v550 = vperm.slane %v503, 0
          %v551 = vperm.slane %v504, 0
          %v552 = vperm.slane %v505, 0
          %v553 = vperm.slane %v506, 0
          %v554 = vperm.slane %v507, 0
          %v555 = vperm.slane %v508, 0
          %v556 = vperm.slane %v509, 0
          %v557 = vperm.slane %v424, 0
          %v558 = vperm.slane %v510, 0
          %v559 = vperm.slane %v511, 0
          %v560 = vperm.slane %v512, 0
          %v561 = vperm.slane %v513, 0
          %v562 = vperm.slane %v514, 0
          %v563 = vperm.slane %v515, 0
          %v564 = vperm.slane %v516, 0
          %v581 = vadd.f32 %v549, %v533
          %v582 = vadd.f32 %v549, %v534
          %v583 = vadd.f32 %v549, %v535
          %v584 = vadd.f32 %v550, %v533
          %v585 = vadd.f32 %v550, %v534
          %v586 = vadd.f32 %v550, %v535
          %v587 = vadd.f32 %v551, %v533
          %v588 = vadd.f32 %v551, %v534
          %v589 = vadd.f32 %v551, %v535
          %v590 = vadd.f32 %v552, %v533
          %v591 = vadd.f32 %v552, %v534
          %v592 = vadd.f32 %v552, %v535
          %v593 = vadd.f32 %v553, %v533
          %v594 = vadd.f32 %v553, %v534
          %v595 = vadd.f32 %v553, %v535
          %v596 = vadd.f32 %v554, %v533
          %v597 = vadd.f32 %v554, %v534
          %v598 = vadd.f32 %v554, %v535
          %v599 = vadd.f32 %v555, %v533
          %v600 = vadd.f32 %v555, %v534
          %v601 = vadd.f32 %v555, %v535
          %v602 = vadd.f32 %v556, %v533
          %v603 = vadd.f32 %v556, %v534
          %v604 = vadd.f32 %v556, %v535
          %v605 = vadd.f32 %v557, %v533
          %v606 = vadd.f32 %v557, %v534
          %v607 = vadd.f32 %v557, %v535
          %v608 = vadd.f32 %v558, %v533
          %v609 = vadd.f32 %v558, %v534
          %v610 = vadd.f32 %v558, %v535
          %v611 = vadd.f32 %v559, %v533
          %v612 = vadd.f32 %v559, %v534
          %v613 = vadd.f32 %v559, %v535
          %v614 = vadd.f32 %v560, %v533
          %v615 = vadd.f32 %v560, %v534
          %v616 = vadd.f32 %v560, %v535
          %v617 = vadd.f32 %v561, %v533
          %v618 = vadd.f32 %v561, %v534
          %v619 = vadd.f32 %v561, %v535
          %v620 = vadd.f32 %v562, %v533
          %v621 = vadd.f32 %v562, %v534
          %v622 = vadd.f32 %v562, %v535
          %v623 = vadd.f32 %v563, %v533
          %v624 = vadd.f32 %v563, %v534
          %v625 = vadd.f32 %v563, %v535
          %v626 = vadd.f32 %v564, %v533
          %v627 = vadd.f32 %v564, %v534
          %v628 = vadd.f32 %v564, %v535
          %v629 = vmax.f32 %v581, 0.0
          %v630 = vmax.f32 %v582, 0.0
          %v631 = vmax.f32 %v583, 0.0
          %v632 = vmax.f32 %v584, 0.0
          %v633 = vmax.f32 %v585, 0.0
          %v634 = vmax.f32 %v586, 0.0
          %v635 = vmax.f32 %v587, 0.0
          %v636 = vmax.f32 %v588, 0.0
          %v637 = vmax.f32 %v589, 0.0
          %v638 = vmax.f32 %v590, 0.0
          %v639 = vmax.f32 %v591, 0.0
          %v640 = vmax.f32 %v592, 0.0
          %v641 = vmax.f32 %v593, 0.0
          %v642 = vmax.f32 %v594, 0.0
          %v643 = vmax.f32 %v595, 0.0
          %v644 = vmax.f32 %v596, 0.0
          %v645 = vmax.f32 %v597, 0.0
          %v646 = vmax.f32 %v598, 0.0
          %v647 = vmax.f32 %v599, 0.0
          %v648 = vmax.f32 %v600, 0.0
          %v649 = vmax.f32 %v601, 0.0
          %v650 = vmax.f32 %v602, 0.0
          %v651 = vmax.f32 %v603, 0.0
          %v652 = vmax.f32 %v604, 0.0
          %v653 = vmax.f32 %v605, 0.0
          %v654 = vmax.f32 %v606, 0.0
          %v655 = vmax.f32 %v607, 0.0
          %v656 = vmax.f32 %v608, 0.0
          %v657 = vmax.f32 %v609, 0.0
          %v658 = vmax.f32 %v610, 0.0
          %v659 = vmax.f32 %v611, 0.0
          %v660 = vmax.f32 %v612, 0.0
          %v661 = vmax.f32 %v613, 0.0
          %v662 = vmax.f32 %v614, 0.0
          %v663 = vmax.f32 %v615, 0.0
          %v664 = vmax.f32 %v616, 0.0
          %v665 = vmax.f32 %v617, 0.0
          %v666 = vmax.f32 %v618, 0.0
          %v667 = vmax.f32 %v619, 0.0
          %v668 = vmax.f32 %v620, 0.0
          %v669 = vmax.f32 %v621, 0.0
          %v670 = vmax.f32 %v622, 0.0
          %v671 = vmax.f32 %v623, 0.0
          %v672 = vmax.f32 %v624, 0.0
          %v673 = vmax.f32 %v625, 0.0
          %v674 = vmax.f32 %v626, 0.0
          %v675 = vmax.f32 %v627, 0.0
          %v676 = vmax.f32 %v628, 0.0
          %vm677 = vcmask 523264
          %v678 = vsel %vm677, %v629, 0.0
          %679 = vadd.xlane.f32.xlu0 %v678
          %v680 = vpop.xlane.xlu0 %679
          %v681 = vsel %vm677, %v630, 0.0
          %682 = vadd.xlane.f32.xlu0 %v681
          %v683 = vpop.xlane.xlu0 %682
          %v684 = vsel %vm677, %v631, 0.0
          %685 = vadd.xlane.f32.xlu0 %v684
          %v686 = vpop.xlane.xlu0 %685
          %v687 = vsel %vm677, %v632, 0.0
          %688 = vadd.xlane.f32.xlu0 %v687
          %v689 = vpop.xlane.xlu0 %688
          %v690 = vsel %vm677, %v633, 0.0
          %691 = vadd.xlane.f32.xlu0 %v690
          %v692 = vpop.xlane.xlu0 %691
          %v693 = vsel %vm677, %v634, 0.0
          %694 = vadd.xlane.f32.xlu0 %v693
          %v695 = vpop.xlane.xlu0 %694
          %v696 = vsel %vm677, %v635, 0.0
          %697 = vadd.xlane.f32.xlu0 %v696
          %v698 = vpop.xlane.xlu0 %697
          %v699 = vsel %vm677, %v636, 0.0
          %700 = vadd.xlane.f32.xlu0 %v699
          %v701 = vpop.xlane.xlu0 %700
          %v702 = vsel %vm677, %v637, 0.0
          %703 = vadd.xlane.f32.xlu0 %v702
          %v704 = vpop.xlane.xlu0 %703
          %v705 = vsel %vm677, %v638, 0.0
          %706 = vadd.xlane.f32.xlu0 %v705
          %v707 = vpop.xlane.xlu0 %706
          %v708 = vsel %vm677, %v639, 0.0
          %709 = vadd.xlane.f32.xlu0 %v708
          %v710 = vpop.xlane.xlu0 %709
          %v711 = vsel %vm677, %v640, 0.0
          %712 = vadd.xlane.f32.xlu0 %v711
          %v713 = vpop.xlane.xlu0 %712
          %v714 = vsel %vm677, %v641, 0.0
          %715 = vadd.xlane.f32.xlu0 %v714
          %v716 = vpop.xlane.xlu0 %715
          %v717 = vsel %vm677, %v642, 0.0
          %718 = vadd.xlane.f32.xlu0 %v717
          %v719 = vpop.xlane.xlu0 %718
          %v720 = vsel %vm677, %v643, 0.0
          %721 = vadd.xlane.f32.xlu0 %v720
          %v722 = vpop.xlane.xlu0 %721
          %v723 = vsel %vm677, %v644, 0.0
          %724 = vadd.xlane.f32.xlu0 %v723
          %v725 = vpop.xlane.xlu0 %724
          %v726 = vsel %vm677, %v645, 0.0
          %727 = vadd.xlane.f32.xlu0 %v726
          %v728 = vpop.xlane.xlu0 %727
          %v729 = vsel %vm677, %v646, 0.0
          %730 = vadd.xlane.f32.xlu0 %v729
          %v731 = vpop.xlane.xlu0 %730
          %v732 = vsel %vm677, %v647, 0.0
          %733 = vadd.xlane.f32.xlu0 %v732
          %v734 = vpop.xlane.xlu0 %733
          %v735 = vsel %vm677, %v648, 0.0
          %736 = vadd.xlane.f32.xlu0 %v735
          %v737 = vpop.xlane.xlu0 %736
          %v738 = vsel %vm677, %v649, 0.0
          %739 = vadd.xlane.f32.xlu0 %v738
          %v740 = vpop.xlane.xlu0 %739
          %v741 = vsel %vm677, %v650, 0.0
          %742 = vadd.xlane.f32.xlu0 %v741
          %v743 = vpop.xlane.xlu0 %742
          %v744 = vsel %vm677, %v651, 0.0
          %745 = vadd.xlane.f32.xlu0 %v744
          %v746 = vpop.xlane.xlu0 %745
          %v747 = vsel %vm677, %v652, 0.0
          %748 = vadd.xlane.f32.xlu0 %v747
          %v749 = vpop.xlane.xlu0 %748
          %v750 = vsel %vm677, %v653, 0.0
          %751 = vadd.xlane.f32.xlu0 %v750
          %v752 = vpop.xlane.xlu0 %751
          %v753 = vsel %vm677, %v654, 0.0
          %754 = vadd.xlane.f32.xlu0 %v753
          %v755 = vpop.xlane.xlu0 %754
          %v756 = vsel %vm677, %v655, 0.0
          %757 = vadd.xlane.f32.xlu0 %v756
          %v758 = vpop.xlane.xlu0 %757
          %v759 = vsel %vm677, %v656, 0.0
          %760 = vadd.xlane.f32.xlu0 %v759
          %v761 = vpop.xlane.xlu0 %760
          %v762 = vsel %vm677, %v657, 0.0
          %763 = vadd.xlane.f32.xlu0 %v762
          %v764 = vpop.xlane.xlu0 %763
          %v765 = vsel %vm677, %v658, 0.0
          %766 = vadd.xlane.f32.xlu0 %v765
          %v767 = vpop.xlane.xlu0 %766
          %v768 = vsel %vm677, %v659, 0.0
          %769 = vadd.xlane.f32.xlu0 %v768
          %v770 = vpop.xlane.xlu0 %769
          %v771 = vsel %vm677, %v660, 0.0
          %772 = vadd.xlane.f32.xlu0 %v771
          %v773 = vpop.xlane.xlu0 %772
          %v774 = vsel %vm677, %v661, 0.0
          %775 = vadd.xlane.f32.xlu0 %v774
          %v776 = vpop.xlane.xlu0 %775
          %v777 = vsel %vm677, %v662, 0.0
          %778 = vadd.xlane.f32.xlu0 %v777
          %v779 = vpop.xlane.xlu0 %778
          %v780 = vsel %vm677, %v663, 0.0
          %781 = vadd.xlane.f32.xlu0 %v780
          %v782 = vpop.xlane.xlu0 %781
          %v783 = vsel %vm677, %v664, 0.0
          %784 = vadd.xlane.f32.xlu0 %v783
          %v785 = vpop.xlane.xlu0 %784
          %v786 = vsel %vm677, %v665, 0.0
          %787 = vadd.xlane.f32.xlu0 %v786
          %v788 = vpop.xlane.xlu0 %787
          %v789 = vsel %vm677, %v666, 0.0
          %790 = vadd.xlane.f32.xlu0 %v789
          %v791 = vpop.xlane.xlu0 %790
          %v792 = vsel %vm677, %v667, 0.0
          %793 = vadd.xlane.f32.xlu0 %v792
          %v794 = vpop.xlane.xlu0 %793
          %v795 = vsel %vm677, %v668, 0.0
          %796 = vadd.xlane.f32.xlu0 %v795
          %v797 = vpop.xlane.xlu0 %796
          %v798 = vsel %vm677, %v669, 0.0
          %799 = vadd.xlane.f32.xlu0 %v798
          %v800 = vpop.xlane.xlu0 %799
          %v801 = vsel %vm677, %v670, 0.0
          %802 = vadd.xlane.f32.xlu0 %v801
          %v803 = vpop.xlane.xlu0 %802
          %v804 = vsel %vm677, %v671, 0.0
          %805 = vadd.xlane.f32.xlu0 %v804
          %v806 = vpop.xlane.xlu0 %805
          %v807 = vsel %vm677, %v672, 0.0
          %808 = vadd.xlane.f32.xlu0 %v807
          %v809 = vpop.xlane.xlu0 %808
          %v810 = vsel %vm677, %v673, 0.0
          %811 = vadd.xlane.f32.xlu0 %v810
          %v812 = vpop.xlane.xlu0 %811
          %v813 = vsel %vm677, %v674, 0.0
          %814 = vadd.xlane.f32.xlu0 %v813
          %v815 = vpop.xlane.xlu0 %814
          %v816 = vsel %vm677, %v675, 0.0
          %817 = vadd.xlane.f32.xlu0 %v816
          %v818 = vpop.xlane.xlu0 %817
          %v819 = vsel %vm677, %v676, 0.0
          %820 = vadd.xlane.f32.xlu0 %v819
          %v821 = vpop.xlane.xlu0 %820
          %v822 = vstv %s384
          %v823 = vmul.f32 %v822, %v680
          %v824 = vmul.f32 %v822, %v683
          %v825 = vmul.f32 %v822, %v686
          %v826 = vmul.f32 %v822, %v689
          %v827 = vmul.f32 %v822, %v692
          %v828 = vmul.f32 %v822, %v695
          %v829 = vmul.f32 %v822, %v698
          %v830 = vmul.f32 %v822, %v701
          %v831 = vmul.f32 %v822, %v704
          %v832 = vmul.f32 %v822, %v707
          %v833 = vmul.f32 %v822, %v710
          %v834 = vmul.f32 %v822, %v713
          %v835 = vmul.f32 %v822, %v716
          %v836 = vmul.f32 %v822, %v719
          %v837 = vmul.f32 %v822, %v722
          %v838 = vmul.f32 %v822, %v725
          %v839 = vmul.f32 %v822, %v728
          %v840 = vmul.f32 %v822, %v731
          %v841 = vmul.f32 %v822, %v734
          %v842 = vmul.f32 %v822, %v737
          %v843 = vmul.f32 %v822, %v740
          %v844 = vmul.f32 %v822, %v743
          %v845 = vmul.f32 %v822, %v746
          %v846 = vmul.f32 %v822, %v749
          %v847 = vmul.f32 %v822, %v752
          %v848 = vmul.f32 %v822, %v755
          %v849 = vmul.f32 %v822, %v758
          %v850 = vmul.f32 %v822, %v761
          %v851 = vmul.f32 %v822, %v764
          %v852 = vmul.f32 %v822, %v767
          %v853 = vmul.f32 %v822, %v770
          %v854 = vmul.f32 %v822, %v773
          %v855 = vmul.f32 %v822, %v776
          %v856 = vmul.f32 %v822, %v779
          %v857 = vmul.f32 %v822, %v782
          %v858 = vmul.f32 %v822, %v785
          %v859 = vmul.f32 %v822, %v788
          %v860 = vmul.f32 %v822, %v791
          %v861 = vmul.f32 %v822, %v794
          %v862 = vmul.f32 %v822, %v797
          %v863 = vmul.f32 %v822, %v800
          %v864 = vmul.f32 %v822, %v803
          %v865 = vmul.f32 %v822, %v806
          %v866 = vmul.f32 %v822, %v809
          %v867 = vmul.f32 %v822, %v812
          %v868 = vmul.f32 %v822, %v815
          %v869 = vmul.f32 %v822, %v818
          %v870 = vmul.f32 %v822, %v821
          %v871 = vadd.f32 %v335, %v823
          %v872 = vadd.f32 %v336, %v824
          %v873 = vadd.f32 %v337, %v825
          %v874 = vadd.f32 %v338, %v826
          %v875 = vadd.f32 %v339, %v827
          %v876 = vadd.f32 %v340, %v828
          %v877 = vadd.f32 %v341, %v829
          %v878 = vadd.f32 %v342, %v830
          %v879 = vadd.f32 %v343, %v831
          %v880 = vadd.f32 %v344, %v832
          %v881 = vadd.f32 %v345, %v833
          %v882 = vadd.f32 %v346, %v834
          %v883 = vadd.f32 %v347, %v835
          %v884 = vadd.f32 %v348, %v836
          %v885 = vadd.f32 %v349, %v837
          %v886 = vadd.f32 %v350, %v838
          %v887 = vadd.f32 %v351, %v839
          %v888 = vadd.f32 %v352, %v840
          %v889 = vadd.f32 %v353, %v841
          %v890 = vadd.f32 %v354, %v842
          %v891 = vadd.f32 %v355, %v843
          %v892 = vadd.f32 %v356, %v844
          %v893 = vadd.f32 %v357, %v845
          %v894 = vadd.f32 %v358, %v846
          %v895 = vadd.f32 %v359, %v847
          %v896 = vadd.f32 %v360, %v848
          %v897 = vadd.f32 %v361, %v849
          %v898 = vadd.f32 %v362, %v850
          %v899 = vadd.f32 %v363, %v851
          %v900 = vadd.f32 %v364, %v852
          %v901 = vadd.f32 %v365, %v853
          %v902 = vadd.f32 %v366, %v854
          %v903 = vadd.f32 %v367, %v855
          %v904 = vadd.f32 %v368, %v856
          %v905 = vadd.f32 %v369, %v857
          %v906 = vadd.f32 %v370, %v858
          %v907 = vadd.f32 %v371, %v859
          %v908 = vadd.f32 %v372, %v860
          %v909 = vadd.f32 %v373, %v861
          %v910 = vadd.f32 %v374, %v862
          %v911 = vadd.f32 %v375, %v863
          %v912 = vadd.f32 %v376, %v864
          %v913 = vadd.f32 %v377, %v865
          %v914 = vadd.f32 %v378, %v866
          %v915 = vadd.f32 %v379, %v867
          %v916 = vadd.f32 %v380, %v868
          %v917 = vadd.f32 %v381, %v869
          %v918 = vadd.f32 %v382, %v870
        $region49: #{tpu_custom_call.1} parent=43 // loop_footer
          %s334 = sadd.s32 1, %s330
        $region50: #{tpu_custom_call.1} parent=43 // loop_footer_branch
          %329 = sbr.rel target = $region46
        $region51: #{tpu_custom_call.1} parent=43 // loop_exit
          _
        %v919 = vld [vmem:[#allocation2] sm:$0x1]
        %s920 = vtos %v919
        %v921 = vstv %s920
        %v922 = vadd.f32 %v335, %v921
        %v923 = vadd.f32 %v336, %v921
        %v924 = vadd.f32 %v337, %v921
        %v925 = vadd.f32 %v338, %v921
        %v926 = vadd.f32 %v339, %v921
        %v927 = vadd.f32 %v340, %v921
        %v928 = vadd.f32 %v341, %v921
        %v929 = vadd.f32 %v342, %v921
        %v930 = vadd.f32 %v343, %v921
        %v931 = vadd.f32 %v344, %v921
        %v932 = vadd.f32 %v345, %v921
        %v933 = vadd.f32 %v346, %v921
        %v934 = vadd.f32 %v347, %v921
        %v935 = vadd.f32 %v348, %v921
        %v936 = vadd.f32 %v349, %v921
        %v937 = vadd.f32 %v350, %v921
        %v938 = vadd.f32 %v351, %v921
        %v939 = vadd.f32 %v352, %v921
        %v940 = vadd.f32 %v353, %v921
        %v941 = vadd.f32 %v354, %v921
        %v942 = vadd.f32 %v355, %v921
        %v943 = vadd.f32 %v356, %v921
        %v944 = vadd.f32 %v357, %v921
        %v945 = vadd.f32 %v358, %v921
        %v946 = vadd.f32 %v359, %v921
        %v947 = vadd.f32 %v360, %v921
        %v948 = vadd.f32 %v361, %v921
        %v949 = vadd.f32 %v362, %v921
        %v950 = vadd.f32 %v363, %v921
        %v951 = vadd.f32 %v364, %v921
        %v952 = vadd.f32 %v365, %v921
        %v953 = vadd.f32 %v366, %v921
        %v954 = vadd.f32 %v367, %v921
        %v955 = vadd.f32 %v368, %v921
        %v956 = vadd.f32 %v369, %v921
        %v957 = vadd.f32 %v370, %v921
        %v958 = vadd.f32 %v371, %v921
        %v959 = vadd.f32 %v372, %v921
        %v960 = vadd.f32 %v373, %v921
        %v961 = vadd.f32 %v374, %v921
        %v962 = vadd.f32 %v375, %v921
        %v963 = vadd.f32 %v376, %v921
        %v964 = vadd.f32 %v377, %v921
        %v965 = vadd.f32 %v378, %v921
        %v966 = vadd.f32 %v379, %v921
        %v967 = vadd.f32 %v380, %v921
        %v968 = vadd.f32 %v381, %v921
        %v969 = vadd.f32 %v382, %v921
        %v1018 = vlaneseq
        %v1019 = vand.u32 %v1018, 127
        %v1020 = vperm.slane %v922, %v1019
        %v1021 = vadd.s32 %v1019, 4294967288
        %v1022 = vperm.slane %v923, %v1021
        %vm1023 = vcmask 130112
        %v1024 = vsel %vm1023, %v1022, %v1020
        %v1025 = vadd.s32 %v1019, 4294967280
        %v1026 = vperm.slane %v924, %v1025
        %vm1027 = vcmask 195712
        %v1028 = vsel %vm1027, %v1026, %v1024
        %v1029 = vperm.slane %v925, %v1019
        %v1030 = vperm.slane %v926, %v1021
        %v1031 = vsel %vm1023, %v1030, %v1029
        %v1032 = vperm.slane %v927, %v1025
        %v1033 = vsel %vm1027, %v1032, %v1031
        %v1034 = vperm.slane %v928, %v1019
        %v1035 = vperm.slane %v929, %v1021
        %v1036 = vsel %vm1023, %v1035, %v1034
        %v1037 = vperm.slane %v930, %v1025
        %v1038 = vsel %vm1027, %v1037, %v1036
        %v1039 = vperm.slane %v931, %v1019
        %v1040 = vperm.slane %v932, %v1021
        %v1041 = vsel %vm1023, %v1040, %v1039
        %v1042 = vperm.slane %v933, %v1025
        %v1043 = vsel %vm1027, %v1042, %v1041
        %v1044 = vperm.slane %v934, %v1019
        %v1045 = vperm.slane %v935, %v1021
        %v1046 = vsel %vm1023, %v1045, %v1044
        %v1047 = vperm.slane %v936, %v1025
        %v1048 = vsel %vm1027, %v1047, %v1046
        %v1049 = vperm.slane %v937, %v1019
        %v1050 = vperm.slane %v938, %v1021
        %v1051 = vsel %vm1023, %v1050, %v1049
        %v1052 = vperm.slane %v939, %v1025
        %v1053 = vsel %vm1027, %v1052, %v1051
        %v1054 = vperm.slane %v940, %v1019
        %v1055 = vperm.slane %v941, %v1021
        %v1056 = vsel %vm1023, %v1055, %v1054
        %v1057 = vperm.slane %v942, %v1025
        %v1058 = vsel %vm1027, %v1057, %v1056
        %v1059 = vperm.slane %v943, %v1019
        %v1060 = vperm.slane %v944, %v1021
        %v1061 = vsel %vm1023, %v1060, %v1059
        %v1062 = vperm.slane %v945, %v1025
        %v1063 = vsel %vm1027, %v1062, %v1061
        %v1064 = vperm.slane %v946, %v1019
        %v1065 = vperm.slane %v947, %v1021
        %v1066 = vsel %vm1023, %v1065, %v1064
        %v1067 = vperm.slane %v948, %v1025
        %v1068 = vsel %vm1027, %v1067, %v1066
        %v1069 = vperm.slane %v949, %v1019
        %v1070 = vperm.slane %v950, %v1021
        %v1071 = vsel %vm1023, %v1070, %v1069
        %v1072 = vperm.slane %v951, %v1025
        %v1073 = vsel %vm1027, %v1072, %v1071
        %v1074 = vperm.slane %v952, %v1019
        %v1075 = vperm.slane %v953, %v1021
        %v1076 = vsel %vm1023, %v1075, %v1074
        %v1077 = vperm.slane %v954, %v1025
        %v1078 = vsel %vm1027, %v1077, %v1076
        %v1079 = vperm.slane %v955, %v1019
        %v1080 = vperm.slane %v956, %v1021
        %v1081 = vsel %vm1023, %v1080, %v1079
        %v1082 = vperm.slane %v957, %v1025
        %v1083 = vsel %vm1027, %v1082, %v1081
        %v1084 = vperm.slane %v958, %v1019
        %v1085 = vperm.slane %v959, %v1021
        %v1086 = vsel %vm1023, %v1085, %v1084
        %v1087 = vperm.slane %v960, %v1025
        %v1088 = vsel %vm1027, %v1087, %v1086
        %v1089 = vperm.slane %v961, %v1019
        %v1090 = vperm.slane %v962, %v1021
        %v1091 = vsel %vm1023, %v1090, %v1089
        %v1092 = vperm.slane %v963, %v1025
        %v1093 = vsel %vm1027, %v1092, %v1091
        %v1094 = vperm.slane %v964, %v1019
        %v1095 = vperm.slane %v965, %v1021
        %v1096 = vsel %vm1023, %v1095, %v1094
        %v1097 = vperm.slane %v966, %v1025
        %v1098 = vsel %vm1027, %v1097, %v1096
        %v1099 = vperm.slane %v967, %v1019
        %v1100 = vperm.slane %v968, %v1021
        %v1101 = vsel %vm1023, %v1100, %v1099
        %v1102 = vperm.slane %v969, %v1025
        %v1103 = vsel %vm1027, %v1102, %v1101
        %vm1104 = vcmask 1041409
        %v1105 = vsel %vm1104, %v1033, %v1028
        %vm1106 = vcmask 1042434
        %v1107 = vsel %vm1106, %v1038, %v1105
        %vm1108 = vcmask 1043459
        %v1109 = vsel %vm1108, %v1043, %v1107
        %vm1110 = vcmask 1044484
        %v1111 = vsel %vm1110, %v1048, %v1109
        %vm1112 = vcmask 1045509
        %v1113 = vsel %vm1112, %v1053, %v1111
        %vm1114 = vcmask 1046534
        %v1115 = vsel %vm1114, %v1058, %v1113
        %vm1116 = vcmask 1047559
        %v1117 = vsel %vm1116, %v1063, %v1115
        %v1118 = vsel %vm1104, %v1073, %v1068
        %v1119 = vsel %vm1106, %v1078, %v1118
        %v1120 = vsel %vm1108, %v1083, %v1119
        %v1121 = vsel %vm1110, %v1088, %v1120
        %v1122 = vsel %vm1112, %v1093, %v1121
        %v1123 = vsel %vm1114, %v1098, %v1122
        %v1124 = vsel %vm1116, %v1103, %v1123
        %vm1127 = vcmask 195584
        %1128 = vst.msk [vmem:[%s303] sm:$0xff] %vm1127, %v1117
        %1129 = vst.msk [vmem:[%s303 + $0x8] sm:$0xff] %vm1127, %v1124
        %s1130 = sand.u32 %s193, 1
        %s1131 = scalar_lea.sflag [#allocation4], %s1130
        %s1132 = sand.u32 %s193, 1
        %s1133 = smul.addr %s1132, 16
        %s1134 = scalar_lea.vmem [#allocation3], %s1133
        // Predicated region
        $region52: #{tpu_custom_call.1} parent=43 // pred_check
          %p1135 = pneg %p203
        $region53: #{tpu_custom_call.1} parent=43 // pred_check_branch
          %1137 = sbr.rel (%p1135) target = $region55
        $region54: #{tpu_custom_call.1} parent=43 // pred_region
          %s1138 = smul.u32 2, %s28
          %1140 = vsyncadd %s1131, 0
          %s1141 = sadd.s32 %s29, %s1138
          %s1142 = smul.addr %s27, 2
          %s1143 = sadd.s32 %s1141, %s1142
          %s1144 = smul.addr %s1143, 8
          %s1145 = scalar_lea.hbm %s6, %s1144
          %s1146 = sshll.u32 %s1134, 4
          %s1147 = int_to_ptr.vmem [resolvable:$true] %s1146
          %s1148 = sshll.u32 %s1145, 4
          %s1149 = int_to_ptr.hbm [resolvable:$true] %s1148
          %1154 = dma.vmem_to_hbm [thread:$0]  %s1147, 256, %s1149, %s1131, 128, 128, 8
        $region55: #{tpu_custom_call.1} parent=43 // pred_fallthru
          _
      $region44: #{tpu_custom_call.1} parent=5 // pred_fallthru
        _
      %p1155 = scmp.le.s32.totalorder 2, %s17
      // Predicated region
      $region56: #{tpu_custom_call.1} parent=5 // pred_check
        %p1156 = pneg %p1155
      $region57: #{tpu_custom_call.1} parent=5 // pred_check_branch
        %1158 = sbr.rel (%p1156) target = $region59
      $region58: #{tpu_custom_call.1} parent=5 // pred_region
        %s1159 = ssub.s32 %s17, 2
        // Predicated region
        $region60: #{tpu_custom_call.1} parent=58 // pred_check
          %p1160 = pneg %p209
        $region61: #{tpu_custom_call.1} parent=58 // pred_check_branch
          %1162 = sbr.rel (%p1160) target = $region63
        $region62: #{tpu_custom_call.1} parent=58 // pred_region
          %s1163 = sand.u32 %s194, 1
          %s1164 = scalar_lea.sflag [#allocation4], %s1163
          %s1165 = sand.u32 %s194, 1
          %s1166 = smul.addr %s1165, 16
          %s1167 = scalar_lea.vmem [#allocation3], %s1166
          %1169 = dma.done %s1164, 256
        $region63: #{tpu_custom_call.1} parent=58 // pred_fallthru
          _
      $region59: #{tpu_custom_call.1} parent=5 // pred_fallthru
        _
    $region6: #{tpu_custom_call.1} parent=1 // loop_footer
      %s21 = sadd.s32 1, %s17
    $region7: #{tpu_custom_call.1} parent=1 // loop_footer_branch
      %16 = sbr.rel target = $region3
    $region8: #{tpu_custom_call.1} parent=1 // loop_exit
      _
    %1170 = vsyncpa [#allocation4], 1
    %s1171 = scalar_lea.sflag [#allocation4], 1
    %1172 = vsyncpa %s1171, 1

</llo_original>
